<compile_context>
chip_gen: v6e
topology: v6e:2x2x1
jax: 0.10.0
libtpu: 0.0.40
codegen_flags: <defaults>
</compile_context>

<pallas_src>
import numpy as np
import jax
import jax.numpy as jnp
from jax import lax
from jax.experimental import pallas as pl
from jax.experimental.pallas import tpu as pltpu


def _ceil_to(x, m):
    return -(-x // m) * m


# ----------------------------------------------------------------- wrapper --
def decoder_forward_pallas(params, s0, xs_h, ys, uh, xs_mask, ys_mask):
    T, B = ys.shape
    S, _, C = xs_h.shape
    A = uh.shape[2]
    D = s0.shape[1]
    E = params["emb"].shape[1]
    O2 = params["ls_w"].shape[1]
    O = O2 // 2

    f32 = jnp.float32
    G = 3 * D                         # concatenated z|r|h gate width
    Bp = _ceil_to(max(B, 8), 8)       # batch -> full sublane tile
    Ap = _ceil_to(A, 128)             # attention width -> full lane tile
    Gp = _ceil_to(G, 128)             # lane-tile aligned split point in W_c
    Op = _ceil_to(O, 128)             # maxout half width -> lane-dense stores
    O2p = 2 * Op
    LQ = 128                          # padded a1 column block
    SA_OFF = O2p                      # column offsets in W_state = [Wls|sa|Wh]
    HG_OFF = O2p + Ap
    WTOT = O2p + Ap + G

    # ---------------- batch padding (keeps real columns bit-identical) -------
    pb = Bp - B
    s0p = jnp.pad(s0.astype(f32), ((0, pb), (0, 0)))
    xs_hp = jnp.pad(xs_h.astype(f32), ((0, 0), (0, pb), (0, 0)))
    xs_mp = jnp.pad(xs_mask.astype(f32), ((0, 0), (0, pb)), constant_values=1.0)
    ysp = jnp.pad(ys, ((0, 0), (0, pb)))                 # PAD -> zero embedding
    ys_mp = jnp.pad(ys_mask.astype(f32), ((0, 0), (0, pb)))

    # uh: pad batch and lane dim A -> Ap; fold the attention bias sa_b.
    # Padded lanes stay exactly zero (sa_w pad cols and a1 pad rows are zero,
    # so they contribute nothing to the score).
    uhp = jnp.zeros((S, Bp, Ap), f32)
    uhp = uhp.at[:, :B, :A].set(uh.astype(f32) + params["sa_b"][None, None, :])

    xs_m3 = xs_mp[:, :, None]
    ys_m3 = ys_mp[:, :, None]

    # ---------- y-only projections hoisted out of the recurrence -------------
    # All additively-used biases are folded here (hh_b stays in-kernel: it is
    # multiplied by r inside the candidate gate).
    ys_e = jnp.take(params["emb"], ysp, axis=0).astype(f32)        # (T, Bp, E)
    wx = jnp.concatenate([params["xz_w"], params["xr_w"], params["xh_w"]], axis=1)
    bx = jnp.concatenate([
        params["xz_b"] + params["hz_b"] + params["cz_b"],
        params["xr_b"] + params["hr_b"] + params["cr_b"],
        params["xh_b"] + params["ch_b"],
    ])
    xg_all = (ys_e.reshape(T * Bp, E) @ wx + bx).reshape(T, Bp, G)

    def maxout_perm_pad(w):
        # original maxout pair (2j, 2j+1) -> columns (j, Op + j); pad cols zero
        out = jnp.zeros(w.shape[:-1] + (O2p,), f32)
        out = out.at[..., 0:O].set(w[..., 0::2])
        out = out.at[..., Op:Op + O].set(w[..., 1::2])
        return out

    wls_p = maxout_perm_pad(params["ls_w"])                        # (D, O2p)
    wly_p = maxout_perm_pad(params["ly_w"])                        # (E, O2p)
    wlc_p = maxout_perm_pad(params["lc_w"])                        # (C, O2p)
    bout_p = maxout_perm_pad(
        (params["ls_b"] + params["ly_b"] + params["lc_b"])[None, :])[0]
    ly_all = (ys_e.reshape(T * Bp, E) @ wly_p + bout_p).reshape(T, Bp, O2p)

    # ---------- fused per-operand weights ------------------------------------
    wh = jnp.concatenate([params["hz_w"], params["hr_w"], params["hh_w"]], axis=1)
    wcg = jnp.concatenate([params["cz_w"], params["cr_w"], params["ch_w"]], axis=1)

    # single state-side weight: updated state h_t is multiplied ONCE per step
    W_state = (jnp.zeros((D, WTOT), f32)
               .at[:, 0:O2p].set(wls_p)                 # maxout ls (this step)
               .at[:, SA_OFF:SA_OFF + A].set(params["sa_w"])   # attention (next step)
               .at[:, HG_OFF:HG_OFF + G].set(wh))              # GRU h-gates (next step)
    # context multiplied once: [GRU c-gates | maxout lc]
    W_c = (jnp.zeros((C, Gp + O2p), f32)
           .at[:, 0:G].set(wcg)
           .at[:, Gp:].set(wlc_p))
    a1p = jnp.zeros((Ap, LQ), f32).at[:A, 0].set(params["a1_w"])
    hhb = params["hh_b"][None, :].astype(f32)                      # (1, D)

    # ------------------------------------------------------------- kernel ---
    def kernel(xg_ref, ly_ref, ym_ref, s0_ref, xsh_ref, uh_ref, xsm_ref,
               wstate_ref, wc_ref, a1_ref, hhb_ref, out_ref):
        # loop-invariant broadcast hoisted (JAX does not CSE broadcast_in_dim)
        hhb_b = jnp.broadcast_to(hhb_ref[...], (Bp, D))

        s0v = s0_ref[...]                                          # (Bp, D)
        # s0's [ls | sa | hg] projection once before the loop (ls part unused)
        sh0 = jnp.dot(s0v, wstate_ref[...], preferred_element_type=jnp.float32)

        def step(k, carry):
            s_tm1, sh = carry                                      # (Bp,D), (Bp,WTOT)
            sa = sh[:, SA_OFF:HG_OFF]                              # (Bp, Ap) full lane tile
            hg = sh[:, HG_OFF:HG_OFF + G]                          # (Bp, G)

            # ---------- attention (max-stabilized softmax over S) ----------
            t = jnp.tanh(sa[None, :, :] + uh_ref[...])             # (S, Bp, Ap)
            sc = jnp.dot(t.reshape(S * Bp, Ap), a1_ref[...],
                         preferred_element_type=jnp.float32)[:, 0:1]
            sc = sc.reshape(S, Bp, 1)
            sc = sc - jnp.max(sc, axis=0, keepdims=True)
            e = jnp.exp(sc) * xsm_ref[...]                         # (S, Bp, 1)
            denom = jnp.sum(e, axis=0)                             # (Bp, 1)
            attend = jnp.sum(e * xsh_ref[...], axis=0)             # (Bp, C) un-normalized
            # deferred normalization: one per-row multiply, EUP approx recip
            attend = attend * pl.reciprocal(denom, approx=True)

            # one fused matmul on the context: [GRU c-gates | maxout lc]
            ch = jnp.dot(attend, wc_ref[...], preferred_element_type=jnp.float32)
            cg = ch[:, 0:G]                                        # (Bp, G)
            logit_c = ch[:, Gp:]                                   # (Bp, O2p)

            # ---------- conditional GRU (y matmul + foldable biases hoisted) --
            xg = xg_ref[k]                                         # (Bp, G)
            z = jax.nn.sigmoid(xg[:, 0:D] + hg[:, 0:D] + cg[:, 0:D])
            r = jax.nn.sigmoid(xg[:, D:2 * D] + hg[:, D:2 * D] + cg[:, D:2 * D])
            h_tl = jnp.tanh(xg[:, 2 * D:] + r * (hg[:, 2 * D:] + hhb_b)
                            + cg[:, 2 * D:])
            y_m = ym_ref[k]                                        # (Bp, 1)
            h_t = (1.0 - z) * s_tm1 + z * h_tl
            h_t = y_m * h_t + (1.0 - y_m) * s_tm1

            # ---------- single merged matmul on the UPDATED state ----------
            # [Wls | sa_w | Wh]: ls slice feeds this step's maxout, the rest
            # is carried to step k+1 (replaces the separate Wls matmul).
            sh_new = jnp.dot(h_t, wstate_ref[...],
                             preferred_element_type=jnp.float32)
            logit2 = sh_new[:, 0:O2p] + logit_c + ly_ref[k]        # (Bp, O2p)
            out_ref[k] = jnp.maximum(logit2[:, :Op], logit2[:, Op:]) * y_m
            return (h_t, sh_new)

        # short static T -> full unroll; only h_t/sh serialize steps, so the
        # scheduler can overlap step k's store-side work with step k+1.
        lax.fori_loop(0, T, step, (s0v, sh0), unroll=True)

    def full(shape):
        return pl.BlockSpec(shape, lambda i: (0,) * len(shape))

    grid_spec = pltpu.PrefetchScalarGridSpec(
        num_scalar_prefetch=0,
        grid=(1,),
        in_specs=[
            full((T, Bp, G)),        # xg_all (y @ Wx + all foldable biases)
            full((T, Bp, O2p)),      # ly_all (y @ Wly + all output biases)
            full((T, Bp, 1)),        # ys_mask
            full((Bp, D)),           # s0
            full((S, Bp, C)),        # xs_h
            full((S, Bp, Ap)),       # uh (+ sa_b, lane-padded to Ap)
            full((S, Bp, 1)),        # xs_mask
            full((D, WTOT)),         # W_state = [Wls | sa_w | Wh]
            full((C, Gp + O2p)),     # W_c     = [Wc  | Wlc]
            full((Ap, LQ)),          # a1 (padded rows/columns)
            full((1, D)),            # hh_b (only non-foldable bias)
        ],
        out_specs=full((T, Bp, Op)),
    )

    out = pl.pallas_call(
        kernel,
        out_shape=jax.ShapeDtypeStruct((T, Bp, Op), jnp.float32),
        grid_spec=grid_spec,
        compiler_params=pltpu.CompilerParams(dimension_semantics=("arbitrary",)),
    )(xg_all, ly_all, ys_m3, s0p, xs_hp, uhp, xs_m3, W_state, W_c, a1p, hhb)

    return out[:, :B, :O]


# ----------------------------------------------------- pure-JAX reference --
def decoder_forward_ref(params, s0, xs_h, ys, uh, xs_mask, ys_mask):
    ys_e = jnp.take(params["emb"], ys, axis=0).astype(jnp.float32)
    T, B = ys.shape
    s = s0
    logits = []
    for k in range(T):
        y_t, y_m = ys_e[k], ys_mask[k]
        # attention
        sa = s @ params["sa_w"] + params["sa_b"]
        t = jnp.tanh(sa[None] + uh)
        score = jnp.sum(t * params["a1_w"][None, None, :], axis=-1) + params["a1_b"]
        e = jnp.exp(score) * xs_mask
        e = e / e.sum(0, keepdims=True)
        attend = (e[:, :, None] * xs_h).sum(0)
        # conditional GRU
        z = jax.nn.sigmoid(y_t @ params["xz_w"] + params["xz_b"]
                           + s @ params["hz_w"] + params["hz_b"]
                           + attend @ params["cz_w"] + params["cz_b"])
        r = jax.nn.sigmoid(y_t @ params["xr_w"] + params["xr_b"]
                           + s @ params["hr_w"] + params["hr_b"]
                           + attend @ params["cr_w"] + params["cr_b"])
        h_tilde = jnp.tanh(y_t @ params["xh_w"] + params["xh_b"]
                           + r * (s @ params["hh_w"] + params["hh_b"])
                           + attend @ params["ch_w"] + params["ch_b"])
        h_t = (1.0 - z) * s + z * h_tilde
        s = y_m[:, None] * h_t + (1.0 - y_m[:, None]) * s
        # step_out (maxout)
        logit2 = (s @ params["ls_w"] + params["ls_b"]
                  + y_t @ params["ly_w"] + params["ly_b"]
                  + attend @ params["lc_w"] + params["lc_b"])
        logit2 = logit2.reshape(B, logit2.shape[1] // 2, 2)
        logits.append(jnp.max(logit2, axis=-1))
    logit = jnp.stack(logits, axis=0)
    return logit * ys_mask[:, :, None]


# --------------------------------------------------------------------- main --
def _linear(key, fan_in, fan_out):
    kw, kb = jax.random.split(key)
    bound = 1.0 / np.sqrt(fan_in)
    w = jax.random.uniform(kw, (fan_in, fan_out), jnp.float32, -bound, bound)
    b = jax.random.uniform(kb, (fan_out,), jnp.float32, -bound, bound)
    return w, b


if __name__ == "__main__":
    PAD = 0
    V = 11                 # trg_vocab_size
    E = 32                 # trg_wemb_size
    D = 32                 # dec_hid_size
    A = 32                 # align_size
    C = 32                 # 2 * enc_hid_size
    OUT = 32               # out_size (maxout => projections are 2*OUT wide)
    S, T, B = 8, 6, 2      # source len, target len, batch

    keys = jax.random.split(jax.random.PRNGKey(0), 24)
    p = {}
    emb = jax.random.normal(keys[0], (V, E), jnp.float32) * 0.1
    p["emb"] = emb.at[PAD].set(0.0)
    p["sa_w"], p["sa_b"] = _linear(keys[1], D, A)
    a1_w, a1_b = _linear(keys[2], A, 1)
    p["a1_w"], p["a1_b"] = a1_w[:, 0], a1_b[0]
    names = ["xz", "xr", "xh", "hz", "hr", "hh", "cz", "cr", "ch"]
    fans = [E, E, E, D, D, D, C, C, C]
    for i, (n, f) in enumerate(zip(names, fans)):
        p[n + "_w"], p[n + "_b"] = _linear(keys[3 + i], f, D)
    p["ls_w"], p["ls_b"] = _linear(keys[12], D, 2 * OUT)
    p["ly_w"], p["ly_b"] = _linear(keys[13], E, 2 * OUT)
    p["lc_w"], p["lc_b"] = _linear(keys[14], C, 2 * OUT)

    s0 = jax.random.normal(keys[15], (B, D), jnp.float32)
    xs_h = jax.random.normal(keys[16], (S, B, C), jnp.float32)
    uh = jax.random.normal(keys[17], (S, B, A), jnp.float32)
    ys = jax.random.randint(keys[18], (T, B), 1, V, jnp.int32)
    xs_mask = jnp.ones((S, B), jnp.float32).at[6:, 1].set(0.0)
    ys_mask = jnp.ones((T, B), jnp.float32).at[4:, 1].set(0.0)

    out = decoder_forward_pallas(p, s0, xs_h, ys, uh, xs_mask, ys_mask)
    out = jax.block_until_ready(out)

    ref = decoder_forward_ref(p, s0, xs_h, ys, uh, xs_mask, ys_mask)
    if not jnp.allclose(out, ref, atol=1e-2, rtol=1e-2):
        raise AssertionError("Pallas decoder output does not match reference")
    print("KERNEL_OK")
</pallas_src>

<mosaic_0001>
module attributes {stable_mosaic.version = 11 : i64} {
  func.func @kernel(%arg0: i32, %arg1: memref<6x8x96xf32, #tpu.memory_space<vmem>>, %arg2: memref<6x8x256xf32, #tpu.memory_space<vmem>>, %arg3: memref<6x8x1xf32, #tpu.memory_space<vmem>>, %arg4: memref<8x32xf32, #tpu.memory_space<vmem>>, %arg5: memref<8x8x32xf32, #tpu.memory_space<vmem>>, %arg6: memref<8x8x128xf32, #tpu.memory_space<vmem>>, %arg7: memref<8x8x1xf32, #tpu.memory_space<vmem>>, %arg8: memref<32x480xf32, #tpu.memory_space<vmem>>, %arg9: memref<32x384xf32, #tpu.memory_space<vmem>>, %arg10: memref<128x128xf32, #tpu.memory_space<vmem>>, %arg11: memref<1x32xf32, #tpu.memory_space<vmem>>, %arg12: memref<6x8x128xf32, #tpu.memory_space<vmem>>) attributes {dimension_semantics = [#tpu.dimension_semantics<arbitrary>], iteration_bounds = array<i64: 1>, scalar_prefetch = 0 : i64, scratch_operands = 0 : i64, tpu.core_type = #tpu.core_type<tc>, window_params = [{pipeline_mode = #tpu.pipeline_mode<synchronous>, transform_indices = @transform_0, window_bounds = array<i64: 6, 8, 96>}, {pipeline_mode = #tpu.pipeline_mode<synchronous>, transform_indices = @transform_1, window_bounds = array<i64: 6, 8, 256>}, {pipeline_mode = #tpu.pipeline_mode<synchronous>, transform_indices = @transform_2, window_bounds = array<i64: 6, 8, 1>}, {pipeline_mode = #tpu.pipeline_mode<synchronous>, transform_indices = @transform_3, window_bounds = array<i64: 8, 32>}, {pipeline_mode = #tpu.pipeline_mode<synchronous>, transform_indices = @transform_4, window_bounds = array<i64: 8, 8, 32>}, {pipeline_mode = #tpu.pipeline_mode<synchronous>, transform_indices = @transform_5, window_bounds = array<i64: 8, 8, 128>}, {pipeline_mode = #tpu.pipeline_mode<synchronous>, transform_indices = @transform_6, window_bounds = array<i64: 8, 8, 1>}, {pipeline_mode = #tpu.pipeline_mode<synchronous>, transform_indices = @transform_7, window_bounds = array<i64: 32, 480>}, {pipeline_mode = #tpu.pipeline_mode<synchronous>, transform_indices = @transform_8, window_bounds = array<i64: 32, 384>}, {pipeline_mode = #tpu.pipeline_mode<synchronous>, transform_indices = @transform_9, window_bounds = array<i64: 128, 128>}, {pipeline_mode = #tpu.pipeline_mode<synchronous>, transform_indices = @transform_10, window_bounds = array<i64: 1, 32>}, {pipeline_mode = #tpu.pipeline_mode<synchronous>, transform_indices = @transform_11, window_bounds = array<i64: 6, 8, 128>}]} {
    %c0 = arith.constant 0 : index
    %c0_0 = arith.constant 0 : index
    %0 = vector.load %arg11[%c0, %c0_0] : memref<1x32xf32, #tpu.memory_space<vmem>>, vector<1x32xf32>
    %1 = vector.shape_cast %0 : vector<1x32xf32> to vector<1x32xf32>
    %2 = vector.broadcast %1 : vector<1x32xf32> to vector<8x32xf32>
    %c0_1 = arith.constant 0 : index
    %c0_2 = arith.constant 0 : index
    %3 = vector.load %arg4[%c0_1, %c0_2] : memref<8x32xf32, #tpu.memory_space<vmem>>, vector<8x32xf32>
    %c0_3 = arith.constant 0 : index
    %c0_4 = arith.constant 0 : index
    %4 = vector.load %arg8[%c0_3, %c0_4] : memref<32x480xf32, #tpu.memory_space<vmem>>, vector<32x480xf32>
    %cst = arith.constant dense<0.000000e+00> : vector<8x480xf32>
    %5 = tpu.matmul %3, %4, %cst {dimension_numbers = #tpu.dot_dimension_numbers<[1], [0], [0], [1], [0, 0, 1, 1], [], []>} : vector<8x32xf32>, vector<32x480xf32>, vector<8x480xf32> -> vector<8x480xf32>
    %c0_i32 = arith.constant 0 : i32
    %6 = vector.extract_strided_slice %5 {offsets = [0, 256], sizes = [8, 128], strides = [1, 1]} : vector<8x480xf32> to vector<8x128xf32>
    %7 = vector.extract_strided_slice %5 {offsets = [0, 384], sizes = [8, 96], strides = [1, 1]} : vector<8x480xf32> to vector<8x96xf32>
    %8 = vector.shape_cast %6 : vector<8x128xf32> to vector<1x8x128xf32>
    %c0_5 = arith.constant 0 : index
    %c0_6 = arith.constant 0 : index
    %c0_7 = arith.constant 0 : index
    %9 = vector.load %arg6[%c0_5, %c0_6, %c0_7] : memref<8x8x128xf32, #tpu.memory_space<vmem>>, vector<8x8x128xf32>
    %10 = vector.broadcast %8 : vector<1x8x128xf32> to vector<8x8x128xf32>
    %11 = arith.addf %10, %9 : vector<8x8x128xf32>
    %12 = math.tanh %11 : vector<8x8x128xf32>
    %13 = vector.shape_cast %12 : vector<8x8x128xf32> to vector<64x128xf32>
    %c0_8 = arith.constant 0 : index
    %c0_9 = arith.constant 0 : index
    %14 = vector.load %arg10[%c0_8, %c0_9] : memref<128x128xf32, #tpu.memory_space<vmem>>, vector<128x128xf32>
    %cst_10 = arith.constant dense<0.000000e+00> : vector<64x128xf32>
    %15 = tpu.matmul %13, %14, %cst_10 {dimension_numbers = #tpu.dot_dimension_numbers<[1], [0], [0], [1], [0, 0, 1, 1], [], []>} : vector<64x128xf32>, vector<128x128xf32>, vector<64x128xf32> -> vector<64x128xf32>
    %16 = vector.extract_strided_slice %15 {offsets = [0, 0], sizes = [64, 1], strides = [1, 1]} : vector<64x128xf32> to vector<64x1xf32>
    %17 = vector.shape_cast %16 : vector<64x1xf32> to vector<8x8x1xf32>
    %cst_11 = arith.constant dense<0xFF800000> : vector<8x1xf32>
    %18 = vector.multi_reduction <maximumf>, %17, %cst_11 [0] : vector<8x8x1xf32> to vector<8x1xf32>
    %19 = vector.shape_cast %18 : vector<8x1xf32> to vector<1x8x1xf32>
    %20 = vector.broadcast %19 : vector<1x8x1xf32> to vector<8x8x1xf32>
    %21 = arith.subf %17, %20 : vector<8x8x1xf32>
    %22 = math.exp %21 : vector<8x8x1xf32>
    %c0_12 = arith.constant 0 : index
    %c0_13 = arith.constant 0 : index
    %c0_14 = arith.constant 0 : index
    %23 = vector.load %arg7[%c0_12, %c0_13, %c0_14] : memref<8x8x1xf32, #tpu.memory_space<vmem>>, vector<8x8x1xf32>
    %24 = arith.mulf %22, %23 : vector<8x8x1xf32>
    %cst_15 = arith.constant dense<0.000000e+00> : vector<8x1xf32>
    %25 = vector.multi_reduction <add>, %24, %cst_15 [0] : vector<8x8x1xf32> to vector<8x1xf32>
    %c0_16 = arith.constant 0 : index
    %c0_17 = arith.constant 0 : index
    %c0_18 = arith.constant 0 : index
    %26 = vector.load %arg5[%c0_16, %c0_17, %c0_18] : memref<8x8x32xf32, #tpu.memory_space<vmem>>, vector<8x8x32xf32>
    %27 = vector.broadcast %24 : vector<8x8x1xf32> to vector<8x8x32xf32>
    %28 = arith.mulf %27, %26 : vector<8x8x32xf32>
    %cst_19 = arith.constant dense<0.000000e+00> : vector<8x32xf32>
    %29 = vector.multi_reduction <add>, %28, %cst_19 [0] : vector<8x8x32xf32> to vector<8x32xf32>
    %30 = tpu.reciprocal %25 {approx = true} : vector<8x1xf32> -> vector<8x1xf32>
    %31 = vector.broadcast %30 : vector<8x1xf32> to vector<8x32xf32>
    %32 = arith.mulf %29, %31 : vector<8x32xf32>
    %c0_20 = arith.constant 0 : index
    %c0_21 = arith.constant 0 : index
    %33 = vector.load %arg9[%c0_20, %c0_21] : memref<32x384xf32, #tpu.memory_space<vmem>>, vector<32x384xf32>
    %cst_22 = arith.constant dense<0.000000e+00> : vector<8x384xf32>
    %34 = tpu.matmul %32, %33, %cst_22 {dimension_numbers = #tpu.dot_dimension_numbers<[1], [0], [0], [1], [0, 0, 1, 1], [], []>} : vector<8x32xf32>, vector<32x384xf32>, vector<8x384xf32> -> vector<8x384xf32>
    %35 = vector.extract_strided_slice %34 {offsets = [0, 0], sizes = [8, 96], strides = [1, 1]} : vector<8x384xf32> to vector<8x96xf32>
    %36 = vector.extract_strided_slice %34 {offsets = [0, 128], sizes = [8, 256], strides = [1, 1]} : vector<8x384xf32> to vector<8x256xf32>
    %37 = arith.index_cast %c0_i32 : i32 to index
    %c0_23 = arith.constant 0 : index
    %c0_24 = arith.constant 0 : index
    %38 = vector.load %arg1[%37, %c0_23, %c0_24] : memref<6x8x96xf32, #tpu.memory_space<vmem>>, vector<1x8x96xf32>
    %39 = vector.shape_cast %38 : vector<1x8x96xf32> to vector<8x96xf32>
    %40 = vector.extract_strided_slice %39 {offsets = [0, 0], sizes = [8, 32], strides = [1, 1]} : vector<8x96xf32> to vector<8x32xf32>
    %41 = vector.extract_strided_slice %7 {offsets = [0, 0], sizes = [8, 32], strides = [1, 1]} : vector<8x96xf32> to vector<8x32xf32>
    %42 = arith.addf %40, %41 : vector<8x32xf32>
    %43 = vector.extract_strided_slice %35 {offsets = [0, 0], sizes = [8, 32], strides = [1, 1]} : vector<8x96xf32> to vector<8x32xf32>
    %44 = arith.addf %42, %43 : vector<8x32xf32>
    %45 = arith.negf %44 : vector<8x32xf32>
    %46 = math.exp %45 : vector<8x32xf32>
    %cst_25 = arith.constant 1.000000e+00 : f32
    %47 = vector.broadcast %cst_25 : f32 to vector<8x32xf32>
    %48 = arith.addf %47, %46 : vector<8x32xf32>
    %49 = arith.divf %47, %48 : vector<8x32xf32>
    %50 = vector.extract_strided_slice %39 {offsets = [0, 32], sizes = [8, 32], strides = [1, 1]} : vector<8x96xf32> to vector<8x32xf32>
    %51 = vector.extract_strided_slice %7 {offsets = [0, 32], sizes = [8, 32], strides = [1, 1]} : vector<8x96xf32> to vector<8x32xf32>
    %52 = arith.addf %50, %51 : vector<8x32xf32>
    %53 = vector.extract_strided_slice %35 {offsets = [0, 32], sizes = [8, 32], strides = [1, 1]} : vector<8x96xf32> to vector<8x32xf32>
    %54 = arith.addf %52, %53 : vector<8x32xf32>
    %55 = arith.negf %54 : vector<8x32xf32>
    %56 = math.exp %55 : vector<8x32xf32>
    %cst_26 = arith.constant 1.000000e+00 : f32
    %57 = vector.broadcast %cst_26 : f32 to vector<8x32xf32>
    %58 = arith.addf %57, %56 : vector<8x32xf32>
    %59 = arith.divf %57, %58 : vector<8x32xf32>
    %60 = vector.extract_strided_slice %39 {offsets = [0, 64], sizes = [8, 32], strides = [1, 1]} : vector<8x96xf32> to vector<8x32xf32>
    %61 = vector.extract_strided_slice %7 {offsets = [0, 64], sizes = [8, 32], strides = [1, 1]} : vector<8x96xf32> to vector<8x32xf32>
    %62 = arith.addf %61, %2 : vector<8x32xf32>
    %63 = arith.mulf %59, %62 : vector<8x32xf32>
    %64 = arith.addf %60, %63 : vector<8x32xf32>
    %65 = vector.extract_strided_slice %35 {offsets = [0, 64], sizes = [8, 32], strides = [1, 1]} : vector<8x96xf32> to vector<8x32xf32>
    %66 = arith.addf %64, %65 : vector<8x32xf32>
    %67 = math.tanh %66 : vector<8x32xf32>
    %68 = arith.index_cast %c0_i32 : i32 to index
    %c0_27 = arith.constant 0 : index
    %c0_28 = arith.constant 0 : index
    %69 = vector.load %arg3[%68, %c0_27, %c0_28] : memref<6x8x1xf32, #tpu.memory_space<vmem>>, vector<1x8x1xf32>
    %70 = vector.shape_cast %69 : vector<1x8x1xf32> to vector<8x1xf32>
    %cst_29 = arith.constant 1.000000e+00 : f32
    %71 = vector.broadcast %cst_29 : f32 to vector<8x32xf32>
    %72 = arith.subf %71, %49 : vector<8x32xf32>
    %73 = arith.mulf %72, %3 : vector<8x32xf32>
    %74 = arith.mulf %49, %67 : vector<8x32xf32>
    %75 = arith.addf %73, %74 : vector<8x32xf32>
    %76 = vector.broadcast %70 : vector<8x1xf32> to vector<8x32xf32>
    %77 = arith.mulf %76, %75 : vector<8x32xf32>
    %cst_30 = arith.constant 1.000000e+00 : f32
    %78 = vector.broadcast %cst_30 : f32 to vector<8x1xf32>
    %79 = arith.subf %78, %70 : vector<8x1xf32>
    %80 = vector.broadcast %79 : vector<8x1xf32> to vector<8x32xf32>
    %81 = arith.mulf %80, %3 : vector<8x32xf32>
    %82 = arith.addf %77, %81 : vector<8x32xf32>
    %c0_31 = arith.constant 0 : index
    %c0_32 = arith.constant 0 : index
    %83 = vector.load %arg8[%c0_31, %c0_32] : memref<32x480xf32, #tpu.memory_space<vmem>>, vector<32x480xf32>
    %cst_33 = arith.constant dense<0.000000e+00> : vector<8x480xf32>
    %84 = tpu.matmul %82, %83, %cst_33 {dimension_numbers = #tpu.dot_dimension_numbers<[1], [0], [0], [1], [0, 0, 1, 1], [], []>} : vector<8x32xf32>, vector<32x480xf32>, vector<8x480xf32> -> vector<8x480xf32>
    %85 = vector.extract_strided_slice %84 {offsets = [0, 0], sizes = [8, 256], strides = [1, 1]} : vector<8x480xf32> to vector<8x256xf32>
    %86 = arith.addf %85, %36 : vector<8x256xf32>
    %87 = arith.index_cast %c0_i32 : i32 to index
    %c0_34 = arith.constant 0 : index
    %c0_35 = arith.constant 0 : index
    %88 = vector.load %arg2[%87, %c0_34, %c0_35] : memref<6x8x256xf32, #tpu.memory_space<vmem>>, vector<1x8x256xf32>
    %89 = vector.shape_cast %88 : vector<1x8x256xf32> to vector<8x256xf32>
    %90 = arith.addf %86, %89 : vector<8x256xf32>
    %91 = vector.extract_strided_slice %90 {offsets = [0, 0], sizes = [8, 128], strides = [1, 1]} : vector<8x256xf32> to vector<8x128xf32>
    %92 = vector.extract_strided_slice %90 {offsets = [0, 128], sizes = [8, 128], strides = [1, 1]} : vector<8x256xf32> to vector<8x128xf32>
    %93 = arith.maximumf %91, %92 : vector<8x128xf32>
    %94 = vector.broadcast %70 : vector<8x1xf32> to vector<8x128xf32>
    %95 = arith.mulf %93, %94 : vector<8x128xf32>
    %96 = arith.index_cast %c0_i32 : i32 to index
    %c0_36 = arith.constant 0 : index
    %c0_37 = arith.constant 0 : index
    %97 = vector.load %arg12[%96, %c0_36, %c0_37] : memref<6x8x128xf32, #tpu.memory_space<vmem>>, vector<1x8x128xf32>
    %98 = vector.shape_cast %97 : vector<1x8x128xf32> to vector<8x128xf32>
    %99 = vector.shape_cast %95 : vector<8x128xf32> to vector<1x8x128xf32>
    tpu.vector_store %arg12[%96, %c0_36, %c0_37], %99 {strides = array<i32>} : memref<6x8x128xf32, #tpu.memory_space<vmem>>, vector<1x8x128xf32>,
    %c1_i32 = arith.constant 1 : i32
    %100 = vector.extract_strided_slice %84 {offsets = [0, 256], sizes = [8, 128], strides = [1, 1]} : vector<8x480xf32> to vector<8x128xf32>
    %101 = vector.extract_strided_slice %84 {offsets = [0, 384], sizes = [8, 96], strides = [1, 1]} : vector<8x480xf32> to vector<8x96xf32>
    %102 = vector.shape_cast %100 : vector<8x128xf32> to vector<1x8x128xf32>
    %c0_38 = arith.constant 0 : index
    %c0_39 = arith.constant 0 : index
    %c0_40 = arith.constant 0 : index
    %103 = vector.load %arg6[%c0_38, %c0_39, %c0_40] : memref<8x8x128xf32, #tpu.memory_space<vmem>>, vector<8x8x128xf32>
    %104 = vector.broadcast %102 : vector<1x8x128xf32> to vector<8x8x128xf32>
    %105 = arith.addf %104, %103 : vector<8x8x128xf32>
    %106 = math.tanh %105 : vector<8x8x128xf32>
    %107 = vector.shape_cast %106 : vector<8x8x128xf32> to vector<64x128xf32>
    %c0_41 = arith.constant 0 : index
    %c0_42 = arith.constant 0 : index
    %108 = vector.load %arg10[%c0_41, %c0_42] : memref<128x128xf32, #tpu.memory_space<vmem>>, vector<128x128xf32>
    %cst_43 = arith.constant dense<0.000000e+00> : vector<64x128xf32>
    %109 = tpu.matmul %107, %108, %cst_43 {dimension_numbers = #tpu.dot_dimension_numbers<[1], [0], [0], [1], [0, 0, 1, 1], [], []>} : vector<64x128xf32>, vector<128x128xf32>, vector<64x128xf32> -> vector<64x128xf32>
    %110 = vector.extract_strided_slice %109 {offsets = [0, 0], sizes = [64, 1], strides = [1, 1]} : vector<64x128xf32> to vector<64x1xf32>
    %111 = vector.shape_cast %110 : vector<64x1xf32> to vector<8x8x1xf32>
    %cst_44 = arith.constant dense<0xFF800000> : vector<8x1xf32>
    %112 = vector.multi_reduction <maximumf>, %111, %cst_44 [0] : vector<8x8x1xf32> to vector<8x1xf32>
    %113 = vector.shape_cast %112 : vector<8x1xf32> to vector<1x8x1xf32>
    %114 = vector.broadcast %113 : vector<1x8x1xf32> to vector<8x8x1xf32>
    %115 = arith.subf %111, %114 : vector<8x8x1xf32>
    %116 = math.exp %115 : vector<8x8x1xf32>
    %c0_45 = arith.constant 0 : index
    %c0_46 = arith.constant 0 : index
    %c0_47 = arith.constant 0 : index
    %117 = vector.load %arg7[%c0_45, %c0_46, %c0_47] : memref<8x8x1xf32, #tpu.memory_space<vmem>>, vector<8x8x1xf32>
    %118 = arith.mulf %116, %117 : vector<8x8x1xf32>
    %cst_48 = arith.constant dense<0.000000e+00> : vector<8x1xf32>
    %119 = vector.multi_reduction <add>, %118, %cst_48 [0] : vector<8x8x1xf32> to vector<8x1xf32>
    %c0_49 = arith.constant 0 : index
    %c0_50 = arith.constant 0 : index
    %c0_51 = arith.constant 0 : index
    %120 = vector.load %arg5[%c0_49, %c0_50, %c0_51] : memref<8x8x32xf32, #tpu.memory_space<vmem>>, vector<8x8x32xf32>
    %121 = vector.broadcast %118 : vector<8x8x1xf32> to vector<8x8x32xf32>
    %122 = arith.mulf %121, %120 : vector<8x8x32xf32>
    %cst_52 = arith.constant dense<0.000000e+00> : vector<8x32xf32>
    %123 = vector.multi_reduction <add>, %122, %cst_52 [0] : vector<8x8x32xf32> to vector<8x32xf32>
    %124 = tpu.reciprocal %119 {approx = true} : vector<8x1xf32> -> vector<8x1xf32>
    %125 = vector.broadcast %124 : vector<8x1xf32> to vector<8x32xf32>
    %126 = arith.mulf %123, %125 : vector<8x32xf32>
    %c0_53 = arith.constant 0 : index
    %c0_54 = arith.constant 0 : index
    %127 = vector.load %arg9[%c0_53, %c0_54] : memref<32x384xf32, #tpu.memory_space<vmem>>, vector<32x384xf32>
    %cst_55 = arith.constant dense<0.000000e+00> : vector<8x384xf32>
    %128 = tpu.matmul %126, %127, %cst_55 {dimension_numbers = #tpu.dot_dimension_numbers<[1], [0], [0], [1], [0, 0, 1, 1], [], []>} : vector<8x32xf32>, vector<32x384xf32>, vector<8x384xf32> -> vector<8x384xf32>
    %129 = vector.extract_strided_slice %128 {offsets = [0, 0], sizes = [8, 96], strides = [1, 1]} : vector<8x384xf32> to vector<8x96xf32>
    %130 = vector.extract_strided_slice %128 {offsets = [0, 128], sizes = [8, 256], strides = [1, 1]} : vector<8x384xf32> to vector<8x256xf32>
    %131 = arith.index_cast %c1_i32 : i32 to index
    %c0_56 = arith.constant 0 : index
    %c0_57 = arith.constant 0 : index
    %132 = vector.load %arg1[%131, %c0_56, %c0_57] : memref<6x8x96xf32, #tpu.memory_space<vmem>>, vector<1x8x96xf32>
    %133 = vector.shape_cast %132 : vector<1x8x96xf32> to vector<8x96xf32>
    %134 = vector.extract_strided_slice %133 {offsets = [0, 0], sizes = [8, 32], strides = [1, 1]} : vector<8x96xf32> to vector<8x32xf32>
    %135 = vector.extract_strided_slice %101 {offsets = [0, 0], sizes = [8, 32], strides = [1, 1]} : vector<8x96xf32> to vector<8x32xf32>
    %136 = arith.addf %134, %135 : vector<8x32xf32>
    %137 = vector.extract_strided_slice %129 {offsets = [0, 0], sizes = [8, 32], strides = [1, 1]} : vector<8x96xf32> to vector<8x32xf32>
    %138 = arith.addf %136, %137 : vector<8x32xf32>
    %139 = arith.negf %138 : vector<8x32xf32>
    %140 = math.exp %139 : vector<8x32xf32>
    %cst_58 = arith.constant 1.000000e+00 : f32
    %141 = vector.broadcast %cst_58 : f32 to vector<8x32xf32>
    %142 = arith.addf %141, %140 : vector<8x32xf32>
    %143 = arith.divf %141, %142 : vector<8x32xf32>
    %144 = vector.extract_strided_slice %133 {offsets = [0, 32], sizes = [8, 32], strides = [1, 1]} : vector<8x96xf32> to vector<8x32xf32>
    %145 = vector.extract_strided_slice %101 {offsets = [0, 32], sizes = [8, 32], strides = [1, 1]} : vector<8x96xf32> to vector<8x32xf32>
    %146 = arith.addf %144, %145 : vector<8x32xf32>
    %147 = vector.extract_strided_slice %129 {offsets = [0, 32], sizes = [8, 32], strides = [1, 1]} : vector<8x96xf32> to vector<8x32xf32>
    %148 = arith.addf %146, %147 : vector<8x32xf32>
    %149 = arith.negf %148 : vector<8x32xf32>
    %150 = math.exp %149 : vector<8x32xf32>
    %cst_59 = arith.constant 1.000000e+00 : f32
    %151 = vector.broadcast %cst_59 : f32 to vector<8x32xf32>
    %152 = arith.addf %151, %150 : vector<8x32xf32>
    %153 = arith.divf %151, %152 : vector<8x32xf32>
    %154 = vector.extract_strided_slice %133 {offsets = [0, 64], sizes = [8, 32], strides = [1, 1]} : vector<8x96xf32> to vector<8x32xf32>
    %155 = vector.extract_strided_slice %101 {offsets = [0, 64], sizes = [8, 32], strides = [1, 1]} : vector<8x96xf32> to vector<8x32xf32>
    %156 = arith.addf %155, %2 : vector<8x32xf32>
    %157 = arith.mulf %153, %156 : vector<8x32xf32>
    %158 = arith.addf %154, %157 : vector<8x32xf32>
    %159 = vector.extract_strided_slice %129 {offsets = [0, 64], sizes = [8, 32], strides = [1, 1]} : vector<8x96xf32> to vector<8x32xf32>
    %160 = arith.addf %158, %159 : vector<8x32xf32>
    %161 = math.tanh %160 : vector<8x32xf32>
    %162 = arith.index_cast %c1_i32 : i32 to index
    %c0_60 = arith.constant 0 : index
    %c0_61 = arith.constant 0 : index
    %163 = vector.load %arg3[%162, %c0_60, %c0_61] : memref<6x8x1xf32, #tpu.memory_space<vmem>>, vector<1x8x1xf32>
    %164 = vector.shape_cast %163 : vector<1x8x1xf32> to vector<8x1xf32>
    %cst_62 = arith.constant 1.000000e+00 : f32
    %165 = vector.broadcast %cst_62 : f32 to vector<8x32xf32>
    %166 = arith.subf %165, %143 : vector<8x32xf32>
    %167 = arith.mulf %166, %82 : vector<8x32xf32>
    %168 = arith.mulf %143, %161 : vector<8x32xf32>
    %169 = arith.addf %167, %168 : vector<8x32xf32>
    %170 = vector.broadcast %164 : vector<8x1xf32> to vector<8x32xf32>
    %171 = arith.mulf %170, %169 : vector<8x32xf32>
    %cst_63 = arith.constant 1.000000e+00 : f32
    %172 = vector.broadcast %cst_63 : f32 to vector<8x1xf32>
    %173 = arith.subf %172, %164 : vector<8x1xf32>
    %174 = vector.broadcast %173 : vector<8x1xf32> to vector<8x32xf32>
    %175 = arith.mulf %174, %82 : vector<8x32xf32>
    %176 = arith.addf %171, %175 : vector<8x32xf32>
    %c0_64 = arith.constant 0 : index
    %c0_65 = arith.constant 0 : index
    %177 = vector.load %arg8[%c0_64, %c0_65] : memref<32x480xf32, #tpu.memory_space<vmem>>, vector<32x480xf32>
    %cst_66 = arith.constant dense<0.000000e+00> : vector<8x480xf32>
    %178 = tpu.matmul %176, %177, %cst_66 {dimension_numbers = #tpu.dot_dimension_numbers<[1], [0], [0], [1], [0, 0, 1, 1], [], []>} : vector<8x32xf32>, vector<32x480xf32>, vector<8x480xf32> -> vector<8x480xf32>
    %179 = vector.extract_strided_slice %178 {offsets = [0, 0], sizes = [8, 256], strides = [1, 1]} : vector<8x480xf32> to vector<8x256xf32>
    %180 = arith.addf %179, %130 : vector<8x256xf32>
    %181 = arith.index_cast %c1_i32 : i32 to index
    %c0_67 = arith.constant 0 : index
    %c0_68 = arith.constant 0 : index
    %182 = vector.load %arg2[%181, %c0_67, %c0_68] : memref<6x8x256xf32, #tpu.memory_space<vmem>>, vector<1x8x256xf32>
    %183 = vector.shape_cast %182 : vector<1x8x256xf32> to vector<8x256xf32>
    %184 = arith.addf %180, %183 : vector<8x256xf32>
    %185 = vector.extract_strided_slice %184 {offsets = [0, 0], sizes = [8, 128], strides = [1, 1]} : vector<8x256xf32> to vector<8x128xf32>
    %186 = vector.extract_strided_slice %184 {offsets = [0, 128], sizes = [8, 128], strides = [1, 1]} : vector<8x256xf32> to vector<8x128xf32>
    %187 = arith.maximumf %185, %186 : vector<8x128xf32>
    %188 = vector.broadcast %164 : vector<8x1xf32> to vector<8x128xf32>
    %189 = arith.mulf %187, %188 : vector<8x128xf32>
    %190 = arith.index_cast %c1_i32 : i32 to index
    %c0_69 = arith.constant 0 : index
    %c0_70 = arith.constant 0 : index
    %191 = vector.load %arg12[%190, %c0_69, %c0_70] : memref<6x8x128xf32, #tpu.memory_space<vmem>>, vector<1x8x128xf32>
    %192 = vector.shape_cast %191 : vector<1x8x128xf32> to vector<8x128xf32>
    %193 = vector.shape_cast %189 : vector<8x128xf32> to vector<1x8x128xf32>
    tpu.vector_store %arg12[%190, %c0_69, %c0_70], %193 {strides = array<i32>} : memref<6x8x128xf32, #tpu.memory_space<vmem>>, vector<1x8x128xf32>,
    %c2_i32 = arith.constant 2 : i32
    %194 = vector.extract_strided_slice %178 {offsets = [0, 256], sizes = [8, 128], strides = [1, 1]} : vector<8x480xf32> to vector<8x128xf32>
    %195 = vector.extract_strided_slice %178 {offsets = [0, 384], sizes = [8, 96], strides = [1, 1]} : vector<8x480xf32> to vector<8x96xf32>
    %196 = vector.shape_cast %194 : vector<8x128xf32> to vector<1x8x128xf32>
    %c0_71 = arith.constant 0 : index
    %c0_72 = arith.constant 0 : index
    %c0_73 = arith.constant 0 : index
    %197 = vector.load %arg6[%c0_71, %c0_72, %c0_73] : memref<8x8x128xf32, #tpu.memory_space<vmem>>, vector<8x8x128xf32>
    %198 = vector.broadcast %196 : vector<1x8x128xf32> to vector<8x8x128xf32>
    %199 = arith.addf %198, %197 : vector<8x8x128xf32>
    %200 = math.tanh %199 : vector<8x8x128xf32>
    %201 = vector.shape_cast %200 : vector<8x8x128xf32> to vector<64x128xf32>
    %c0_74 = arith.constant 0 : index
    %c0_75 = arith.constant 0 : index
    %202 = vector.load %arg10[%c0_74, %c0_75] : memref<128x128xf32, #tpu.memory_space<vmem>>, vector<128x128xf32>
    %cst_76 = arith.constant dense<0.000000e+00> : vector<64x128xf32>
    %203 = tpu.matmul %201, %202, %cst_76 {dimension_numbers = #tpu.dot_dimension_numbers<[1], [0], [0], [1], [0, 0, 1, 1], [], []>} : vector<64x128xf32>, vector<128x128xf32>, vector<64x128xf32> -> vector<64x128xf32>
    %204 = vector.extract_strided_slice %203 {offsets = [0, 0], sizes = [64, 1], strides = [1, 1]} : vector<64x128xf32> to vector<64x1xf32>
    %205 = vector.shape_cast %204 : vector<64x1xf32> to vector<8x8x1xf32>
    %cst_77 = arith.constant dense<0xFF800000> : vector<8x1xf32>
    %206 = vector.multi_reduction <maximumf>, %205, %cst_77 [0] : vector<8x8x1xf32> to vector<8x1xf32>
    %207 = vector.shape_cast %206 : vector<8x1xf32> to vector<1x8x1xf32>
    %208 = vector.broadcast %207 : vector<1x8x1xf32> to vector<8x8x1xf32>
    %209 = arith.subf %205, %208 : vector<8x8x1xf32>
    %210 = math.exp %209 : vector<8x8x1xf32>
    %c0_78 = arith.constant 0 : index
    %c0_79 = arith.constant 0 : index
    %c0_80 = arith.constant 0 : index
    %211 = vector.load %arg7[%c0_78, %c0_79, %c0_80] : memref<8x8x1xf32, #tpu.memory_space<vmem>>, vector<8x8x1xf32>
    %212 = arith.mulf %210, %211 : vector<8x8x1xf32>
    %cst_81 = arith.constant dense<0.000000e+00> : vector<8x1xf32>
    %213 = vector.multi_reduction <add>, %212, %cst_81 [0] : vector<8x8x1xf32> to vector<8x1xf32>
    %c0_82 = arith.constant 0 : index
    %c0_83 = arith.constant 0 : index
    %c0_84 = arith.constant 0 : index
    %214 = vector.load %arg5[%c0_82, %c0_83, %c0_84] : memref<8x8x32xf32, #tpu.memory_space<vmem>>, vector<8x8x32xf32>
    %215 = vector.broadcast %212 : vector<8x8x1xf32> to vector<8x8x32xf32>
    %216 = arith.mulf %215, %214 : vector<8x8x32xf32>
    %cst_85 = arith.constant dense<0.000000e+00> : vector<8x32xf32>
    %217 = vector.multi_reduction <add>, %216, %cst_85 [0] : vector<8x8x32xf32> to vector<8x32xf32>
    %218 = tpu.reciprocal %213 {approx = true} : vector<8x1xf32> -> vector<8x1xf32>
    %219 = vector.broadcast %218 : vector<8x1xf32> to vector<8x32xf32>
    %220 = arith.mulf %217, %219 : vector<8x32xf32>
    %c0_86 = arith.constant 0 : index
    %c0_87 = arith.constant 0 : index
    %221 = vector.load %arg9[%c0_86, %c0_87] : memref<32x384xf32, #tpu.memory_space<vmem>>, vector<32x384xf32>
    %cst_88 = arith.constant dense<0.000000e+00> : vector<8x384xf32>
    %222 = tpu.matmul %220, %221, %cst_88 {dimension_numbers = #tpu.dot_dimension_numbers<[1], [0], [0], [1], [0, 0, 1, 1], [], []>} : vector<8x32xf32>, vector<32x384xf32>, vector<8x384xf32> -> vector<8x384xf32>
    %223 = vector.extract_strided_slice %222 {offsets = [0, 0], sizes = [8, 96], strides = [1, 1]} : vector<8x384xf32> to vector<8x96xf32>
    %224 = vector.extract_strided_slice %222 {offsets = [0, 128], sizes = [8, 256], strides = [1, 1]} : vector<8x384xf32> to vector<8x256xf32>
    %225 = arith.index_cast %c2_i32 : i32 to index
    %c0_89 = arith.constant 0 : index
    %c0_90 = arith.constant 0 : index
    %226 = vector.load %arg1[%225, %c0_89, %c0_90] : memref<6x8x96xf32, #tpu.memory_space<vmem>>, vector<1x8x96xf32>
    %227 = vector.shape_cast %226 : vector<1x8x96xf32> to vector<8x96xf32>
    %228 = vector.extract_strided_slice %227 {offsets = [0, 0], sizes = [8, 32], strides = [1, 1]} : vector<8x96xf32> to vector<8x32xf32>
    %229 = vector.extract_strided_slice %195 {offsets = [0, 0], sizes = [8, 32], strides = [1, 1]} : vector<8x96xf32> to vector<8x32xf32>
    %230 = arith.addf %228, %229 : vector<8x32xf32>
    %231 = vector.extract_strided_slice %223 {offsets = [0, 0], sizes = [8, 32], strides = [1, 1]} : vector<8x96xf32> to vector<8x32xf32>
    %232 = arith.addf %230, %231 : vector<8x32xf32>
    %233 = arith.negf %232 : vector<8x32xf32>
    %234 = math.exp %233 : vector<8x32xf32>
    %cst_91 = arith.constant 1.000000e+00 : f32
    %235 = vector.broadcast %cst_91 : f32 to vector<8x32xf32>
    %236 = arith.addf %235, %234 : vector<8x32xf32>
    %237 = arith.divf %235, %236 : vector<8x32xf32>
    %238 = vector.extract_strided_slice %227 {offsets = [0, 32], sizes = [8, 32], strides = [1, 1]} : vector<8x96xf32> to vector<8x32xf32>
    %239 = vector.extract_strided_slice %195 {offsets = [0, 32], sizes = [8, 32], strides = [1, 1]} : vector<8x96xf32> to vector<8x32xf32>
    %240 = arith.addf %238, %239 : vector<8x32xf32>
    %241 = vector.extract_strided_slice %223 {offsets = [0, 32], sizes = [8, 32], strides = [1, 1]} : vector<8x96xf32> to vector<8x32xf32>
    %242 = arith.addf %240, %241 : vector<8x32xf32>
    %243 = arith.negf %242 : vector<8x32xf32>
    %244 = math.exp %243 : vector<8x32xf32>
    %cst_92 = arith.constant 1.000000e+00 : f32
    %245 = vector.broadcast %cst_92 : f32 to vector<8x32xf32>
    %246 = arith.addf %245, %244 : vector<8x32xf32>
    %247 = arith.divf %245, %246 : vector<8x32xf32>
    %248 = vector.extract_strided_slice %227 {offsets = [0, 64], sizes = [8, 32], strides = [1, 1]} : vector<8x96xf32> to vector<8x32xf32>
    %249 = vector.extract_strided_slice %195 {offsets = [0, 64], sizes = [8, 32], strides = [1, 1]} : vector<8x96xf32> to vector<8x32xf32>
    %250 = arith.addf %249, %2 : vector<8x32xf32>
    %251 = arith.mulf %247, %250 : vector<8x32xf32>
    %252 = arith.addf %248, %251 : vector<8x32xf32>
    %253 = vector.extract_strided_slice %223 {offsets = [0, 64], sizes = [8, 32], strides = [1, 1]} : vector<8x96xf32> to vector<8x32xf32>
    %254 = arith.addf %252, %253 : vector<8x32xf32>
    %255 = math.tanh %254 : vector<8x32xf32>
    %256 = arith.index_cast %c2_i32 : i32 to index
    %c0_93 = arith.constant 0 : index
    %c0_94 = arith.constant 0 : index
    %257 = vector.load %arg3[%256, %c0_93, %c0_94] : memref<6x8x1xf32, #tpu.memory_space<vmem>>, vector<1x8x1xf32>
    %258 = vector.shape_cast %257 : vector<1x8x1xf32> to vector<8x1xf32>
    %cst_95 = arith.constant 1.000000e+00 : f32
    %259 = vector.broadcast %cst_95 : f32 to vector<8x32xf32>
    %260 = arith.subf %259, %237 : vector<8x32xf32>
    %261 = arith.mulf %260, %176 : vector<8x32xf32>
    %262 = arith.mulf %237, %255 : vector<8x32xf32>
    %263 = arith.addf %261, %262 : vector<8x32xf32>
    %264 = vector.broadcast %258 : vector<8x1xf32> to vector<8x32xf32>
    %265 = arith.mulf %264, %263 : vector<8x32xf32>
    %cst_96 = arith.constant 1.000000e+00 : f32
    %266 = vector.broadcast %cst_96 : f32 to vector<8x1xf32>
    %267 = arith.subf %266, %258 : vector<8x1xf32>
    %268 = vector.broadcast %267 : vector<8x1xf32> to vector<8x32xf32>
    %269 = arith.mulf %268, %176 : vector<8x32xf32>
    %270 = arith.addf %265, %269 : vector<8x32xf32>
    %c0_97 = arith.constant 0 : index
    %c0_98 = arith.constant 0 : index
    %271 = vector.load %arg8[%c0_97, %c0_98] : memref<32x480xf32, #tpu.memory_space<vmem>>, vector<32x480xf32>
    %cst_99 = arith.constant dense<0.000000e+00> : vector<8x480xf32>
    %272 = tpu.matmul %270, %271, %cst_99 {dimension_numbers = #tpu.dot_dimension_numbers<[1], [0], [0], [1], [0, 0, 1, 1], [], []>} : vector<8x32xf32>, vector<32x480xf32>, vector<8x480xf32> -> vector<8x480xf32>
    %273 = vector.extract_strided_slice %272 {offsets = [0, 0], sizes = [8, 256], strides = [1, 1]} : vector<8x480xf32> to vector<8x256xf32>
    %274 = arith.addf %273, %224 : vector<8x256xf32>
    %275 = arith.index_cast %c2_i32 : i32 to index
    %c0_100 = arith.constant 0 : index
    %c0_101 = arith.constant 0 : index
    %276 = vector.load %arg2[%275, %c0_100, %c0_101] : memref<6x8x256xf32, #tpu.memory_space<vmem>>, vector<1x8x256xf32>
    %277 = vector.shape_cast %276 : vector<1x8x256xf32> to vector<8x256xf32>
    %278 = arith.addf %274, %277 : vector<8x256xf32>
    %279 = vector.extract_strided_slice %278 {offsets = [0, 0], sizes = [8, 128], strides = [1, 1]} : vector<8x256xf32> to vector<8x128xf32>
    %280 = vector.extract_strided_slice %278 {offsets = [0, 128], sizes = [8, 128], strides = [1, 1]} : vector<8x256xf32> to vector<8x128xf32>
    %281 = arith.maximumf %279, %280 : vector<8x128xf32>
    %282 = vector.broadcast %258 : vector<8x1xf32> to vector<8x128xf32>
    %283 = arith.mulf %281, %282 : vector<8x128xf32>
    %284 = arith.index_cast %c2_i32 : i32 to index
    %c0_102 = arith.constant 0 : index
    %c0_103 = arith.constant 0 : index
    %285 = vector.load %arg12[%284, %c0_102, %c0_103] : memref<6x8x128xf32, #tpu.memory_space<vmem>>, vector<1x8x128xf32>
    %286 = vector.shape_cast %285 : vector<1x8x128xf32> to vector<8x128xf32>
    %287 = vector.shape_cast %283 : vector<8x128xf32> to vector<1x8x128xf32>
    tpu.vector_store %arg12[%284, %c0_102, %c0_103], %287 {strides = array<i32>} : memref<6x8x128xf32, #tpu.memory_space<vmem>>, vector<1x8x128xf32>,
    %c3_i32 = arith.constant 3 : i32
    %288 = vector.extract_strided_slice %272 {offsets = [0, 256], sizes = [8, 128], strides = [1, 1]} : vector<8x480xf32> to vector<8x128xf32>
    %289 = vector.extract_strided_slice %272 {offsets = [0, 384], sizes = [8, 96], strides = [1, 1]} : vector<8x480xf32> to vector<8x96xf32>
    %290 = vector.shape_cast %288 : vector<8x128xf32> to vector<1x8x128xf32>
    %c0_104 = arith.constant 0 : index
    %c0_105 = arith.constant 0 : index
    %c0_106 = arith.constant 0 : index
    %291 = vector.load %arg6[%c0_104, %c0_105, %c0_106] : memref<8x8x128xf32, #tpu.memory_space<vmem>>, vector<8x8x128xf32>
    %292 = vector.broadcast %290 : vector<1x8x128xf32> to vector<8x8x128xf32>
    %293 = arith.addf %292, %291 : vector<8x8x128xf32>
    %294 = math.tanh %293 : vector<8x8x128xf32>
    %295 = vector.shape_cast %294 : vector<8x8x128xf32> to vector<64x128xf32>
    %c0_107 = arith.constant 0 : index
    %c0_108 = arith.constant 0 : index
    %296 = vector.load %arg10[%c0_107, %c0_108] : memref<128x128xf32, #tpu.memory_space<vmem>>, vector<128x128xf32>
    %cst_109 = arith.constant dense<0.000000e+00> : vector<64x128xf32>
    %297 = tpu.matmul %295, %296, %cst_109 {dimension_numbers = #tpu.dot_dimension_numbers<[1], [0], [0], [1], [0, 0, 1, 1], [], []>} : vector<64x128xf32>, vector<128x128xf32>, vector<64x128xf32> -> vector<64x128xf32>
    %298 = vector.extract_strided_slice %297 {offsets = [0, 0], sizes = [64, 1], strides = [1, 1]} : vector<64x128xf32> to vector<64x1xf32>
    %299 = vector.shape_cast %298 : vector<64x1xf32> to vector<8x8x1xf32>
    %cst_110 = arith.constant dense<0xFF800000> : vector<8x1xf32>
    %300 = vector.multi_reduction <maximumf>, %299, %cst_110 [0] : vector<8x8x1xf32> to vector<8x1xf32>
    %301 = vector.shape_cast %300 : vector<8x1xf32> to vector<1x8x1xf32>
    %302 = vector.broadcast %301 : vector<1x8x1xf32> to vector<8x8x1xf32>
    %303 = arith.subf %299, %302 : vector<8x8x1xf32>
    %304 = math.exp %303 : vector<8x8x1xf32>
    %c0_111 = arith.constant 0 : index
    %c0_112 = arith.constant 0 : index
    %c0_113 = arith.constant 0 : index
    %305 = vector.load %arg7[%c0_111, %c0_112, %c0_113] : memref<8x8x1xf32, #tpu.memory_space<vmem>>, vector<8x8x1xf32>
    %306 = arith.mulf %304, %305 : vector<8x8x1xf32>
    %cst_114 = arith.constant dense<0.000000e+00> : vector<8x1xf32>
    %307 = vector.multi_reduction <add>, %306, %cst_114 [0] : vector<8x8x1xf32> to vector<8x1xf32>
    %c0_115 = arith.constant 0 : index
    %c0_116 = arith.constant 0 : index
    %c0_117 = arith.constant 0 : index
    %308 = vector.load %arg5[%c0_115, %c0_116, %c0_117] : memref<8x8x32xf32, #tpu.memory_space<vmem>>, vector<8x8x32xf32>
    %309 = vector.broadcast %306 : vector<8x8x1xf32> to vector<8x8x32xf32>
    %310 = arith.mulf %309, %308 : vector<8x8x32xf32>
    %cst_118 = arith.constant dense<0.000000e+00> : vector<8x32xf32>
    %311 = vector.multi_reduction <add>, %310, %cst_118 [0] : vector<8x8x32xf32> to vector<8x32xf32>
    %312 = tpu.reciprocal %307 {approx = true} : vector<8x1xf32> -> vector<8x1xf32>
    %313 = vector.broadcast %312 : vector<8x1xf32> to vector<8x32xf32>
    %314 = arith.mulf %311, %313 : vector<8x32xf32>
    %c0_119 = arith.constant 0 : index
    %c0_120 = arith.constant 0 : index
    %315 = vector.load %arg9[%c0_119, %c0_120] : memref<32x384xf32, #tpu.memory_space<vmem>>, vector<32x384xf32>
    %cst_121 = arith.constant dense<0.000000e+00> : vector<8x384xf32>
    %316 = tpu.matmul %314, %315, %cst_121 {dimension_numbers = #tpu.dot_dimension_numbers<[1], [0], [0], [1], [0, 0, 1, 1], [], []>} : vector<8x32xf32>, vector<32x384xf32>, vector<8x384xf32> -> vector<8x384xf32>
    %317 = vector.extract_strided_slice %316 {offsets = [0, 0], sizes = [8, 96], strides = [1, 1]} : vector<8x384xf32> to vector<8x96xf32>
    %318 = vector.extract_strided_slice %316 {offsets = [0, 128], sizes = [8, 256], strides = [1, 1]} : vector<8x384xf32> to vector<8x256xf32>
    %319 = arith.index_cast %c3_i32 : i32 to index
    %c0_122 = arith.constant 0 : index
    %c0_123 = arith.constant 0 : index
    %320 = vector.load %arg1[%319, %c0_122, %c0_123] : memref<6x8x96xf32, #tpu.memory_space<vmem>>, vector<1x8x96xf32>
    %321 = vector.shape_cast %320 : vector<1x8x96xf32> to vector<8x96xf32>
    %322 = vector.extract_strided_slice %321 {offsets = [0, 0], sizes = [8, 32], strides = [1, 1]} : vector<8x96xf32> to vector<8x32xf32>
    %323 = vector.extract_strided_slice %289 {offsets = [0, 0], sizes = [8, 32], strides = [1, 1]} : vector<8x96xf32> to vector<8x32xf32>
    %324 = arith.addf %322, %323 : vector<8x32xf32>
    %325 = vector.extract_strided_slice %317 {offsets = [0, 0], sizes = [8, 32], strides = [1, 1]} : vector<8x96xf32> to vector<8x32xf32>
    %326 = arith.addf %324, %325 : vector<8x32xf32>
    %327 = arith.negf %326 : vector<8x32xf32>
    %328 = math.exp %327 : vector<8x32xf32>
    %cst_124 = arith.constant 1.000000e+00 : f32
    %329 = vector.broadcast %cst_124 : f32 to vector<8x32xf32>
    %330 = arith.addf %329, %328 : vector<8x32xf32>
    %331 = arith.divf %329, %330 : vector<8x32xf32>
    %332 = vector.extract_strided_slice %321 {offsets = [0, 32], sizes = [8, 32], strides = [1, 1]} : vector<8x96xf32> to vector<8x32xf32>
    %333 = vector.extract_strided_slice %289 {offsets = [0, 32], sizes = [8, 32], strides = [1, 1]} : vector<8x96xf32> to vector<8x32xf32>
    %334 = arith.addf %332, %333 : vector<8x32xf32>
    %335 = vector.extract_strided_slice %317 {offsets = [0, 32], sizes = [8, 32], strides = [1, 1]} : vector<8x96xf32> to vector<8x32xf32>
    %336 = arith.addf %334, %335 : vector<8x32xf32>
    %337 = arith.negf %336 : vector<8x32xf32>
    %338 = math.exp %337 : vector<8x32xf32>
    %cst_125 = arith.constant 1.000000e+00 : f32
    %339 = vector.broadcast %cst_125 : f32 to vector<8x32xf32>
    %340 = arith.addf %339, %338 : vector<8x32xf32>
    %341 = arith.divf %339, %340 : vector<8x32xf32>
    %342 = vector.extract_strided_slice %321 {offsets = [0, 64], sizes = [8, 32], strides = [1, 1]} : vector<8x96xf32> to vector<8x32xf32>
    %343 = vector.extract_strided_slice %289 {offsets = [0, 64], sizes = [8, 32], strides = [1, 1]} : vector<8x96xf32> to vector<8x32xf32>
    %344 = arith.addf %343, %2 : vector<8x32xf32>
    %345 = arith.mulf %341, %344 : vector<8x32xf32>
    %346 = arith.addf %342, %345 : vector<8x32xf32>
    %347 = vector.extract_strided_slice %317 {offsets = [0, 64], sizes = [8, 32], strides = [1, 1]} : vector<8x96xf32> to vector<8x32xf32>
    %348 = arith.addf %346, %347 : vector<8x32xf32>
    %349 = math.tanh %348 : vector<8x32xf32>
    %350 = arith.index_cast %c3_i32 : i32 to index
    %c0_126 = arith.constant 0 : index
    %c0_127 = arith.constant 0 : index
    %351 = vector.load %arg3[%350, %c0_126, %c0_127] : memref<6x8x1xf32, #tpu.memory_space<vmem>>, vector<1x8x1xf32>
    %352 = vector.shape_cast %351 : vector<1x8x1xf32> to vector<8x1xf32>
    %cst_128 = arith.constant 1.000000e+00 : f32
    %353 = vector.broadcast %cst_128 : f32 to vector<8x32xf32>
    %354 = arith.subf %353, %331 : vector<8x32xf32>
    %355 = arith.mulf %354, %270 : vector<8x32xf32>
    %356 = arith.mulf %331, %349 : vector<8x32xf32>
    %357 = arith.addf %355, %356 : vector<8x32xf32>
    %358 = vector.broadcast %352 : vector<8x1xf32> to vector<8x32xf32>
    %359 = arith.mulf %358, %357 : vector<8x32xf32>
    %cst_129 = arith.constant 1.000000e+00 : f32
    %360 = vector.broadcast %cst_129 : f32 to vector<8x1xf32>
    %361 = arith.subf %360, %352 : vector<8x1xf32>
    %362 = vector.broadcast %361 : vector<8x1xf32> to vector<8x32xf32>
    %363 = arith.mulf %362, %270 : vector<8x32xf32>
    %364 = arith.addf %359, %363 : vector<8x32xf32>
    %c0_130 = arith.constant 0 : index
    %c0_131 = arith.constant 0 : index
    %365 = vector.load %arg8[%c0_130, %c0_131] : memref<32x480xf32, #tpu.memory_space<vmem>>, vector<32x480xf32>
    %cst_132 = arith.constant dense<0.000000e+00> : vector<8x480xf32>
    %366 = tpu.matmul %364, %365, %cst_132 {dimension_numbers = #tpu.dot_dimension_numbers<[1], [0], [0], [1], [0, 0, 1, 1], [], []>} : vector<8x32xf32>, vector<32x480xf32>, vector<8x480xf32> -> vector<8x480xf32>
    %367 = vector.extract_strided_slice %366 {offsets = [0, 0], sizes = [8, 256], strides = [1, 1]} : vector<8x480xf32> to vector<8x256xf32>
    %368 = arith.addf %367, %318 : vector<8x256xf32>
    %369 = arith.index_cast %c3_i32 : i32 to index
    %c0_133 = arith.constant 0 : index
    %c0_134 = arith.constant 0 : index
    %370 = vector.load %arg2[%369, %c0_133, %c0_134] : memref<6x8x256xf32, #tpu.memory_space<vmem>>, vector<1x8x256xf32>
    %371 = vector.shape_cast %370 : vector<1x8x256xf32> to vector<8x256xf32>
    %372 = arith.addf %368, %371 : vector<8x256xf32>
    %373 = vector.extract_strided_slice %372 {offsets = [0, 0], sizes = [8, 128], strides = [1, 1]} : vector<8x256xf32> to vector<8x128xf32>
    %374 = vector.extract_strided_slice %372 {offsets = [0, 128], sizes = [8, 128], strides = [1, 1]} : vector<8x256xf32> to vector<8x128xf32>
    %375 = arith.maximumf %373, %374 : vector<8x128xf32>
    %376 = vector.broadcast %352 : vector<8x1xf32> to vector<8x128xf32>
    %377 = arith.mulf %375, %376 : vector<8x128xf32>
    %378 = arith.index_cast %c3_i32 : i32 to index
    %c0_135 = arith.constant 0 : index
    %c0_136 = arith.constant 0 : index
    %379 = vector.load %arg12[%378, %c0_135, %c0_136] : memref<6x8x128xf32, #tpu.memory_space<vmem>>, vector<1x8x128xf32>
    %380 = vector.shape_cast %379 : vector<1x8x128xf32> to vector<8x128xf32>
    %381 = vector.shape_cast %377 : vector<8x128xf32> to vector<1x8x128xf32>
    tpu.vector_store %arg12[%378, %c0_135, %c0_136], %381 {strides = array<i32>} : memref<6x8x128xf32, #tpu.memory_space<vmem>>, vector<1x8x128xf32>,
    %c4_i32 = arith.constant 4 : i32
    %382 = vector.extract_strided_slice %366 {offsets = [0, 256], sizes = [8, 128], strides = [1, 1]} : vector<8x480xf32> to vector<8x128xf32>
    %383 = vector.extract_strided_slice %366 {offsets = [0, 384], sizes = [8, 96], strides = [1, 1]} : vector<8x480xf32> to vector<8x96xf32>
    %384 = vector.shape_cast %382 : vector<8x128xf32> to vector<1x8x128xf32>
    %c0_137 = arith.constant 0 : index
    %c0_138 = arith.constant 0 : index
    %c0_139 = arith.constant 0 : index
    %385 = vector.load %arg6[%c0_137, %c0_138, %c0_139] : memref<8x8x128xf32, #tpu.memory_space<vmem>>, vector<8x8x128xf32>
    %386 = vector.broadcast %384 : vector<1x8x128xf32> to vector<8x8x128xf32>
    %387 = arith.addf %386, %385 : vector<8x8x128xf32>
    %388 = math.tanh %387 : vector<8x8x128xf32>
    %389 = vector.shape_cast %388 : vector<8x8x128xf32> to vector<64x128xf32>
    %c0_140 = arith.constant 0 : index
    %c0_141 = arith.constant 0 : index
    %390 = vector.load %arg10[%c0_140, %c0_141] : memref<128x128xf32, #tpu.memory_space<vmem>>, vector<128x128xf32>
    %cst_142 = arith.constant dense<0.000000e+00> : vector<64x128xf32>
    %391 = tpu.matmul %389, %390, %cst_142 {dimension_numbers = #tpu.dot_dimension_numbers<[1], [0], [0], [1], [0, 0, 1, 1], [], []>} : vector<64x128xf32>, vector<128x128xf32>, vector<64x128xf32> -> vector<64x128xf32>
    %392 = vector.extract_strided_slice %391 {offsets = [0, 0], sizes = [64, 1], strides = [1, 1]} : vector<64x128xf32> to vector<64x1xf32>
    %393 = vector.shape_cast %392 : vector<64x1xf32> to vector<8x8x1xf32>
    %cst_143 = arith.constant dense<0xFF800000> : vector<8x1xf32>
    %394 = vector.multi_reduction <maximumf>, %393, %cst_143 [0] : vector<8x8x1xf32> to vector<8x1xf32>
    %395 = vector.shape_cast %394 : vector<8x1xf32> to vector<1x8x1xf32>
    %396 = vector.broadcast %395 : vector<1x8x1xf32> to vector<8x8x1xf32>
    %397 = arith.subf %393, %396 : vector<8x8x1xf32>
    %398 = math.exp %397 : vector<8x8x1xf32>
    %c0_144 = arith.constant 0 : index
    %c0_145 = arith.constant 0 : index
    %c0_146 = arith.constant 0 : index
    %399 = vector.load %arg7[%c0_144, %c0_145, %c0_146] : memref<8x8x1xf32, #tpu.memory_space<vmem>>, vector<8x8x1xf32>
    %400 = arith.mulf %398, %399 : vector<8x8x1xf32>
    %cst_147 = arith.constant dense<0.000000e+00> : vector<8x1xf32>
    %401 = vector.multi_reduction <add>, %400, %cst_147 [0] : vector<8x8x1xf32> to vector<8x1xf32>
    %c0_148 = arith.constant 0 : index
    %c0_149 = arith.constant 0 : index
    %c0_150 = arith.constant 0 : index
    %402 = vector.load %arg5[%c0_148, %c0_149, %c0_150] : memref<8x8x32xf32, #tpu.memory_space<vmem>>, vector<8x8x32xf32>
    %403 = vector.broadcast %400 : vector<8x8x1xf32> to vector<8x8x32xf32>
    %404 = arith.mulf %403, %402 : vector<8x8x32xf32>
    %cst_151 = arith.constant dense<0.000000e+00> : vector<8x32xf32>
    %405 = vector.multi_reduction <add>, %404, %cst_151 [0] : vector<8x8x32xf32> to vector<8x32xf32>
    %406 = tpu.reciprocal %401 {approx = true} : vector<8x1xf32> -> vector<8x1xf32>
    %407 = vector.broadcast %406 : vector<8x1xf32> to vector<8x32xf32>
    %408 = arith.mulf %405, %407 : vector<8x32xf32>
    %c0_152 = arith.constant 0 : index
    %c0_153 = arith.constant 0 : index
    %409 = vector.load %arg9[%c0_152, %c0_153] : memref<32x384xf32, #tpu.memory_space<vmem>>, vector<32x384xf32>
    %cst_154 = arith.constant dense<0.000000e+00> : vector<8x384xf32>
    %410 = tpu.matmul %408, %409, %cst_154 {dimension_numbers = #tpu.dot_dimension_numbers<[1], [0], [0], [1], [0, 0, 1, 1], [], []>} : vector<8x32xf32>, vector<32x384xf32>, vector<8x384xf32> -> vector<8x384xf32>
    %411 = vector.extract_strided_slice %410 {offsets = [0, 0], sizes = [8, 96], strides = [1, 1]} : vector<8x384xf32> to vector<8x96xf32>
    %412 = vector.extract_strided_slice %410 {offsets = [0, 128], sizes = [8, 256], strides = [1, 1]} : vector<8x384xf32> to vector<8x256xf32>
    %413 = arith.index_cast %c4_i32 : i32 to index
    %c0_155 = arith.constant 0 : index
    %c0_156 = arith.constant 0 : index
    %414 = vector.load %arg1[%413, %c0_155, %c0_156] : memref<6x8x96xf32, #tpu.memory_space<vmem>>, vector<1x8x96xf32>
    %415 = vector.shape_cast %414 : vector<1x8x96xf32> to vector<8x96xf32>
    %416 = vector.extract_strided_slice %415 {offsets = [0, 0], sizes = [8, 32], strides = [1, 1]} : vector<8x96xf32> to vector<8x32xf32>
    %417 = vector.extract_strided_slice %383 {offsets = [0, 0], sizes = [8, 32], strides = [1, 1]} : vector<8x96xf32> to vector<8x32xf32>
    %418 = arith.addf %416, %417 : vector<8x32xf32>
    %419 = vector.extract_strided_slice %411 {offsets = [0, 0], sizes = [8, 32], strides = [1, 1]} : vector<8x96xf32> to vector<8x32xf32>
    %420 = arith.addf %418, %419 : vector<8x32xf32>
    %421 = arith.negf %420 : vector<8x32xf32>
    %422 = math.exp %421 : vector<8x32xf32>
    %cst_157 = arith.constant 1.000000e+00 : f32
    %423 = vector.broadcast %cst_157 : f32 to vector<8x32xf32>
    %424 = arith.addf %423, %422 : vector<8x32xf32>
    %425 = arith.divf %423, %424 : vector<8x32xf32>
    %426 = vector.extract_strided_slice %415 {offsets = [0, 32], sizes = [8, 32], strides = [1, 1]} : vector<8x96xf32> to vector<8x32xf32>
    %427 = vector.extract_strided_slice %383 {offsets = [0, 32], sizes = [8, 32], strides = [1, 1]} : vector<8x96xf32> to vector<8x32xf32>
    %428 = arith.addf %426, %427 : vector<8x32xf32>
    %429 = vector.extract_strided_slice %411 {offsets = [0, 32], sizes = [8, 32], strides = [1, 1]} : vector<8x96xf32> to vector<8x32xf32>
    %430 = arith.addf %428, %429 : vector<8x32xf32>
    %431 = arith.negf %430 : vector<8x32xf32>
    %432 = math.exp %431 : vector<8x32xf32>
    %cst_158 = arith.constant 1.000000e+00 : f32
    %433 = vector.broadcast %cst_158 : f32 to vector<8x32xf32>
    %434 = arith.addf %433, %432 : vector<8x32xf32>
    %435 = arith.divf %433, %434 : vector<8x32xf32>
    %436 = vector.extract_strided_slice %415 {offsets = [0, 64], sizes = [8, 32], strides = [1, 1]} : vector<8x96xf32> to vector<8x32xf32>
    %437 = vector.extract_strided_slice %383 {offsets = [0, 64], sizes = [8, 32], strides = [1, 1]} : vector<8x96xf32> to vector<8x32xf32>
    %438 = arith.addf %437, %2 : vector<8x32xf32>
    %439 = arith.mulf %435, %438 : vector<8x32xf32>
    %440 = arith.addf %436, %439 : vector<8x32xf32>
    %441 = vector.extract_strided_slice %411 {offsets = [0, 64], sizes = [8, 32], strides = [1, 1]} : vector<8x96xf32> to vector<8x32xf32>
    %442 = arith.addf %440, %441 : vector<8x32xf32>
    %443 = math.tanh %442 : vector<8x32xf32>
    %444 = arith.index_cast %c4_i32 : i32 to index
    %c0_159 = arith.constant 0 : index
    %c0_160 = arith.constant 0 : index
    %445 = vector.load %arg3[%444, %c0_159, %c0_160] : memref<6x8x1xf32, #tpu.memory_space<vmem>>, vector<1x8x1xf32>
    %446 = vector.shape_cast %445 : vector<1x8x1xf32> to vector<8x1xf32>
    %cst_161 = arith.constant 1.000000e+00 : f32
    %447 = vector.broadcast %cst_161 : f32 to vector<8x32xf32>
    %448 = arith.subf %447, %425 : vector<8x32xf32>
    %449 = arith.mulf %448, %364 : vector<8x32xf32>
    %450 = arith.mulf %425, %443 : vector<8x32xf32>
    %451 = arith.addf %449, %450 : vector<8x32xf32>
    %452 = vector.broadcast %446 : vector<8x1xf32> to vector<8x32xf32>
    %453 = arith.mulf %452, %451 : vector<8x32xf32>
    %cst_162 = arith.constant 1.000000e+00 : f32
    %454 = vector.broadcast %cst_162 : f32 to vector<8x1xf32>
    %455 = arith.subf %454, %446 : vector<8x1xf32>
    %456 = vector.broadcast %455 : vector<8x1xf32> to vector<8x32xf32>
    %457 = arith.mulf %456, %364 : vector<8x32xf32>
    %458 = arith.addf %453, %457 : vector<8x32xf32>
    %c0_163 = arith.constant 0 : index
    %c0_164 = arith.constant 0 : index
    %459 = vector.load %arg8[%c0_163, %c0_164] : memref<32x480xf32, #tpu.memory_space<vmem>>, vector<32x480xf32>
    %cst_165 = arith.constant dense<0.000000e+00> : vector<8x480xf32>
    %460 = tpu.matmul %458, %459, %cst_165 {dimension_numbers = #tpu.dot_dimension_numbers<[1], [0], [0], [1], [0, 0, 1, 1], [], []>} : vector<8x32xf32>, vector<32x480xf32>, vector<8x480xf32> -> vector<8x480xf32>
    %461 = vector.extract_strided_slice %460 {offsets = [0, 0], sizes = [8, 256], strides = [1, 1]} : vector<8x480xf32> to vector<8x256xf32>
    %462 = arith.addf %461, %412 : vector<8x256xf32>
    %463 = arith.index_cast %c4_i32 : i32 to index
    %c0_166 = arith.constant 0 : index
    %c0_167 = arith.constant 0 : index
    %464 = vector.load %arg2[%463, %c0_166, %c0_167] : memref<6x8x256xf32, #tpu.memory_space<vmem>>, vector<1x8x256xf32>
    %465 = vector.shape_cast %464 : vector<1x8x256xf32> to vector<8x256xf32>
    %466 = arith.addf %462, %465 : vector<8x256xf32>
    %467 = vector.extract_strided_slice %466 {offsets = [0, 0], sizes = [8, 128], strides = [1, 1]} : vector<8x256xf32> to vector<8x128xf32>
    %468 = vector.extract_strided_slice %466 {offsets = [0, 128], sizes = [8, 128], strides = [1, 1]} : vector<8x256xf32> to vector<8x128xf32>
    %469 = arith.maximumf %467, %468 : vector<8x128xf32>
    %470 = vector.broadcast %446 : vector<8x1xf32> to vector<8x128xf32>
    %471 = arith.mulf %469, %470 : vector<8x128xf32>
    %472 = arith.index_cast %c4_i32 : i32 to index
    %c0_168 = arith.constant 0 : index
    %c0_169 = arith.constant 0 : index
    %473 = vector.load %arg12[%472, %c0_168, %c0_169] : memref<6x8x128xf32, #tpu.memory_space<vmem>>, vector<1x8x128xf32>
    %474 = vector.shape_cast %473 : vector<1x8x128xf32> to vector<8x128xf32>
    %475 = vector.shape_cast %471 : vector<8x128xf32> to vector<1x8x128xf32>
    tpu.vector_store %arg12[%472, %c0_168, %c0_169], %475 {strides = array<i32>} : memref<6x8x128xf32, #tpu.memory_space<vmem>>, vector<1x8x128xf32>,
    %c5_i32 = arith.constant 5 : i32
    %476 = vector.extract_strided_slice %460 {offsets = [0, 256], sizes = [8, 128], strides = [1, 1]} : vector<8x480xf32> to vector<8x128xf32>
    %477 = vector.extract_strided_slice %460 {offsets = [0, 384], sizes = [8, 96], strides = [1, 1]} : vector<8x480xf32> to vector<8x96xf32>
    %478 = vector.shape_cast %476 : vector<8x128xf32> to vector<1x8x128xf32>
    %c0_170 = arith.constant 0 : index
    %c0_171 = arith.constant 0 : index
    %c0_172 = arith.constant 0 : index
    %479 = vector.load %arg6[%c0_170, %c0_171, %c0_172] : memref<8x8x128xf32, #tpu.memory_space<vmem>>, vector<8x8x128xf32>
    %480 = vector.broadcast %478 : vector<1x8x128xf32> to vector<8x8x128xf32>
    %481 = arith.addf %480, %479 : vector<8x8x128xf32>
    %482 = math.tanh %481 : vector<8x8x128xf32>
    %483 = vector.shape_cast %482 : vector<8x8x128xf32> to vector<64x128xf32>
    %c0_173 = arith.constant 0 : index
    %c0_174 = arith.constant 0 : index
    %484 = vector.load %arg10[%c0_173, %c0_174] : memref<128x128xf32, #tpu.memory_space<vmem>>, vector<128x128xf32>
    %cst_175 = arith.constant dense<0.000000e+00> : vector<64x128xf32>
    %485 = tpu.matmul %483, %484, %cst_175 {dimension_numbers = #tpu.dot_dimension_numbers<[1], [0], [0], [1], [0, 0, 1, 1], [], []>} : vector<64x128xf32>, vector<128x128xf32>, vector<64x128xf32> -> vector<64x128xf32>
    %486 = vector.extract_strided_slice %485 {offsets = [0, 0], sizes = [64, 1], strides = [1, 1]} : vector<64x128xf32> to vector<64x1xf32>
    %487 = vector.shape_cast %486 : vector<64x1xf32> to vector<8x8x1xf32>
    %cst_176 = arith.constant dense<0xFF800000> : vector<8x1xf32>
    %488 = vector.multi_reduction <maximumf>, %487, %cst_176 [0] : vector<8x8x1xf32> to vector<8x1xf32>
    %489 = vector.shape_cast %488 : vector<8x1xf32> to vector<1x8x1xf32>
    %490 = vector.broadcast %489 : vector<1x8x1xf32> to vector<8x8x1xf32>
    %491 = arith.subf %487, %490 : vector<8x8x1xf32>
    %492 = math.exp %491 : vector<8x8x1xf32>
    %c0_177 = arith.constant 0 : index
    %c0_178 = arith.constant 0 : index
    %c0_179 = arith.constant 0 : index
    %493 = vector.load %arg7[%c0_177, %c0_178, %c0_179] : memref<8x8x1xf32, #tpu.memory_space<vmem>>, vector<8x8x1xf32>
    %494 = arith.mulf %492, %493 : vector<8x8x1xf32>
    %cst_180 = arith.constant dense<0.000000e+00> : vector<8x1xf32>
    %495 = vector.multi_reduction <add>, %494, %cst_180 [0] : vector<8x8x1xf32> to vector<8x1xf32>
    %c0_181 = arith.constant 0 : index
    %c0_182 = arith.constant 0 : index
    %c0_183 = arith.constant 0 : index
    %496 = vector.load %arg5[%c0_181, %c0_182, %c0_183] : memref<8x8x32xf32, #tpu.memory_space<vmem>>, vector<8x8x32xf32>
    %497 = vector.broadcast %494 : vector<8x8x1xf32> to vector<8x8x32xf32>
    %498 = arith.mulf %497, %496 : vector<8x8x32xf32>
    %cst_184 = arith.constant dense<0.000000e+00> : vector<8x32xf32>
    %499 = vector.multi_reduction <add>, %498, %cst_184 [0] : vector<8x8x32xf32> to vector<8x32xf32>
    %500 = tpu.reciprocal %495 {approx = true} : vector<8x1xf32> -> vector<8x1xf32>
    %501 = vector.broadcast %500 : vector<8x1xf32> to vector<8x32xf32>
    %502 = arith.mulf %499, %501 : vector<8x32xf32>
    %c0_185 = arith.constant 0 : index
    %c0_186 = arith.constant 0 : index
    %503 = vector.load %arg9[%c0_185, %c0_186] : memref<32x384xf32, #tpu.memory_space<vmem>>, vector<32x384xf32>
    %cst_187 = arith.constant dense<0.000000e+00> : vector<8x384xf32>
    %504 = tpu.matmul %502, %503, %cst_187 {dimension_numbers = #tpu.dot_dimension_numbers<[1], [0], [0], [1], [0, 0, 1, 1], [], []>} : vector<8x32xf32>, vector<32x384xf32>, vector<8x384xf32> -> vector<8x384xf32>
    %505 = vector.extract_strided_slice %504 {offsets = [0, 0], sizes = [8, 96], strides = [1, 1]} : vector<8x384xf32> to vector<8x96xf32>
    %506 = vector.extract_strided_slice %504 {offsets = [0, 128], sizes = [8, 256], strides = [1, 1]} : vector<8x384xf32> to vector<8x256xf32>
    %507 = arith.index_cast %c5_i32 : i32 to index
    %c0_188 = arith.constant 0 : index
    %c0_189 = arith.constant 0 : index
    %508 = vector.load %arg1[%507, %c0_188, %c0_189] : memref<6x8x96xf32, #tpu.memory_space<vmem>>, vector<1x8x96xf32>
    %509 = vector.shape_cast %508 : vector<1x8x96xf32> to vector<8x96xf32>
    %510 = vector.extract_strided_slice %509 {offsets = [0, 0], sizes = [8, 32], strides = [1, 1]} : vector<8x96xf32> to vector<8x32xf32>
    %511 = vector.extract_strided_slice %477 {offsets = [0, 0], sizes = [8, 32], strides = [1, 1]} : vector<8x96xf32> to vector<8x32xf32>
    %512 = arith.addf %510, %511 : vector<8x32xf32>
    %513 = vector.extract_strided_slice %505 {offsets = [0, 0], sizes = [8, 32], strides = [1, 1]} : vector<8x96xf32> to vector<8x32xf32>
    %514 = arith.addf %512, %513 : vector<8x32xf32>
    %515 = arith.negf %514 : vector<8x32xf32>
    %516 = math.exp %515 : vector<8x32xf32>
    %cst_190 = arith.constant 1.000000e+00 : f32
    %517 = vector.broadcast %cst_190 : f32 to vector<8x32xf32>
    %518 = arith.addf %517, %516 : vector<8x32xf32>
    %519 = arith.divf %517, %518 : vector<8x32xf32>
    %520 = vector.extract_strided_slice %509 {offsets = [0, 32], sizes = [8, 32], strides = [1, 1]} : vector<8x96xf32> to vector<8x32xf32>
    %521 = vector.extract_strided_slice %477 {offsets = [0, 32], sizes = [8, 32], strides = [1, 1]} : vector<8x96xf32> to vector<8x32xf32>
    %522 = arith.addf %520, %521 : vector<8x32xf32>
    %523 = vector.extract_strided_slice %505 {offsets = [0, 32], sizes = [8, 32], strides = [1, 1]} : vector<8x96xf32> to vector<8x32xf32>
    %524 = arith.addf %522, %523 : vector<8x32xf32>
    %525 = arith.negf %524 : vector<8x32xf32>
    %526 = math.exp %525 : vector<8x32xf32>
    %cst_191 = arith.constant 1.000000e+00 : f32
    %527 = vector.broadcast %cst_191 : f32 to vector<8x32xf32>
    %528 = arith.addf %527, %526 : vector<8x32xf32>
    %529 = arith.divf %527, %528 : vector<8x32xf32>
    %530 = vector.extract_strided_slice %509 {offsets = [0, 64], sizes = [8, 32], strides = [1, 1]} : vector<8x96xf32> to vector<8x32xf32>
    %531 = vector.extract_strided_slice %477 {offsets = [0, 64], sizes = [8, 32], strides = [1, 1]} : vector<8x96xf32> to vector<8x32xf32>
    %532 = arith.addf %531, %2 : vector<8x32xf32>
    %533 = arith.mulf %529, %532 : vector<8x32xf32>
    %534 = arith.addf %530, %533 : vector<8x32xf32>
    %535 = vector.extract_strided_slice %505 {offsets = [0, 64], sizes = [8, 32], strides = [1, 1]} : vector<8x96xf32> to vector<8x32xf32>
    %536 = arith.addf %534, %535 : vector<8x32xf32>
    %537 = math.tanh %536 : vector<8x32xf32>
    %538 = arith.index_cast %c5_i32 : i32 to index
    %c0_192 = arith.constant 0 : index
    %c0_193 = arith.constant 0 : index
    %539 = vector.load %arg3[%538, %c0_192, %c0_193] : memref<6x8x1xf32, #tpu.memory_space<vmem>>, vector<1x8x1xf32>
    %540 = vector.shape_cast %539 : vector<1x8x1xf32> to vector<8x1xf32>
    %cst_194 = arith.constant 1.000000e+00 : f32
    %541 = vector.broadcast %cst_194 : f32 to vector<8x32xf32>
    %542 = arith.subf %541, %519 : vector<8x32xf32>
    %543 = arith.mulf %542, %458 : vector<8x32xf32>
    %544 = arith.mulf %519, %537 : vector<8x32xf32>
    %545 = arith.addf %543, %544 : vector<8x32xf32>
    %546 = vector.broadcast %540 : vector<8x1xf32> to vector<8x32xf32>
    %547 = arith.mulf %546, %545 : vector<8x32xf32>
    %cst_195 = arith.constant 1.000000e+00 : f32
    %548 = vector.broadcast %cst_195 : f32 to vector<8x1xf32>
    %549 = arith.subf %548, %540 : vector<8x1xf32>
    %550 = vector.broadcast %549 : vector<8x1xf32> to vector<8x32xf32>
    %551 = arith.mulf %550, %458 : vector<8x32xf32>
    %552 = arith.addf %547, %551 : vector<8x32xf32>
    %c0_196 = arith.constant 0 : index
    %c0_197 = arith.constant 0 : index
    %553 = vector.load %arg8[%c0_196, %c0_197] : memref<32x480xf32, #tpu.memory_space<vmem>>, vector<32x480xf32>
    %cst_198 = arith.constant dense<0.000000e+00> : vector<8x480xf32>
    %554 = tpu.matmul %552, %553, %cst_198 {dimension_numbers = #tpu.dot_dimension_numbers<[1], [0], [0], [1], [0, 0, 1, 1], [], []>} : vector<8x32xf32>, vector<32x480xf32>, vector<8x480xf32> -> vector<8x480xf32>
    %555 = vector.extract_strided_slice %554 {offsets = [0, 0], sizes = [8, 256], strides = [1, 1]} : vector<8x480xf32> to vector<8x256xf32>
    %556 = arith.addf %555, %506 : vector<8x256xf32>
    %557 = arith.index_cast %c5_i32 : i32 to index
    %c0_199 = arith.constant 0 : index
    %c0_200 = arith.constant 0 : index
    %558 = vector.load %arg2[%557, %c0_199, %c0_200] : memref<6x8x256xf32, #tpu.memory_space<vmem>>, vector<1x8x256xf32>
    %559 = vector.shape_cast %558 : vector<1x8x256xf32> to vector<8x256xf32>
    %560 = arith.addf %556, %559 : vector<8x256xf32>
    %561 = vector.extract_strided_slice %560 {offsets = [0, 0], sizes = [8, 128], strides = [1, 1]} : vector<8x256xf32> to vector<8x128xf32>
    %562 = vector.extract_strided_slice %560 {offsets = [0, 128], sizes = [8, 128], strides = [1, 1]} : vector<8x256xf32> to vector<8x128xf32>
    %563 = arith.maximumf %561, %562 : vector<8x128xf32>
    %564 = vector.broadcast %540 : vector<8x1xf32> to vector<8x128xf32>
    %565 = arith.mulf %563, %564 : vector<8x128xf32>
    %566 = arith.index_cast %c5_i32 : i32 to index
    %c0_201 = arith.constant 0 : index
    %c0_202 = arith.constant 0 : index
    %567 = vector.load %arg12[%566, %c0_201, %c0_202] : memref<6x8x128xf32, #tpu.memory_space<vmem>>, vector<1x8x128xf32>
    %568 = vector.shape_cast %567 : vector<1x8x128xf32> to vector<8x128xf32>
    %569 = vector.shape_cast %565 : vector<8x128xf32> to vector<1x8x128xf32>
    tpu.vector_store %arg12[%566, %c0_201, %c0_202], %569 {strides = array<i32>} : memref<6x8x128xf32, #tpu.memory_space<vmem>>, vector<1x8x128xf32>,
    %c6_i32 = arith.constant 6 : i32
    return
  }
  func.func @transform_0(%arg0: i32) -> (i32, i32, i32) {
    %c0_i32 = arith.constant 0 : i32
    %c0_i32_0 = arith.constant 0 : i32
    %c0_i32_1 = arith.constant 0 : i32
    %c0_i32_2 = arith.constant 0 : i32
    return %c0_i32, %c0_i32_0, %c0_i32_1 : i32, i32, i32
  }
  func.func @transform_1(%arg0: i32) -> (i32, i32, i32) {
    %c0_i32 = arith.constant 0 : i32
    %c0_i32_0 = arith.constant 0 : i32
    %c0_i32_1 = arith.constant 0 : i32
    %c0_i32_2 = arith.constant 0 : i32
    return %c0_i32, %c0_i32_0, %c0_i32_1 : i32, i32, i32
  }
  func.func @transform_2(%arg0: i32) -> (i32, i32, i32) {
    %c0_i32 = arith.constant 0 : i32
    %c0_i32_0 = arith.constant 0 : i32
    %c0_i32_1 = arith.constant 0 : i32
    %c0_i32_2 = arith.constant 0 : i32
    return %c0_i32, %c0_i32_0, %c0_i32_1 : i32, i32, i32
  }
  func.func @transform_3(%arg0: i32) -> (i32, i32) {
    %c0_i32 = arith.constant 0 : i32
    %c0_i32_0 = arith.constant 0 : i32
    %c0_i32_1 = arith.constant 0 : i32
    return %c0_i32, %c0_i32_0 : i32, i32
  }
  func.func @transform_4(%arg0: i32) -> (i32, i32, i32) {
    %c0_i32 = arith.constant 0 : i32
    %c0_i32_0 = arith.constant 0 : i32
    %c0_i32_1 = arith.constant 0 : i32
    %c0_i32_2 = arith.constant 0 : i32
    return %c0_i32, %c0_i32_0, %c0_i32_1 : i32, i32, i32
  }
  func.func @transform_5(%arg0: i32) -> (i32, i32, i32) {
    %c0_i32 = arith.constant 0 : i32
    %c0_i32_0 = arith.constant 0 : i32
    %c0_i32_1 = arith.constant 0 : i32
    %c0_i32_2 = arith.constant 0 : i32
    return %c0_i32, %c0_i32_0, %c0_i32_1 : i32, i32, i32
  }
  func.func @transform_6(%arg0: i32) -> (i32, i32, i32) {
    %c0_i32 = arith.constant 0 : i32
    %c0_i32_0 = arith.constant 0 : i32
    %c0_i32_1 = arith.constant 0 : i32
    %c0_i32_2 = arith.constant 0 : i32
    return %c0_i32, %c0_i32_0, %c0_i32_1 : i32, i32, i32
  }
  func.func @transform_7(%arg0: i32) -> (i32, i32) {
    %c0_i32 = arith.constant 0 : i32
    %c0_i32_0 = arith.constant 0 : i32
    %c0_i32_1 = arith.constant 0 : i32
    return %c0_i32, %c0_i32_0 : i32, i32
  }
  func.func @transform_8(%arg0: i32) -> (i32, i32) {
    %c0_i32 = arith.constant 0 : i32
    %c0_i32_0 = arith.constant 0 : i32
    %c0_i32_1 = arith.constant 0 : i32
    return %c0_i32, %c0_i32_0 : i32, i32
  }
  func.func @transform_9(%arg0: i32) -> (i32, i32) {
    %c0_i32 = arith.constant 0 : i32
    %c0_i32_0 = arith.constant 0 : i32
    %c0_i32_1 = arith.constant 0 : i32
    return %c0_i32, %c0_i32_0 : i32, i32
  }
  func.func @transform_10(%arg0: i32) -> (i32, i32) {
    %c0_i32 = arith.constant 0 : i32
    %c0_i32_0 = arith.constant 0 : i32
    %c0_i32_1 = arith.constant 0 : i32
    return %c0_i32, %c0_i32_0 : i32, i32
  }
  func.func @transform_11(%arg0: i32) -> (i32, i32, i32) {
    %c0_i32 = arith.constant 0 : i32
    %c0_i32_0 = arith.constant 0 : i32
    %c0_i32_1 = arith.constant 0 : i32
    %c0_i32_2 = arith.constant 0 : i32
    return %c0_i32, %c0_i32_0, %c0_i32_1 : i32, i32, i32
  }
}

</mosaic_0001>

<llo_original>
// kernel: tpu_custom_call.1
$region0: #{tpu_custom_call.1}
  #allocation0 [shape = 'u32[]', space=smem, size = 0x4, offset = 0x4, fixed_abs, tag = 'smem constant byte address 0x4 - core index']
  #allocation1 [shape = 'u32[144,128]{1,0:T(1,128)}', space=vmem, size = 0x12000, scoped, tag = 'internal scratch']
  %s0 = inlined_call_operand.hbm [shape: f32[6,8,96], index: 0, kind: input, shape index: {}]
  %s1 = inlined_call_operand.hbm [shape: f32[6,8,256], index: 1, kind: input, shape index: {}]
  %s2 = inlined_call_operand.vmem [shape: f32[6,8,1], index: 2, kind: input, shape index: {}]
  %s3 = inlined_call_operand.vmem [shape: f32[8,32], index: 3, kind: input, shape index: {}]
  %s4 = inlined_call_operand.hbm [shape: f32[8,8,32], index: 4, kind: input, shape index: {}]
  %s5 = inlined_call_operand.hbm [shape: f32[8,8,128], index: 5, kind: input, shape index: {}]
  %s6 = inlined_call_operand.vmem [shape: f32[8,8,1], index: 6, kind: input, shape index: {}]
  %s7 = inlined_call_operand.vmem [shape: f32[32,480], index: 7, kind: input, shape index: {}]
  %s8 = inlined_call_operand.hbm [shape: f32[32,384], index: 8, kind: input, shape index: {}]
  %s9 = inlined_call_operand.hbm [shape: f32[128,128], index: 9, kind: input, shape index: {}]
  %s10 = inlined_call_operand.vmem [shape: f32[1,32], index: 10, kind: input, shape index: {}]
  %s11 = inlined_call_operand.hbm [shape: f32[6,8,128], index: 11, kind: output, shape index: {}]
  %s12 = sld [smem:[#allocation0]]
  $region78: #{tpu_custom_call.1} parent=0
    _
  %s14 = ssub.s32 1, %s12
  %s15 = scalar_select 0, %s14, %s12
  $region1: #{tpu_custom_call.1} parent=0
    #allocation2 [shape = 'u8[24576]{0}', space=vmem, size = 0x6000, scoped, tag = 'input window, operand 0, single buffered']
    #allocation3 [shape = 's32[1]{0}', space=sflag, size = 0x4, scoped, tag = 'scoped memory for tpu_custom_call.1']
    #allocation4 [shape = 's32[1]{0}', space=sflag, size = 0x4, scoped, tag = 'scoped memory for tpu_custom_call.1']
    #allocation5 [shape = 'u8[49152]{0}', space=vmem, size = 0xc000, scoped, tag = 'input window, operand 1, single buffered']
    #allocation6 [shape = 's32[1]{0}', space=sflag, size = 0x4, scoped, tag = 'scoped memory for tpu_custom_call.1']
    #allocation7 [shape = 'u8[32768]{0}', space=vmem, size = 0x8000, scoped, tag = 'input window, operand 4, single buffered']
    #allocation8 [shape = 'u8[32768]{0}', space=vmem, size = 0x8000, scoped, tag = 'input window, operand 5, single buffered']
    #allocation9 [shape = 's32[1]{0}', space=sflag, size = 0x4, scoped, tag = 'scoped memory for tpu_custom_call.1']
    #allocation10 [shape = 'u8[49152]{0}', space=vmem, size = 0xc000, scoped, tag = 'input window, operand 8, single buffered']
    #allocation11 [shape = 'u8[65536]{0}', space=vmem, size = 0x10000, scoped, tag = 'input window, operand 9, single buffered']
    #allocation12 [shape = 's32[1]{0}', space=sflag, size = 0x4, scoped, tag = 'scoped memory for tpu_custom_call.1']
    #allocation13 [shape = 'u8[24576]{0}', space=vmem, size = 0x6000, scoped, tag = 'output window, operand 0, single buffered']
    %16 = vsyncpa [#allocation3], 0
    %17 = vsyncpa [#allocation6], 0
    %18 = vsyncpa [#allocation9], 0
    %19 = vsyncpa [#allocation12], 0
    %20 = vsyncpa [#allocation4], 0
    // Predicated region
    $region2: #{tpu_custom_call.1} parent=1 // pred_check
      _
    $region3: #{tpu_custom_call.1} parent=1 // pred_check_branch
      %22 = sbr.rel (0) target = $region5
    $region4: #{tpu_custom_call.1} parent=1 // pred_region
      %s24 = ssub.s32 768, 768
      %25 = vsyncadd [#allocation3], %s24
      %s26 = sshll.u32 [#allocation2], 4
      %s27 = int_to_ptr.vmem [resolvable:$true] %s26
      %32 = dma.hbm_to_vmem [thread:$0]  %s0, 768, %s27, [#allocation3], 128, 128, 8
    $region5: #{tpu_custom_call.1} parent=1 // pred_fallthru
      _
    // Predicated region
    $region6: #{tpu_custom_call.1} parent=1 // pred_check
      _
    $region7: #{tpu_custom_call.1} parent=1 // pred_check_branch
      %34 = sbr.rel (0) target = $region9
    $region8: #{tpu_custom_call.1} parent=1 // pred_region
      %s36 = ssub.s32 1536, 1536
      %37 = vsyncadd [#allocation6], %s36
      %s38 = sshll.u32 [#allocation5], 4
      %s39 = int_to_ptr.vmem [resolvable:$true] %s38
      %44 = dma.hbm_to_vmem [thread:$0]  %s1, 1536, %s39, [#allocation6], 256, 256, 16
    $region9: #{tpu_custom_call.1} parent=1 // pred_fallthru
      _
    // Predicated region
    $region10: #{tpu_custom_call.1} parent=1 // pred_check
      _
    $region11: #{tpu_custom_call.1} parent=1 // pred_check_branch
      %46 = sbr.rel (0) target = $region13
    $region12: #{tpu_custom_call.1} parent=1 // pred_region
      _
    $region13: #{tpu_custom_call.1} parent=1 // pred_fallthru
      _
    // Predicated region
    $region14: #{tpu_custom_call.1} parent=1 // pred_check
      _
    $region15: #{tpu_custom_call.1} parent=1 // pred_check_branch
      %48 = sbr.rel (0) target = $region17
    $region16: #{tpu_custom_call.1} parent=1 // pred_region
      _
    $region17: #{tpu_custom_call.1} parent=1 // pred_fallthru
      _
    // Predicated region
    $region18: #{tpu_custom_call.1} parent=1 // pred_check
      _
    $region19: #{tpu_custom_call.1} parent=1 // pred_check_branch
      %50 = sbr.rel (0) target = $region21
    $region20: #{tpu_custom_call.1} parent=1 // pred_region
      %s52 = ssub.s32 1024, 1024
      %53 = vsyncadd [#allocation6], %s52
      %s54 = sshll.u32 [#allocation7], 4
      %s55 = int_to_ptr.vmem [resolvable:$true] %s54
      %60 = dma.hbm_to_vmem [thread:$0]  %s4, 1024, %s55, [#allocation6], 128, 128, 8
    $region21: #{tpu_custom_call.1} parent=1 // pred_fallthru
      _
    // Predicated region
    $region22: #{tpu_custom_call.1} parent=1 // pred_check
      _
    $region23: #{tpu_custom_call.1} parent=1 // pred_check_branch
      %62 = sbr.rel (0) target = $region25
    $region24: #{tpu_custom_call.1} parent=1 // pred_region
      %s64 = ssub.s32 1024, 1024
      %65 = vsyncadd [#allocation9], %s64
      %s66 = sshll.u32 [#allocation8], 4
      %s67 = int_to_ptr.vmem [resolvable:$true] %s66
      %72 = dma.hbm_to_vmem [thread:$0]  %s5, 1024, %s67, [#allocation9], 128, 128, 8
    $region25: #{tpu_custom_call.1} parent=1 // pred_fallthru
      _
    // Predicated region
    $region26: #{tpu_custom_call.1} parent=1 // pred_check
      _
    $region27: #{tpu_custom_call.1} parent=1 // pred_check_branch
      %74 = sbr.rel (0) target = $region29
    $region28: #{tpu_custom_call.1} parent=1 // pred_region
      _
    $region29: #{tpu_custom_call.1} parent=1 // pred_fallthru
      _
    // Predicated region
    $region30: #{tpu_custom_call.1} parent=1 // pred_check
      _
    $region31: #{tpu_custom_call.1} parent=1 // pred_check_branch
      %76 = sbr.rel (0) target = $region33
    $region32: #{tpu_custom_call.1} parent=1 // pred_region
      _
    $region33: #{tpu_custom_call.1} parent=1 // pred_fallthru
      _
    // Predicated region
    $region34: #{tpu_custom_call.1} parent=1 // pred_check
      _
    $region35: #{tpu_custom_call.1} parent=1 // pred_check_branch
      %78 = sbr.rel (0) target = $region37
    $region36: #{tpu_custom_call.1} parent=1 // pred_region
      %s80 = ssub.s32 1536, 1536
      %81 = vsyncadd [#allocation9], %s80
      %s82 = sshll.u32 [#allocation10], 4
      %s83 = int_to_ptr.vmem [resolvable:$true] %s82
      %88 = dma.hbm_to_vmem [thread:$0]  %s8, 1536, %s83, [#allocation9], 384, 384, 24
    $region37: #{tpu_custom_call.1} parent=1 // pred_fallthru
      _
    // Predicated region
    $region38: #{tpu_custom_call.1} parent=1 // pred_check
      _
    $region39: #{tpu_custom_call.1} parent=1 // pred_check_branch
      %90 = sbr.rel (0) target = $region41
    $region40: #{tpu_custom_call.1} parent=1 // pred_region
      %s92 = ssub.s32 2048, 2048
      %93 = vsyncadd [#allocation12], %s92
      %s94 = sshll.u32 [#allocation11], 4
      %s95 = int_to_ptr.vmem [resolvable:$true] %s94
      %100 = dma.hbm_to_vmem [thread:$0]  %s9, 2048, %s95, [#allocation12], 128, 128, 8
    $region41: #{tpu_custom_call.1} parent=1 // pred_fallthru
      _
    // Predicated region
    $region42: #{tpu_custom_call.1} parent=1 // pred_check
      _
    $region43: #{tpu_custom_call.1} parent=1 // pred_check_branch
      %102 = sbr.rel (0) target = $region45
    $region44: #{tpu_custom_call.1} parent=1 // pred_region
      _
    $region45: #{tpu_custom_call.1} parent=1 // pred_fallthru
      _
    // Predicated region
    $region46: #{tpu_custom_call.1} parent=1 // pred_check
      _
    $region47: #{tpu_custom_call.1} parent=1 // pred_check_branch
      %104 = sbr.rel (0) target = $region49
    $region48: #{tpu_custom_call.1} parent=1 // pred_region
      %105 = dma.done [#allocation3], 768
    $region49: #{tpu_custom_call.1} parent=1 // pred_fallthru
      _
    // Predicated region
    $region50: #{tpu_custom_call.1} parent=1 // pred_check
      _
    $region51: #{tpu_custom_call.1} parent=1 // pred_check_branch
      %107 = sbr.rel (0) target = $region53
    $region52: #{tpu_custom_call.1} parent=1 // pred_region
      %108 = dma.done [#allocation6], 1536
    $region53: #{tpu_custom_call.1} parent=1 // pred_fallthru
      _
    // Predicated region
    $region54: #{tpu_custom_call.1} parent=1 // pred_check
      _
    $region55: #{tpu_custom_call.1} parent=1 // pred_check_branch
      %110 = sbr.rel (0) target = $region57
    $region56: #{tpu_custom_call.1} parent=1 // pred_region
      %111 = dma.done [#allocation6], 1024
    $region57: #{tpu_custom_call.1} parent=1 // pred_fallthru
      _
    // Predicated region
    $region58: #{tpu_custom_call.1} parent=1 // pred_check
      _
    $region59: #{tpu_custom_call.1} parent=1 // pred_check_branch
      %113 = sbr.rel (0) target = $region61
    $region60: #{tpu_custom_call.1} parent=1 // pred_region
      %114 = dma.done [#allocation9], 1024
    $region61: #{tpu_custom_call.1} parent=1 // pred_fallthru
      _
    // Predicated region
    $region62: #{tpu_custom_call.1} parent=1 // pred_check
      _
    $region63: #{tpu_custom_call.1} parent=1 // pred_check_branch
      %116 = sbr.rel (0) target = $region65
    $region64: #{tpu_custom_call.1} parent=1 // pred_region
      %117 = dma.done [#allocation9], 1536
    $region65: #{tpu_custom_call.1} parent=1 // pred_fallthru
      _
    // Predicated region
    $region66: #{tpu_custom_call.1} parent=1 // pred_check
      _
    $region67: #{tpu_custom_call.1} parent=1 // pred_check_branch
      %119 = sbr.rel (0) target = $region69
    $region68: #{tpu_custom_call.1} parent=1 // pred_region
      %120 = dma.done [#allocation12], 2048
    $region69: #{tpu_custom_call.1} parent=1 // pred_fallthru
      _
    %v121 = vld [vmem:[%s10] sm:$0x1]
    %v123 = vlaneseq
    %v124 = vshrl.u32 %v123, 7
    %v125 = vsub.s32 0, %v124
    %v126 = vrot.slane %v121, %v125
    %v127 = vld [vmem:[%s3] sm:$0xff]
    %v128 = vld [vmem:[%s7] sm:$0xff]
    %v129 = vld [vmem:[%s7 + $0x8] sm:$0xff]
    %v130 = vld [vmem:[%s7 + $0x10] sm:$0xff]
    %v131 = vld [vmem:[%s7 + $0x18] sm:$0xff]
    %v132 = vld [vmem:[%s7 + $0x20] sm:$0xff]
    %v133 = vld [vmem:[%s7 + $0x28] sm:$0xff]
    %v134 = vld [vmem:[%s7 + $0x30] sm:$0xff]
    %v135 = vld [vmem:[%s7 + $0x38] sm:$0xff]
    %v136 = vld [vmem:[%s7 + $0x40] sm:$0xff]
    %v137 = vld [vmem:[%s7 + $0x48] sm:$0xff]
    %v138 = vld [vmem:[%s7 + $0x50] sm:$0xff]
    %v139 = vld [vmem:[%s7 + $0x58] sm:$0xff]
    %v140 = vld [vmem:[%s7 + $0x60] sm:$0xff]
    %v141 = vld [vmem:[%s7 + $0x68] sm:$0xff]
    %v142 = vld [vmem:[%s7 + $0x70] sm:$0xff]
    %v143 = vld [vmem:[%s7 + $0x78] sm:$0xff]
    %vm144 = vcmask 261120
    %v146 = vsel %vm144, %v127, 0
    %148 = vmatprep.subr.mxu0 0.0
    %149 = vmatpush1.msra.mxu0 0.0
    %150 = vmatprep.subr.mxu0 0.0
    %151 = vmatpush1.msra.mxu0 0.0
    %152 = vmatprep.subr.mxu0 0.0
    %153 = vmatpush1.msra.mxu0 0.0
    %154 = vmatprep.subr.mxu0 0.0
    %155 = vmatpush1.msra.mxu0 0.0
    %156 = vmatprep.subr.mxu0 0.0
    %157 = vmatpush1.msra.mxu0 0.0
    %158 = vmatprep.subr.mxu0 0.0
    %159 = vmatpush1.msra.mxu0 0.0
    %160 = vmatprep.subr.mxu0 0.0
    %161 = vmatpush1.msra.mxu0 0.0
    %162 = vmatprep.subr.mxu0 0.0
    %163 = vmatpush1.msra.mxu0 0.0
    %164 = vmatprep.subr.mxu0 0.0
    %165 = vmatpush1.msra.mxu0 0.0
    %166 = vmatprep.subr.mxu0 0.0
    %167 = vmatpush1.msra.mxu0 0.0
    %168 = vmatprep.subr.mxu0 0.0
    %169 = vmatpush1.msra.mxu0 0.0
    %170 = vmatprep.subr.mxu0 0.0
    %171 = vmatpush1.msra.mxu0 0.0
    %172 = vmatprep.subr.mxu0 %v143
    %173 = vmatpush1.msra.mxu0 %v142
    %174 = vmatprep.subr.mxu0 %v139
    %175 = vmatpush1.msra.mxu0 %v138
    %176 = vmatprep.subr.mxu0 %v135
    %177 = vmatpush1.msra.mxu0 %v134
    %178 = vmatprep.subr.mxu0 %v131
    %179 = vmatpush1.msra.mxu0 %v130
    %180 = vmatprep.subr.mxu0 0.0
    %181 = vmatpush2.msra.mxu0 0.0
    %182 = vmatprep.subr.mxu0 0.0
    %183 = vmatpush2.msra.mxu0 0.0
    %184 = vmatprep.subr.mxu0 0.0
    %185 = vmatpush2.msra.mxu0 0.0
    %186 = vmatprep.subr.mxu0 0.0
    %187 = vmatpush2.msra.mxu0 0.0
    %188 = vmatprep.subr.mxu0 0.0
    %189 = vmatpush2.msra.mxu0 0.0
    %190 = vmatprep.subr.mxu0 0.0
    %191 = vmatpush2.msra.mxu0 0.0
    %192 = vmatprep.subr.mxu0 0.0
    %193 = vmatpush2.msra.mxu0 0.0
    %194 = vmatprep.subr.mxu0 0.0
    %195 = vmatpush2.msra.mxu0 0.0
    %196 = vmatprep.subr.mxu0 0.0
    %197 = vmatpush2.msra.mxu0 0.0
    %198 = vmatprep.subr.mxu0 0.0
    %199 = vmatpush2.msra.mxu0 0.0
    %200 = vmatprep.subr.mxu0 0.0
    %201 = vmatpush2.msra.mxu0 0.0
    %202 = vmatprep.subr.mxu0 0.0
    %203 = vmatpush2.msra.mxu0 0.0
    %204 = vmatprep.subr.mxu0 0.0
    %205 = vmatpush2.msra.mxu0 0.0
    %206 = vmatprep.subr.mxu0 0.0
    %207 = vmatpush2.msra.mxu0 0.0
    %208 = vmatprep.subr.mxu0 0.0
    %209 = vmatpush2.msra.mxu0 0.0
    %210 = vmatprep.subr.mxu0 0.0
    %211 = vmatpush2.msra.mxu0 0.0
    %212 = vmatprep.mubr.f32.mxu0 0.0
    %213 = vmatmul.mubr.f32.gmra.mxu0 %v146
    %v214 = vpop.f32.mrf.mxu0
    %v215 = vadd.f32 0.0, %v214
    %v216 = vpop.f32.mrf.mxu0
    %v217 = vadd.f32 0.0, %v216
    %218 = vdwg.mxu0
    %v219 = vld [vmem:[#allocation8] sm:$0xff]
    %v220 = vld [vmem:[#allocation8 + $0x8] sm:$0xff]
    %v221 = vld [vmem:[#allocation8 + $0x10] sm:$0xff]
    %v222 = vld [vmem:[#allocation8 + $0x18] sm:$0xff]
    %v223 = vld [vmem:[#allocation8 + $0x20] sm:$0xff]
    %v224 = vld [vmem:[#allocation8 + $0x28] sm:$0xff]
    %v225 = vld [vmem:[#allocation8 + $0x30] sm:$0xff]
    %v226 = vld [vmem:[#allocation8 + $0x38] sm:$0xff]
    %v227 = vadd.f32 %v215, %v219
    %v228 = vadd.f32 %v215, %v220
    %v229 = vadd.f32 %v215, %v221
    %v230 = vadd.f32 %v215, %v222
    %v231 = vadd.f32 %v215, %v223
    %v232 = vadd.f32 %v215, %v224
    %v233 = vadd.f32 %v215, %v225
    %v234 = vadd.f32 %v215, %v226
    %v235 = vtanh.pop %v227
    %v236 = vtanh.pop %v228
    %v237 = vtanh.pop %v229
    %v238 = vtanh.pop %v230
    %v239 = vtanh.pop %v231
    %v240 = vtanh.pop %v232
    %v241 = vtanh.pop %v233
    %v242 = vtanh.pop %v234
    %v243 = vld [vmem:[#allocation11] sm:$0xff]
    %v244 = vld [vmem:[#allocation11 + $0x8] sm:$0xff]
    %v245 = vld [vmem:[#allocation11 + $0x10] sm:$0xff]
    %v246 = vld [vmem:[#allocation11 + $0x18] sm:$0xff]
    %v247 = vld [vmem:[#allocation11 + $0x20] sm:$0xff]
    %v248 = vld [vmem:[#allocation11 + $0x28] sm:$0xff]
    %v249 = vld [vmem:[#allocation11 + $0x30] sm:$0xff]
    %v250 = vld [vmem:[#allocation11 + $0x38] sm:$0xff]
    %v251 = vld [vmem:[#allocation11 + $0x40] sm:$0xff]
    %v252 = vld [vmem:[#allocation11 + $0x48] sm:$0xff]
    %v253 = vld [vmem:[#allocation11 + $0x50] sm:$0xff]
    %v254 = vld [vmem:[#allocation11 + $0x58] sm:$0xff]
    %v255 = vld [vmem:[#allocation11 + $0x60] sm:$0xff]
    %v256 = vld [vmem:[#allocation11 + $0x68] sm:$0xff]
    %v257 = vld [vmem:[#allocation11 + $0x70] sm:$0xff]
    %v258 = vld [vmem:[#allocation11 + $0x78] sm:$0xff]
    %259 = vmatprep.subr.mxu0 0.0
    %260 = vmatpush1.msra.mxu0 %v258
    %261 = vmatprep.subr.mxu0 0.0
    %262 = vmatpush1.msra.mxu0 %v257
    %263 = vmatprep.subr.mxu0 0.0
    %264 = vmatpush1.msra.mxu0 %v256
    %265 = vmatprep.subr.mxu0 0.0
    %266 = vmatpush1.msra.mxu0 %v255
    %267 = vmatprep.subr.mxu0 0.0
    %268 = vmatpush1.msra.mxu0 %v254
    %269 = vmatprep.subr.mxu0 0.0
    %270 = vmatpush1.msra.mxu0 %v253
    %271 = vmatprep.subr.mxu0 0.0
    %272 = vmatpush1.msra.mxu0 %v252
    %273 = vmatprep.subr.mxu0 0.0
    %274 = vmatpush1.msra.mxu0 %v251
    %275 = vmatprep.subr.mxu0 0.0
    %276 = vmatpush1.msra.mxu0 %v250
    %277 = vmatprep.subr.mxu0 0.0
    %278 = vmatpush1.msra.mxu0 %v249
    %279 = vmatprep.subr.mxu0 0.0
    %280 = vmatpush1.msra.mxu0 %v248
    %281 = vmatprep.subr.mxu0 0.0
    %282 = vmatpush1.msra.mxu0 %v247
    %283 = vmatprep.subr.mxu0 0.0
    %284 = vmatpush1.msra.mxu0 %v246
    %285 = vmatprep.subr.mxu0 0.0
    %286 = vmatpush1.msra.mxu0 %v245
    %287 = vmatprep.subr.mxu0 0.0
    %288 = vmatpush1.msra.mxu0 %v244
    %289 = vmatprep.subr.mxu0 0.0
    %290 = vmatpush1.msra.mxu0 %v243
    %291 = vmatprep.subr.mxu0 0.0
    %292 = vmatpush2.msra.mxu0 0.0
    %293 = vmatprep.subr.mxu0 0.0
    %294 = vmatpush2.msra.mxu0 0.0
    %295 = vmatprep.subr.mxu0 0.0
    %296 = vmatpush2.msra.mxu0 0.0
    %297 = vmatprep.subr.mxu0 0.0
    %298 = vmatpush2.msra.mxu0 0.0
    %299 = vmatprep.subr.mxu0 0.0
    %300 = vmatpush2.msra.mxu0 0.0
    %301 = vmatprep.subr.mxu0 0.0
    %302 = vmatpush2.msra.mxu0 0.0
    %303 = vmatprep.subr.mxu0 0.0
    %304 = vmatpush2.msra.mxu0 0.0
    %305 = vmatprep.subr.mxu0 0.0
    %306 = vmatpush2.msra.mxu0 0.0
    %307 = vmatprep.subr.mxu0 0.0
    %308 = vmatpush2.msra.mxu0 0.0
    %309 = vmatprep.subr.mxu0 0.0
    %310 = vmatpush2.msra.mxu0 0.0
    %311 = vmatprep.subr.mxu0 0.0
    %312 = vmatpush2.msra.mxu0 0.0
    %313 = vmatprep.subr.mxu0 0.0
    %314 = vmatpush2.msra.mxu0 0.0
    %315 = vmatprep.subr.mxu0 0.0
    %316 = vmatpush2.msra.mxu0 0.0
    %317 = vmatprep.subr.mxu0 0.0
    %318 = vmatpush2.msra.mxu0 0.0
    %319 = vmatprep.subr.mxu0 0.0
    %320 = vmatpush2.msra.mxu0 0.0
    %321 = vmatprep.subr.mxu0 0.0
    %322 = vmatpush2.msra.mxu0 0.0
    %323 = vmatprep.mubr.f32.mxu0 0.0
    %324 = vmatmul.mubr.f32.gmra.mxu0 %v235
    %v325 = vpop.f32.mrf.mxu0
    %v326 = vadd.f32 0.0, %v325
    %v327 = vpop.f32.mrf.mxu0
    %328 = vmatprep.mubr.f32.mxu0 0.0
    %329 = vmatmul.mubr.f32.gmra.mxu0 %v236
    %v330 = vpop.f32.mrf.mxu0
    %v331 = vadd.f32 0.0, %v330
    %v332 = vpop.f32.mrf.mxu0
    %333 = vmatprep.mubr.f32.mxu0 0.0
    %334 = vmatmul.mubr.f32.gmra.mxu0 %v237
    %v335 = vpop.f32.mrf.mxu0
    %v336 = vadd.f32 0.0, %v335
    %v337 = vpop.f32.mrf.mxu0
    %338 = vmatprep.mubr.f32.mxu0 0.0
    %339 = vmatmul.mubr.f32.gmra.mxu0 %v238
    %v340 = vpop.f32.mrf.mxu0
    %v341 = vadd.f32 0.0, %v340
    %v342 = vpop.f32.mrf.mxu0
    %343 = vmatprep.mubr.f32.mxu0 0.0
    %344 = vmatmul.mubr.f32.gmra.mxu0 %v239
    %v345 = vpop.f32.mrf.mxu0
    %v346 = vadd.f32 0.0, %v345
    %v347 = vpop.f32.mrf.mxu0
    %348 = vmatprep.mubr.f32.mxu0 0.0
    %349 = vmatmul.mubr.f32.gmra.mxu0 %v240
    %v350 = vpop.f32.mrf.mxu0
    %v351 = vadd.f32 0.0, %v350
    %v352 = vpop.f32.mrf.mxu0
    %353 = vmatprep.mubr.f32.mxu0 0.0
    %354 = vmatmul.mubr.f32.gmra.mxu0 %v241
    %v355 = vpop.f32.mrf.mxu0
    %v356 = vadd.f32 0.0, %v355
    %v357 = vpop.f32.mrf.mxu0
    %358 = vmatprep.mubr.f32.mxu0 0.0
    %359 = vmatmul.mubr.f32.gmra.mxu0 %v242
    %v360 = vpop.f32.mrf.mxu0
    %v361 = vadd.f32 0.0, %v360
    %v362 = vpop.f32.mrf.mxu0
    %363 = vdwg.mxu0
    %vm364 = vcmask 7168
    %v365 = vsel %vm364, %v326, -inf
    %v366 = vsel %vm364, %v331, -inf
    %v367 = vsel %vm364, %v336, -inf
    %v368 = vsel %vm364, %v341, -inf
    %v369 = vsel %vm364, %v346, -inf
    %v370 = vmax.f32 %v365, %v369
    %v371 = vsel %vm364, %v351, -inf
    %v372 = vmax.f32 %v366, %v371
    %v373 = vsel %vm364, %v356, -inf
    %v374 = vmax.f32 %v367, %v373
    %v375 = vsel %vm364, %v361, -inf
    %v376 = vmax.f32 %v368, %v375
    %v377 = vmax.f32 %v370, %v372
    %v378 = vmax.f32 %v374, %v376
    %v379 = vmax.f32 %v377, %v378
    %v380 = vsub.f32 %v326, %v379
    %v381 = vsub.f32 %v331, %v379
    %v382 = vsub.f32 %v336, %v379
    %v383 = vsub.f32 %v341, %v379
    %v384 = vsub.f32 %v346, %v379
    %v385 = vsub.f32 %v351, %v379
    %v386 = vsub.f32 %v356, %v379
    %v387 = vsub.f32 %v361, %v379
    %v388 = vmul.f32 %v380, 1.442695
    %v389 = vpow.pop %v388
    %v390 = vmul.f32 %v381, 1.442695
    %v391 = vpow.pop %v390
    %v392 = vmul.f32 %v382, 1.442695
    %v393 = vpow.pop %v392
    %v394 = vmul.f32 %v383, 1.442695
    %v395 = vpow.pop %v394
    %v396 = vmul.f32 %v384, 1.442695
    %v397 = vpow.pop %v396
    %v398 = vmul.f32 %v385, 1.442695
    %v399 = vpow.pop %v398
    %v400 = vmul.f32 %v386, 1.442695
    %v401 = vpow.pop %v400
    %v402 = vmul.f32 %v387, 1.442695
    %v403 = vpow.pop %v402
    %v404 = vld [vmem:[%s6] sm:$0xff]
    %v405 = vld [vmem:[%s6 + $0x8] sm:$0xff]
    %v406 = vld [vmem:[%s6 + $0x10] sm:$0xff]
    %v407 = vld [vmem:[%s6 + $0x18] sm:$0xff]
    %v408 = vld [vmem:[%s6 + $0x20] sm:$0xff]
    %v409 = vld [vmem:[%s6 + $0x28] sm:$0xff]
    %v410 = vld [vmem:[%s6 + $0x30] sm:$0xff]
    %v411 = vld [vmem:[%s6 + $0x38] sm:$0xff]
    %v412 = vmul.f32 %v389, %v404
    %v413 = vmul.f32 %v391, %v405
    %v414 = vmul.f32 %v393, %v406
    %v415 = vmul.f32 %v395, %v407
    %v416 = vmul.f32 %v397, %v408
    %v417 = vmul.f32 %v399, %v409
    %v418 = vmul.f32 %v401, %v410
    %v419 = vmul.f32 %v403, %v411
    %v420 = vsel %vm364, %v412, 0.0
    %v421 = vsel %vm364, %v413, 0.0
    %v422 = vadd.f32 %v420, %v421
    %v423 = vsel %vm364, %v414, 0.0
    %v424 = vadd.f32 %v422, %v423
    %v425 = vsel %vm364, %v415, 0.0
    %v426 = vadd.f32 %v424, %v425
    %v427 = vsel %vm364, %v416, 0.0
    %v428 = vadd.f32 %v426, %v427
    %v429 = vsel %vm364, %v417, 0.0
    %v430 = vadd.f32 %v428, %v429
    %v431 = vsel %vm364, %v418, 0.0
    %v432 = vadd.f32 %v430, %v431
    %v433 = vsel %vm364, %v419, 0.0
    %v434 = vadd.f32 %v432, %v433
    %v435 = vld [vmem:[#allocation7] sm:$0xff]
    %v436 = vld [vmem:[#allocation7 + $0x8] sm:$0xff]
    %v437 = vld [vmem:[#allocation7 + $0x10] sm:$0xff]
    %v438 = vld [vmem:[#allocation7 + $0x18] sm:$0xff]
    %v439 = vld [vmem:[#allocation7 + $0x20] sm:$0xff]
    %v440 = vld [vmem:[#allocation7 + $0x28] sm:$0xff]
    %v441 = vld [vmem:[#allocation7 + $0x30] sm:$0xff]
    %v442 = vld [vmem:[#allocation7 + $0x38] sm:$0xff]
    %444 = vset.pattern.permute.xlu0 0
    %445 = vperm.xlu0 %444, %v412
    %v446 = vpop.permute.xlu0 %445
    %449 = vset.pattern.permute.xlu0 0
    %450 = vperm.xlu0 %449, %v413
    %v451 = vpop.permute.xlu0 %450
    %454 = vset.pattern.permute.xlu0 0
    %455 = vperm.xlu0 %454, %v414
    %v456 = vpop.permute.xlu0 %455
    %459 = vset.pattern.permute.xlu0 0
    %460 = vperm.xlu0 %459, %v415
    %v461 = vpop.permute.xlu0 %460
    %464 = vset.pattern.permute.xlu0 0
    %465 = vperm.xlu0 %464, %v416
    %v466 = vpop.permute.xlu0 %465
    %469 = vset.pattern.permute.xlu0 0
    %470 = vperm.xlu0 %469, %v417
    %v471 = vpop.permute.xlu0 %470
    %474 = vset.pattern.permute.xlu0 0
    %475 = vperm.xlu0 %474, %v418
    %v476 = vpop.permute.xlu0 %475
    %479 = vset.pattern.permute.xlu0 0
    %480 = vperm.xlu0 %479, %v419
    %v481 = vpop.permute.xlu0 %480
    %v483 = vmul.f32 %v446, %v435
    %v484 = vmul.f32 %v451, %v436
    %v485 = vmul.f32 %v456, %v437
    %v486 = vmul.f32 %v461, %v438
    %v487 = vmul.f32 %v466, %v439
    %v488 = vmul.f32 %v471, %v440
    %v489 = vmul.f32 %v476, %v441
    %v490 = vmul.f32 %v481, %v442
    %v491 = vsel %vm144, %v483, 0.0
    %v492 = vsel %vm144, %v484, 0.0
    %v493 = vadd.f32 %v491, %v492
    %v494 = vsel %vm144, %v485, 0.0
    %v495 = vadd.f32 %v493, %v494
    %v496 = vsel %vm144, %v486, 0.0
    %v497 = vadd.f32 %v495, %v496
    %v498 = vsel %vm144, %v487, 0.0
    %v499 = vadd.f32 %v497, %v498
    %v500 = vsel %vm144, %v488, 0.0
    %v501 = vadd.f32 %v499, %v500
    %v502 = vsel %vm144, %v489, 0.0
    %v503 = vadd.f32 %v501, %v502
    %v504 = vsel %vm144, %v490, 0.0
    %v505 = vadd.f32 %v503, %v504
    %v506 = vrcp.pop %v434
    %508 = vset.pattern.permute.xlu0 0
    %509 = vperm.xlu0 %508, %v506
    %v510 = vpop.permute.xlu0 %509
    %v512 = vmul.f32 %v505, %v510
    %v513 = vld [vmem:[#allocation10] sm:$0xff]
    %v514 = vld [vmem:[#allocation10 + $0x8] sm:$0xff]
    %v515 = vld [vmem:[#allocation10 + $0x10] sm:$0xff]
    %v516 = vld [vmem:[#allocation10 + $0x18] sm:$0xff]
    %v517 = vld [vmem:[#allocation10 + $0x20] sm:$0xff]
    %v518 = vld [vmem:[#allocation10 + $0x28] sm:$0xff]
    %v519 = vld [vmem:[#allocation10 + $0x30] sm:$0xff]
    %v520 = vld [vmem:[#allocation10 + $0x38] sm:$0xff]
    %v521 = vld [vmem:[#allocation10 + $0x40] sm:$0xff]
    %v522 = vld [vmem:[#allocation10 + $0x48] sm:$0xff]
    %v523 = vld [vmem:[#allocation10 + $0x50] sm:$0xff]
    %v524 = vld [vmem:[#allocation10 + $0x58] sm:$0xff]
    %v526 = vsel %vm144, %v512, 0
    %528 = vmatprep.subr.mxu0 0.0
    %529 = vmatpush1.msra.mxu0 0.0
    %530 = vmatprep.subr.mxu0 0.0
    %531 = vmatpush1.msra.mxu0 0.0
    %532 = vmatprep.subr.mxu0 0.0
    %533 = vmatpush1.msra.mxu0 0.0
    %534 = vmatprep.subr.mxu0 0.0
    %535 = vmatpush1.msra.mxu0 0.0
    %536 = vmatprep.subr.mxu0 0.0
    %537 = vmatpush1.msra.mxu0 0.0
    %538 = vmatprep.subr.mxu0 0.0
    %539 = vmatpush1.msra.mxu0 0.0
    %540 = vmatprep.subr.mxu0 0.0
    %541 = vmatpush1.msra.mxu0 0.0
    %542 = vmatprep.subr.mxu0 0.0
    %543 = vmatpush1.msra.mxu0 0.0
    %544 = vmatprep.subr.mxu0 0.0
    %545 = vmatpush1.msra.mxu0 0.0
    %546 = vmatprep.subr.mxu0 0.0
    %547 = vmatpush1.msra.mxu0 0.0
    %548 = vmatprep.subr.mxu0 0.0
    %549 = vmatpush1.msra.mxu0 0.0
    %550 = vmatprep.subr.mxu0 0.0
    %551 = vmatpush1.msra.mxu0 0.0
    %552 = vmatprep.subr.mxu0 %v523
    %553 = vmatpush1.msra.mxu0 %v522
    %554 = vmatprep.subr.mxu0 %v520
    %555 = vmatpush1.msra.mxu0 %v519
    %556 = vmatprep.subr.mxu0 %v517
    %557 = vmatpush1.msra.mxu0 %v516
    %558 = vmatprep.subr.mxu0 %v514
    %559 = vmatpush1.msra.mxu0 %v513
    %560 = vmatprep.subr.mxu0 0.0
    %561 = vmatpush2.msra.mxu0 0.0
    %562 = vmatprep.subr.mxu0 0.0
    %563 = vmatpush2.msra.mxu0 0.0
    %564 = vmatprep.subr.mxu0 0.0
    %565 = vmatpush2.msra.mxu0 0.0
    %566 = vmatprep.subr.mxu0 0.0
    %567 = vmatpush2.msra.mxu0 0.0
    %568 = vmatprep.subr.mxu0 0.0
    %569 = vmatpush2.msra.mxu0 0.0
    %570 = vmatprep.subr.mxu0 0.0
    %571 = vmatpush2.msra.mxu0 0.0
    %572 = vmatprep.subr.mxu0 0.0
    %573 = vmatpush2.msra.mxu0 0.0
    %574 = vmatprep.subr.mxu0 0.0
    %575 = vmatpush2.msra.mxu0 0.0
    %576 = vmatprep.subr.mxu0 0.0
    %577 = vmatpush2.msra.mxu0 0.0
    %578 = vmatprep.subr.mxu0 0.0
    %579 = vmatpush2.msra.mxu0 0.0
    %580 = vmatprep.subr.mxu0 0.0
    %581 = vmatpush2.msra.mxu0 0.0
    %582 = vmatprep.subr.mxu0 0.0
    %583 = vmatpush2.msra.mxu0 0.0
    %584 = vmatprep.subr.mxu0 0.0
    %585 = vmatpush2.msra.mxu0 0.0
    %586 = vmatprep.subr.mxu0 0.0
    %587 = vmatpush2.msra.mxu0 0.0
    %588 = vmatprep.subr.mxu0 0.0
    %589 = vmatpush2.msra.mxu0 0.0
    %590 = vmatprep.subr.mxu0 0.0
    %591 = vmatpush2.msra.mxu0 0.0
    %592 = vmatprep.mubr.f32.mxu0 0.0
    %593 = vmatmul.mubr.f32.gmra.mxu0 %v526
    %v594 = vpop.f32.mrf.mxu0
    %v595 = vadd.f32 0.0, %v594
    %v596 = vpop.f32.mrf.mxu0
    %v597 = vadd.f32 0.0, %v596
    %598 = vdwg.mxu0
    %599 = vmatprep.subr.mxu0 0.0
    %600 = vmatpush1.msra.mxu0 0.0
    %601 = vmatprep.subr.mxu0 0.0
    %602 = vmatpush1.msra.mxu0 0.0
    %603 = vmatprep.subr.mxu0 0.0
    %604 = vmatpush1.msra.mxu0 0.0
    %605 = vmatprep.subr.mxu0 0.0
    %606 = vmatpush1.msra.mxu0 0.0
    %607 = vmatprep.subr.mxu0 0.0
    %608 = vmatpush1.msra.mxu0 0.0
    %609 = vmatprep.subr.mxu0 0.0
    %610 = vmatpush1.msra.mxu0 0.0
    %611 = vmatprep.subr.mxu0 0.0
    %612 = vmatpush1.msra.mxu0 0.0
    %613 = vmatprep.subr.mxu0 0.0
    %614 = vmatpush1.msra.mxu0 0.0
    %615 = vmatprep.subr.mxu0 0.0
    %616 = vmatpush1.msra.mxu0 0.0
    %617 = vmatprep.subr.mxu0 0.0
    %618 = vmatpush1.msra.mxu0 0.0
    %619 = vmatprep.subr.mxu0 0.0
    %620 = vmatpush1.msra.mxu0 0.0
    %621 = vmatprep.subr.mxu0 0.0
    %622 = vmatpush1.msra.mxu0 0.0
    %623 = vmatprep.subr.mxu0 0.0
    %624 = vmatpush1.msra.mxu0 %v524
    %625 = vmatprep.subr.mxu0 0.0
    %626 = vmatpush1.msra.mxu0 %v521
    %627 = vmatprep.subr.mxu0 0.0
    %628 = vmatpush1.msra.mxu0 %v518
    %629 = vmatprep.subr.mxu0 0.0
    %630 = vmatpush1.msra.mxu0 %v515
    %631 = vmatprep.subr.mxu0 0.0
    %632 = vmatpush2.msra.mxu0 0.0
    %633 = vmatprep.subr.mxu0 0.0
    %634 = vmatpush2.msra.mxu0 0.0
    %635 = vmatprep.subr.mxu0 0.0
    %636 = vmatpush2.msra.mxu0 0.0
    %637 = vmatprep.subr.mxu0 0.0
    %638 = vmatpush2.msra.mxu0 0.0
    %639 = vmatprep.subr.mxu0 0.0
    %640 = vmatpush2.msra.mxu0 0.0
    %641 = vmatprep.subr.mxu0 0.0
    %642 = vmatpush2.msra.mxu0 0.0
    %643 = vmatprep.subr.mxu0 0.0
    %644 = vmatpush2.msra.mxu0 0.0
    %645 = vmatprep.subr.mxu0 0.0
    %646 = vmatpush2.msra.mxu0 0.0
    %647 = vmatprep.subr.mxu0 0.0
    %648 = vmatpush2.msra.mxu0 0.0
    %649 = vmatprep.subr.mxu0 0.0
    %650 = vmatpush2.msra.mxu0 0.0
    %651 = vmatprep.subr.mxu0 0.0
    %652 = vmatpush2.msra.mxu0 0.0
    %653 = vmatprep.subr.mxu0 0.0
    %654 = vmatpush2.msra.mxu0 0.0
    %655 = vmatprep.subr.mxu0 0.0
    %656 = vmatpush2.msra.mxu0 0.0
    %657 = vmatprep.subr.mxu0 0.0
    %658 = vmatpush2.msra.mxu0 0.0
    %659 = vmatprep.subr.mxu0 0.0
    %660 = vmatpush2.msra.mxu0 0.0
    %661 = vmatprep.subr.mxu0 0.0
    %662 = vmatpush2.msra.mxu0 0.0
    %663 = vmatprep.mubr.f32.mxu0 0.0
    %664 = vmatmul.mubr.f32.gmra.mxu0 %v526
    %v665 = vpop.f32.mrf.mxu0
    %v666 = vadd.f32 0.0, %v665
    %v667 = vpop.f32.mrf.mxu0
    %668 = vdwg.mxu0
    %v669 = vld [vmem:[#allocation2] sm:$0xff]
    %v670 = vadd.f32 %v669, %v217
    %v671 = vadd.f32 %v670, %v595
    %v672 = vxor.u32 %v671, 2147483648
    %v673 = vmul.f32 %v672, 1.442695
    %v674 = vpow.pop %v673
    %v675 = vadd.f32 %v674, 1.0
    %v676 = vrcp.pop %v675
    %v677 = vmul.f32 1.0, %v676
    %678 = vrot.lane.b32.xlu0 %v126, 64
    %v679 = vpop.permute.xlu0 %678
    %v681 = vadd.f32 %v217, %v679
    %683 = vrot.lane.b32.xlu0 %v681, 96
    %v684 = vpop.permute.xlu0 %683
    %v686 = vmul.f32 %v677, %v684
    %688 = vrot.lane.b32.xlu0 %v686, 32
    %v689 = vpop.permute.xlu0 %688
    %v691 = vadd.f32 %v669, %v689
    %v692 = vadd.f32 %v691, %v595
    %v693 = vtanh.pop %v692
    %v694 = vld [vmem:[%s2] sm:$0xff]
    %v695 = vsub.f32 1.0, %v677
    %v696 = vmul.f32 %v695, %v127
    %698 = vrot.lane.b32.xlu0 %v693, 64
    %v699 = vpop.permute.xlu0 %698
    %v701 = vmul.f32 %v677, %v699
    %v702 = vadd.f32 %v696, %v701
    %704 = vset.pattern.permute.xlu0 0
    %705 = vperm.xlu0 %704, %v694
    %v706 = vpop.permute.xlu0 %705
    %v708 = vmul.f32 %v706, %v702
    %v709 = vsub.f32 1.0, %v694
    %711 = vset.pattern.permute.xlu0 0
    %712 = vperm.xlu0 %711, %v709
    %v713 = vpop.permute.xlu0 %712
    %v715 = vmul.f32 %v713, %v127
    %v716 = vadd.f32 %v708, %v715
    %v718 = vsel %vm144, %v716, 0
    %720 = vmatprep.subr.mxu0 0.0
    %721 = vmatpush1.msra.mxu0 0.0
    %722 = vmatprep.subr.mxu0 0.0
    %723 = vmatpush1.msra.mxu0 0.0
    %724 = vmatprep.subr.mxu0 0.0
    %725 = vmatpush1.msra.mxu0 0.0
    %726 = vmatprep.subr.mxu0 0.0
    %727 = vmatpush1.msra.mxu0 0.0
    %728 = vmatprep.subr.mxu0 0.0
    %729 = vmatpush1.msra.mxu0 0.0
    %730 = vmatprep.subr.mxu0 0.0
    %731 = vmatpush1.msra.mxu0 0.0
    %732 = vmatprep.subr.mxu0 0.0
    %733 = vmatpush1.msra.mxu0 0.0
    %734 = vmatprep.subr.mxu0 0.0
    %735 = vmatpush1.msra.mxu0 0.0
    %736 = vmatprep.subr.mxu0 0.0
    %737 = vmatpush1.msra.mxu0 0.0
    %738 = vmatprep.subr.mxu0 0.0
    %739 = vmatpush1.msra.mxu0 0.0
    %740 = vmatprep.subr.mxu0 0.0
    %741 = vmatpush1.msra.mxu0 0.0
    %742 = vmatprep.subr.mxu0 0.0
    %743 = vmatpush1.msra.mxu0 0.0
    %744 = vmatprep.subr.mxu0 %v141
    %745 = vmatpush1.msra.mxu0 %v140
    %746 = vmatprep.subr.mxu0 %v137
    %747 = vmatpush1.msra.mxu0 %v136
    %748 = vmatprep.subr.mxu0 %v133
    %749 = vmatpush1.msra.mxu0 %v132
    %750 = vmatprep.subr.mxu0 %v129
    %751 = vmatpush1.msra.mxu0 %v128
    %752 = vmatprep.subr.mxu0 0.0
    %753 = vmatpush2.msra.mxu0 0.0
    %754 = vmatprep.subr.mxu0 0.0
    %755 = vmatpush2.msra.mxu0 0.0
    %756 = vmatprep.subr.mxu0 0.0
    %757 = vmatpush2.msra.mxu0 0.0
    %758 = vmatprep.subr.mxu0 0.0
    %759 = vmatpush2.msra.mxu0 0.0
    %760 = vmatprep.subr.mxu0 0.0
    %761 = vmatpush2.msra.mxu0 0.0
    %762 = vmatprep.subr.mxu0 0.0
    %763 = vmatpush2.msra.mxu0 0.0
    %764 = vmatprep.subr.mxu0 0.0
    %765 = vmatpush2.msra.mxu0 0.0
    %766 = vmatprep.subr.mxu0 0.0
    %767 = vmatpush2.msra.mxu0 0.0
    %768 = vmatprep.subr.mxu0 0.0
    %769 = vmatpush2.msra.mxu0 0.0
    %770 = vmatprep.subr.mxu0 0.0
    %771 = vmatpush2.msra.mxu0 0.0
    %772 = vmatprep.subr.mxu0 0.0
    %773 = vmatpush2.msra.mxu0 0.0
    %774 = vmatprep.subr.mxu0 0.0
    %775 = vmatpush2.msra.mxu0 0.0
    %776 = vmatprep.subr.mxu0 0.0
    %777 = vmatpush2.msra.mxu0 0.0
    %778 = vmatprep.subr.mxu0 0.0
    %779 = vmatpush2.msra.mxu0 0.0
    %780 = vmatprep.subr.mxu0 0.0
    %781 = vmatpush2.msra.mxu0 0.0
    %782 = vmatprep.subr.mxu0 0.0
    %783 = vmatpush2.msra.mxu0 0.0
    %784 = vmatprep.mubr.f32.mxu0 0.0
    %785 = vmatmul.mubr.f32.gmra.mxu0 %v718
    %v786 = vpop.f32.mrf.mxu0
    %v787 = vadd.f32 0.0, %v786
    %v788 = vpop.f32.mrf.mxu0
    %v789 = vadd.f32 0.0, %v788
    %790 = vdwg.mxu0
    %791 = vmatprep.subr.mxu0 0.0
    %792 = vmatpush1.msra.mxu0 0.0
    %793 = vmatprep.subr.mxu0 0.0
    %794 = vmatpush1.msra.mxu0 0.0
    %795 = vmatprep.subr.mxu0 0.0
    %796 = vmatpush1.msra.mxu0 0.0
    %797 = vmatprep.subr.mxu0 0.0
    %798 = vmatpush1.msra.mxu0 0.0
    %799 = vmatprep.subr.mxu0 0.0
    %800 = vmatpush1.msra.mxu0 0.0
    %801 = vmatprep.subr.mxu0 0.0
    %802 = vmatpush1.msra.mxu0 0.0
    %803 = vmatprep.subr.mxu0 0.0
    %804 = vmatpush1.msra.mxu0 0.0
    %805 = vmatprep.subr.mxu0 0.0
    %806 = vmatpush1.msra.mxu0 0.0
    %807 = vmatprep.subr.mxu0 0.0
    %808 = vmatpush1.msra.mxu0 0.0
    %809 = vmatprep.subr.mxu0 0.0
    %810 = vmatpush1.msra.mxu0 0.0
    %811 = vmatprep.subr.mxu0 0.0
    %812 = vmatpush1.msra.mxu0 0.0
    %813 = vmatprep.subr.mxu0 0.0
    %814 = vmatpush1.msra.mxu0 0.0
    %815 = vmatprep.subr.mxu0 %v143
    %816 = vmatpush1.msra.mxu0 %v142
    %817 = vmatprep.subr.mxu0 %v139
    %818 = vmatpush1.msra.mxu0 %v138
    %819 = vmatprep.subr.mxu0 %v135
    %820 = vmatpush1.msra.mxu0 %v134
    %821 = vmatprep.subr.mxu0 %v131
    %822 = vmatpush1.msra.mxu0 %v130
    %823 = vmatprep.subr.mxu0 0.0
    %824 = vmatpush2.msra.mxu0 0.0
    %825 = vmatprep.subr.mxu0 0.0
    %826 = vmatpush2.msra.mxu0 0.0
    %827 = vmatprep.subr.mxu0 0.0
    %828 = vmatpush2.msra.mxu0 0.0
    %829 = vmatprep.subr.mxu0 0.0
    %830 = vmatpush2.msra.mxu0 0.0
    %831 = vmatprep.subr.mxu0 0.0
    %832 = vmatpush2.msra.mxu0 0.0
    %833 = vmatprep.subr.mxu0 0.0
    %834 = vmatpush2.msra.mxu0 0.0
    %835 = vmatprep.subr.mxu0 0.0
    %836 = vmatpush2.msra.mxu0 0.0
    %837 = vmatprep.subr.mxu0 0.0
    %838 = vmatpush2.msra.mxu0 0.0
    %839 = vmatprep.subr.mxu0 0.0
    %840 = vmatpush2.msra.mxu0 0.0
    %841 = vmatprep.subr.mxu0 0.0
    %842 = vmatpush2.msra.mxu0 0.0
    %843 = vmatprep.subr.mxu0 0.0
    %844 = vmatpush2.msra.mxu0 0.0
    %845 = vmatprep.subr.mxu0 0.0
    %846 = vmatpush2.msra.mxu0 0.0
    %847 = vmatprep.subr.mxu0 0.0
    %848 = vmatpush2.msra.mxu0 0.0
    %849 = vmatprep.subr.mxu0 0.0
    %850 = vmatpush2.msra.mxu0 0.0
    %851 = vmatprep.subr.mxu0 0.0
    %852 = vmatpush2.msra.mxu0 0.0
    %853 = vmatprep.subr.mxu0 0.0
    %854 = vmatpush2.msra.mxu0 0.0
    %855 = vmatprep.mubr.f32.mxu0 0.0
    %856 = vmatmul.mubr.f32.gmra.mxu0 %v718
    %v857 = vpop.f32.mrf.mxu0
    %v858 = vadd.f32 0.0, %v857
    %v859 = vpop.f32.mrf.mxu0
    %v860 = vadd.f32 0.0, %v859
    %861 = vdwg.mxu0
    %v862 = vadd.f32 %v787, %v597
    %v863 = vadd.f32 %v789, %v666
    %v864 = vld [vmem:[#allocation5] sm:$0xff]
    %v865 = vld [vmem:[#allocation5 + $0x8] sm:$0xff]
    %v866 = vadd.f32 %v862, %v864
    %v867 = vadd.f32 %v863, %v865
    %v868 = vmax.f32 %v866, %v867
    %v869 = vmul.f32 %v868, %v706
    %870 = vst [vmem:[#allocation13] sm:$0xff] %v869
    %v871 = vld [vmem:[#allocation8] sm:$0xff]
    %v872 = vld [vmem:[#allocation8 + $0x8] sm:$0xff]
    %v873 = vld [vmem:[#allocation8 + $0x10] sm:$0xff]
    %v874 = vld [vmem:[#allocation8 + $0x18] sm:$0xff]
    %v875 = vld [vmem:[#allocation8 + $0x20] sm:$0xff]
    %v876 = vld [vmem:[#allocation8 + $0x28] sm:$0xff]
    %v877 = vld [vmem:[#allocation8 + $0x30] sm:$0xff]
    %v878 = vld [vmem:[#allocation8 + $0x38] sm:$0xff]
    %v879 = vadd.f32 %v858, %v871
    %v880 = vadd.f32 %v858, %v872
    %v881 = vadd.f32 %v858, %v873
    %v882 = vadd.f32 %v858, %v874
    %v883 = vadd.f32 %v858, %v875
    %v884 = vadd.f32 %v858, %v876
    %v885 = vadd.f32 %v858, %v877
    %v886 = vadd.f32 %v858, %v878
    %v887 = vtanh.pop %v879
    %v888 = vtanh.pop %v880
    %v889 = vtanh.pop %v881
    %v890 = vtanh.pop %v882
    %v891 = vtanh.pop %v883
    %v892 = vtanh.pop %v884
    %v893 = vtanh.pop %v885
    %v894 = vtanh.pop %v886
    %v895 = vld [vmem:[#allocation11] sm:$0xff]
    %v896 = vld [vmem:[#allocation11 + $0x8] sm:$0xff]
    %v897 = vld [vmem:[#allocation11 + $0x10] sm:$0xff]
    %v898 = vld [vmem:[#allocation11 + $0x18] sm:$0xff]
    %v899 = vld [vmem:[#allocation11 + $0x20] sm:$0xff]
    %v900 = vld [vmem:[#allocation11 + $0x28] sm:$0xff]
    %v901 = vld [vmem:[#allocation11 + $0x30] sm:$0xff]
    %v902 = vld [vmem:[#allocation11 + $0x38] sm:$0xff]
    %v903 = vld [vmem:[#allocation11 + $0x40] sm:$0xff]
    %v904 = vld [vmem:[#allocation11 + $0x48] sm:$0xff]
    %v905 = vld [vmem:[#allocation11 + $0x50] sm:$0xff]
    %v906 = vld [vmem:[#allocation11 + $0x58] sm:$0xff]
    %v907 = vld [vmem:[#allocation11 + $0x60] sm:$0xff]
    %v908 = vld [vmem:[#allocation11 + $0x68] sm:$0xff]
    %v909 = vld [vmem:[#allocation11 + $0x70] sm:$0xff]
    %v910 = vld [vmem:[#allocation11 + $0x78] sm:$0xff]
    %911 = vmatprep.subr.mxu0 0.0
    %912 = vmatpush1.msra.mxu0 %v910
    %913 = vmatprep.subr.mxu0 0.0
    %914 = vmatpush1.msra.mxu0 %v909
    %915 = vmatprep.subr.mxu0 0.0
    %916 = vmatpush1.msra.mxu0 %v908
    %917 = vmatprep.subr.mxu0 0.0
    %918 = vmatpush1.msra.mxu0 %v907
    %919 = vmatprep.subr.mxu0 0.0
    %920 = vmatpush1.msra.mxu0 %v906
    %921 = vmatprep.subr.mxu0 0.0
    %922 = vmatpush1.msra.mxu0 %v905
    %923 = vmatprep.subr.mxu0 0.0
    %924 = vmatpush1.msra.mxu0 %v904
    %925 = vmatprep.subr.mxu0 0.0
    %926 = vmatpush1.msra.mxu0 %v903
    %927 = vmatprep.subr.mxu0 0.0
    %928 = vmatpush1.msra.mxu0 %v902
    %929 = vmatprep.subr.mxu0 0.0
    %930 = vmatpush1.msra.mxu0 %v901
    %931 = vmatprep.subr.mxu0 0.0
    %932 = vmatpush1.msra.mxu0 %v900
    %933 = vmatprep.subr.mxu0 0.0
    %934 = vmatpush1.msra.mxu0 %v899
    %935 = vmatprep.subr.mxu0 0.0
    %936 = vmatpush1.msra.mxu0 %v898
    %937 = vmatprep.subr.mxu0 0.0
    %938 = vmatpush1.msra.mxu0 %v897
    %939 = vmatprep.subr.mxu0 0.0
    %940 = vmatpush1.msra.mxu0 %v896
    %941 = vmatprep.subr.mxu0 0.0
    %942 = vmatpush1.msra.mxu0 %v895
    %943 = vmatprep.subr.mxu0 0.0
    %944 = vmatpush2.msra.mxu0 0.0
    %945 = vmatprep.subr.mxu0 0.0
    %946 = vmatpush2.msra.mxu0 0.0
    %947 = vmatprep.subr.mxu0 0.0
    %948 = vmatpush2.msra.mxu0 0.0
    %949 = vmatprep.subr.mxu0 0.0
    %950 = vmatpush2.msra.mxu0 0.0
    %951 = vmatprep.subr.mxu0 0.0
    %952 = vmatpush2.msra.mxu0 0.0
    %953 = vmatprep.subr.mxu0 0.0
    %954 = vmatpush2.msra.mxu0 0.0
    %955 = vmatprep.subr.mxu0 0.0
    %956 = vmatpush2.msra.mxu0 0.0
    %957 = vmatprep.subr.mxu0 0.0
    %958 = vmatpush2.msra.mxu0 0.0
    %959 = vmatprep.subr.mxu0 0.0
    %960 = vmatpush2.msra.mxu0 0.0
    %961 = vmatprep.subr.mxu0 0.0
    %962 = vmatpush2.msra.mxu0 0.0
    %963 = vmatprep.subr.mxu0 0.0
    %964 = vmatpush2.msra.mxu0 0.0
    %965 = vmatprep.subr.mxu0 0.0
    %966 = vmatpush2.msra.mxu0 0.0
    %967 = vmatprep.subr.mxu0 0.0
    %968 = vmatpush2.msra.mxu0 0.0
    %969 = vmatprep.subr.mxu0 0.0
    %970 = vmatpush2.msra.mxu0 0.0
    %971 = vmatprep.subr.mxu0 0.0
    %972 = vmatpush2.msra.mxu0 0.0
    %973 = vmatprep.subr.mxu0 0.0
    %974 = vmatpush2.msra.mxu0 0.0
    %975 = vmatprep.mubr.f32.mxu0 0.0
    %976 = vmatmul.mubr.f32.gmra.mxu0 %v887
    %v977 = vpop.f32.mrf.mxu0
    %v978 = vadd.f32 0.0, %v977
    %v979 = vpop.f32.mrf.mxu0
    %980 = vmatprep.mubr.f32.mxu0 0.0
    %981 = vmatmul.mubr.f32.gmra.mxu0 %v888
    %v982 = vpop.f32.mrf.mxu0
    %v983 = vadd.f32 0.0, %v982
    %v984 = vpop.f32.mrf.mxu0
    %985 = vmatprep.mubr.f32.mxu0 0.0
    %986 = vmatmul.mubr.f32.gmra.mxu0 %v889
    %v987 = vpop.f32.mrf.mxu0
    %v988 = vadd.f32 0.0, %v987
    %v989 = vpop.f32.mrf.mxu0
    %990 = vmatprep.mubr.f32.mxu0 0.0
    %991 = vmatmul.mubr.f32.gmra.mxu0 %v890
    %v992 = vpop.f32.mrf.mxu0
    %v993 = vadd.f32 0.0, %v992
    %v994 = vpop.f32.mrf.mxu0
    %995 = vmatprep.mubr.f32.mxu0 0.0
    %996 = vmatmul.mubr.f32.gmra.mxu0 %v891
    %v997 = vpop.f32.mrf.mxu0
    %v998 = vadd.f32 0.0, %v997
    %v999 = vpop.f32.mrf.mxu0
    %1000 = vmatprep.mubr.f32.mxu0 0.0
    %1001 = vmatmul.mubr.f32.gmra.mxu0 %v892
    %v1002 = vpop.f32.mrf.mxu0
    %v1003 = vadd.f32 0.0, %v1002
    %v1004 = vpop.f32.mrf.mxu0
    %1005 = vmatprep.mubr.f32.mxu0 0.0
    %1006 = vmatmul.mubr.f32.gmra.mxu0 %v893
    %v1007 = vpop.f32.mrf.mxu0
    %v1008 = vadd.f32 0.0, %v1007
    %v1009 = vpop.f32.mrf.mxu0
    %1010 = vmatprep.mubr.f32.mxu0 0.0
    %1011 = vmatmul.mubr.f32.gmra.mxu0 %v894
    %v1012 = vpop.f32.mrf.mxu0
    %v1013 = vadd.f32 0.0, %v1012
    %v1014 = vpop.f32.mrf.mxu0
    %1015 = vdwg.mxu0
    %v1016 = vsel %vm364, %v978, -inf
    %v1017 = vsel %vm364, %v983, -inf
    %v1018 = vsel %vm364, %v988, -inf
    %v1019 = vsel %vm364, %v993, -inf
    %v1020 = vsel %vm364, %v998, -inf
    %v1021 = vmax.f32 %v1016, %v1020
    %v1022 = vsel %vm364, %v1003, -inf
    %v1023 = vmax.f32 %v1017, %v1022
    %v1024 = vsel %vm364, %v1008, -inf
    %v1025 = vmax.f32 %v1018, %v1024
    %v1026 = vsel %vm364, %v1013, -inf
    %v1027 = vmax.f32 %v1019, %v1026
    %v1028 = vmax.f32 %v1021, %v1023
    %v1029 = vmax.f32 %v1025, %v1027
    %v1030 = vmax.f32 %v1028, %v1029
    %v1031 = vsub.f32 %v978, %v1030
    %v1032 = vsub.f32 %v983, %v1030
    %v1033 = vsub.f32 %v988, %v1030
    %v1034 = vsub.f32 %v993, %v1030
    %v1035 = vsub.f32 %v998, %v1030
    %v1036 = vsub.f32 %v1003, %v1030
    %v1037 = vsub.f32 %v1008, %v1030
    %v1038 = vsub.f32 %v1013, %v1030
    %v1039 = vmul.f32 %v1031, 1.442695
    %v1040 = vpow.pop %v1039
    %v1041 = vmul.f32 %v1032, 1.442695
    %v1042 = vpow.pop %v1041
    %v1043 = vmul.f32 %v1033, 1.442695
    %v1044 = vpow.pop %v1043
    %v1045 = vmul.f32 %v1034, 1.442695
    %v1046 = vpow.pop %v1045
    %v1047 = vmul.f32 %v1035, 1.442695
    %v1048 = vpow.pop %v1047
    %v1049 = vmul.f32 %v1036, 1.442695
    %v1050 = vpow.pop %v1049
    %v1051 = vmul.f32 %v1037, 1.442695
    %v1052 = vpow.pop %v1051
    %v1053 = vmul.f32 %v1038, 1.442695
    %v1054 = vpow.pop %v1053
    %v1055 = vld [vmem:[%s6] sm:$0xff]
    %v1056 = vld [vmem:[%s6 + $0x8] sm:$0xff]
    %v1057 = vld [vmem:[%s6 + $0x10] sm:$0xff]
    %v1058 = vld [vmem:[%s6 + $0x18] sm:$0xff]
    %v1059 = vld [vmem:[%s6 + $0x20] sm:$0xff]
    %v1060 = vld [vmem:[%s6 + $0x28] sm:$0xff]
    %v1061 = vld [vmem:[%s6 + $0x30] sm:$0xff]
    %v1062 = vld [vmem:[%s6 + $0x38] sm:$0xff]
    %v1063 = vmul.f32 %v1040, %v1055
    %v1064 = vmul.f32 %v1042, %v1056
    %v1065 = vmul.f32 %v1044, %v1057
    %v1066 = vmul.f32 %v1046, %v1058
    %v1067 = vmul.f32 %v1048, %v1059
    %v1068 = vmul.f32 %v1050, %v1060
    %v1069 = vmul.f32 %v1052, %v1061
    %v1070 = vmul.f32 %v1054, %v1062
    %v1071 = vsel %vm364, %v1063, 0.0
    %v1072 = vsel %vm364, %v1064, 0.0
    %v1073 = vadd.f32 %v1071, %v1072
    %v1074 = vsel %vm364, %v1065, 0.0
    %v1075 = vadd.f32 %v1073, %v1074
    %v1076 = vsel %vm364, %v1066, 0.0
    %v1077 = vadd.f32 %v1075, %v1076
    %v1078 = vsel %vm364, %v1067, 0.0
    %v1079 = vadd.f32 %v1077, %v1078
    %v1080 = vsel %vm364, %v1068, 0.0
    %v1081 = vadd.f32 %v1079, %v1080
    %v1082 = vsel %vm364, %v1069, 0.0
    %v1083 = vadd.f32 %v1081, %v1082
    %v1084 = vsel %vm364, %v1070, 0.0
    %v1085 = vadd.f32 %v1083, %v1084
    %v1086 = vld [vmem:[#allocation7] sm:$0xff]
    %v1087 = vld [vmem:[#allocation7 + $0x8] sm:$0xff]
    %v1088 = vld [vmem:[#allocation7 + $0x10] sm:$0xff]
    %v1089 = vld [vmem:[#allocation7 + $0x18] sm:$0xff]
    %v1090 = vld [vmem:[#allocation7 + $0x20] sm:$0xff]
    %v1091 = vld [vmem:[#allocation7 + $0x28] sm:$0xff]
    %v1092 = vld [vmem:[#allocation7 + $0x30] sm:$0xff]
    %v1093 = vld [vmem:[#allocation7 + $0x38] sm:$0xff]
    %1095 = vset.pattern.permute.xlu0 0
    %1096 = vperm.xlu0 %1095, %v1063
    %v1097 = vpop.permute.xlu0 %1096
    %1100 = vset.pattern.permute.xlu0 0
    %1101 = vperm.xlu0 %1100, %v1064
    %v1102 = vpop.permute.xlu0 %1101
    %1105 = vset.pattern.permute.xlu0 0
    %1106 = vperm.xlu0 %1105, %v1065
    %v1107 = vpop.permute.xlu0 %1106
    %1110 = vset.pattern.permute.xlu0 0
    %1111 = vperm.xlu0 %1110, %v1066
    %v1112 = vpop.permute.xlu0 %1111
    %1115 = vset.pattern.permute.xlu0 0
    %1116 = vperm.xlu0 %1115, %v1067
    %v1117 = vpop.permute.xlu0 %1116
    %1120 = vset.pattern.permute.xlu0 0
    %1121 = vperm.xlu0 %1120, %v1068
    %v1122 = vpop.permute.xlu0 %1121
    %1125 = vset.pattern.permute.xlu0 0
    %1126 = vperm.xlu0 %1125, %v1069
    %v1127 = vpop.permute.xlu0 %1126
    %1130 = vset.pattern.permute.xlu0 0
    %1131 = vperm.xlu0 %1130, %v1070
    %v1132 = vpop.permute.xlu0 %1131
    %v1134 = vmul.f32 %v1097, %v1086
    %v1135 = vmul.f32 %v1102, %v1087
    %v1136 = vmul.f32 %v1107, %v1088
    %v1137 = vmul.f32 %v1112, %v1089
    %v1138 = vmul.f32 %v1117, %v1090
    %v1139 = vmul.f32 %v1122, %v1091
    %v1140 = vmul.f32 %v1127, %v1092
    %v1141 = vmul.f32 %v1132, %v1093
    %v1142 = vsel %vm144, %v1134, 0.0
    %v1143 = vsel %vm144, %v1135, 0.0
    %v1144 = vadd.f32 %v1142, %v1143
    %v1145 = vsel %vm144, %v1136, 0.0
    %v1146 = vadd.f32 %v1144, %v1145
    %v1147 = vsel %vm144, %v1137, 0.0
    %v1148 = vadd.f32 %v1146, %v1147
    %v1149 = vsel %vm144, %v1138, 0.0
    %v1150 = vadd.f32 %v1148, %v1149
    %v1151 = vsel %vm144, %v1139, 0.0
    %v1152 = vadd.f32 %v1150, %v1151
    %v1153 = vsel %vm144, %v1140, 0.0
    %v1154 = vadd.f32 %v1152, %v1153
    %v1155 = vsel %vm144, %v1141, 0.0
    %v1156 = vadd.f32 %v1154, %v1155
    %v1157 = vrcp.pop %v1085
    %1159 = vset.pattern.permute.xlu0 0
    %1160 = vperm.xlu0 %1159, %v1157
    %v1161 = vpop.permute.xlu0 %1160
    %v1163 = vmul.f32 %v1156, %v1161
    %v1164 = vld [vmem:[#allocation10] sm:$0xff]
    %v1165 = vld [vmem:[#allocation10 + $0x8] sm:$0xff]
    %v1166 = vld [vmem:[#allocation10 + $0x10] sm:$0xff]
    %v1167 = vld [vmem:[#allocation10 + $0x18] sm:$0xff]
    %v1168 = vld [vmem:[#allocation10 + $0x20] sm:$0xff]
    %v1169 = vld [vmem:[#allocation10 + $0x28] sm:$0xff]
    %v1170 = vld [vmem:[#allocation10 + $0x30] sm:$0xff]
    %v1171 = vld [vmem:[#allocation10 + $0x38] sm:$0xff]
    %v1172 = vld [vmem:[#allocation10 + $0x40] sm:$0xff]
    %v1173 = vld [vmem:[#allocation10 + $0x48] sm:$0xff]
    %v1174 = vld [vmem:[#allocation10 + $0x50] sm:$0xff]
    %v1175 = vld [vmem:[#allocation10 + $0x58] sm:$0xff]
    %v1177 = vsel %vm144, %v1163, 0
    %1179 = vmatprep.subr.mxu0 0.0
    %1180 = vmatpush1.msra.mxu0 0.0
    %1181 = vmatprep.subr.mxu0 0.0
    %1182 = vmatpush1.msra.mxu0 0.0
    %1183 = vmatprep.subr.mxu0 0.0
    %1184 = vmatpush1.msra.mxu0 0.0
    %1185 = vmatprep.subr.mxu0 0.0
    %1186 = vmatpush1.msra.mxu0 0.0
    %1187 = vmatprep.subr.mxu0 0.0
    %1188 = vmatpush1.msra.mxu0 0.0
    %1189 = vmatprep.subr.mxu0 0.0
    %1190 = vmatpush1.msra.mxu0 0.0
    %1191 = vmatprep.subr.mxu0 0.0
    %1192 = vmatpush1.msra.mxu0 0.0
    %1193 = vmatprep.subr.mxu0 0.0
    %1194 = vmatpush1.msra.mxu0 0.0
    %1195 = vmatprep.subr.mxu0 0.0
    %1196 = vmatpush1.msra.mxu0 0.0
    %1197 = vmatprep.subr.mxu0 0.0
    %1198 = vmatpush1.msra.mxu0 0.0
    %1199 = vmatprep.subr.mxu0 0.0
    %1200 = vmatpush1.msra.mxu0 0.0
    %1201 = vmatprep.subr.mxu0 0.0
    %1202 = vmatpush1.msra.mxu0 0.0
    %1203 = vmatprep.subr.mxu0 %v1174
    %1204 = vmatpush1.msra.mxu0 %v1173
    %1205 = vmatprep.subr.mxu0 %v1171
    %1206 = vmatpush1.msra.mxu0 %v1170
    %1207 = vmatprep.subr.mxu0 %v1168
    %1208 = vmatpush1.msra.mxu0 %v1167
    %1209 = vmatprep.subr.mxu0 %v1165
    %1210 = vmatpush1.msra.mxu0 %v1164
    %1211 = vmatprep.subr.mxu0 0.0
    %1212 = vmatpush2.msra.mxu0 0.0
    %1213 = vmatprep.subr.mxu0 0.0
    %1214 = vmatpush2.msra.mxu0 0.0
    %1215 = vmatprep.subr.mxu0 0.0
    %1216 = vmatpush2.msra.mxu0 0.0
    %1217 = vmatprep.subr.mxu0 0.0
    %1218 = vmatpush2.msra.mxu0 0.0
    %1219 = vmatprep.subr.mxu0 0.0
    %1220 = vmatpush2.msra.mxu0 0.0
    %1221 = vmatprep.subr.mxu0 0.0
    %1222 = vmatpush2.msra.mxu0 0.0
    %1223 = vmatprep.subr.mxu0 0.0
    %1224 = vmatpush2.msra.mxu0 0.0
    %1225 = vmatprep.subr.mxu0 0.0
    %1226 = vmatpush2.msra.mxu0 0.0
    %1227 = vmatprep.subr.mxu0 0.0
    %1228 = vmatpush2.msra.mxu0 0.0
    %1229 = vmatprep.subr.mxu0 0.0
    %1230 = vmatpush2.msra.mxu0 0.0
    %1231 = vmatprep.subr.mxu0 0.0
    %1232 = vmatpush2.msra.mxu0 0.0
    %1233 = vmatprep.subr.mxu0 0.0
    %1234 = vmatpush2.msra.mxu0 0.0
    %1235 = vmatprep.subr.mxu0 0.0
    %1236 = vmatpush2.msra.mxu0 0.0
    %1237 = vmatprep.subr.mxu0 0.0
    %1238 = vmatpush2.msra.mxu0 0.0
    %1239 = vmatprep.subr.mxu0 0.0
    %1240 = vmatpush2.msra.mxu0 0.0
    %1241 = vmatprep.subr.mxu0 0.0
    %1242 = vmatpush2.msra.mxu0 0.0
    %1243 = vmatprep.mubr.f32.mxu0 0.0
    %1244 = vmatmul.mubr.f32.gmra.mxu0 %v1177
    %v1245 = vpop.f32.mrf.mxu0
    %v1246 = vadd.f32 0.0, %v1245
    %v1247 = vpop.f32.mrf.mxu0
    %v1248 = vadd.f32 0.0, %v1247
    %1249 = vdwg.mxu0
    %1250 = vmatprep.subr.mxu0 0.0
    %1251 = vmatpush1.msra.mxu0 0.0
    %1252 = vmatprep.subr.mxu0 0.0
    %1253 = vmatpush1.msra.mxu0 0.0
    %1254 = vmatprep.subr.mxu0 0.0
    %1255 = vmatpush1.msra.mxu0 0.0
    %1256 = vmatprep.subr.mxu0 0.0
    %1257 = vmatpush1.msra.mxu0 0.0
    %1258 = vmatprep.subr.mxu0 0.0
    %1259 = vmatpush1.msra.mxu0 0.0
    %1260 = vmatprep.subr.mxu0 0.0
    %1261 = vmatpush1.msra.mxu0 0.0
    %1262 = vmatprep.subr.mxu0 0.0
    %1263 = vmatpush1.msra.mxu0 0.0
    %1264 = vmatprep.subr.mxu0 0.0
    %1265 = vmatpush1.msra.mxu0 0.0
    %1266 = vmatprep.subr.mxu0 0.0
    %1267 = vmatpush1.msra.mxu0 0.0
    %1268 = vmatprep.subr.mxu0 0.0
    %1269 = vmatpush1.msra.mxu0 0.0
    %1270 = vmatprep.subr.mxu0 0.0
    %1271 = vmatpush1.msra.mxu0 0.0
    %1272 = vmatprep.subr.mxu0 0.0
    %1273 = vmatpush1.msra.mxu0 0.0
    %1274 = vmatprep.subr.mxu0 0.0
    %1275 = vmatpush1.msra.mxu0 %v1175
    %1276 = vmatprep.subr.mxu0 0.0
    %1277 = vmatpush1.msra.mxu0 %v1172
    %1278 = vmatprep.subr.mxu0 0.0
    %1279 = vmatpush1.msra.mxu0 %v1169
    %1280 = vmatprep.subr.mxu0 0.0
    %1281 = vmatpush1.msra.mxu0 %v1166
    %1282 = vmatprep.subr.mxu0 0.0
    %1283 = vmatpush2.msra.mxu0 0.0
    %1284 = vmatprep.subr.mxu0 0.0
    %1285 = vmatpush2.msra.mxu0 0.0
    %1286 = vmatprep.subr.mxu0 0.0
    %1287 = vmatpush2.msra.mxu0 0.0
    %1288 = vmatprep.subr.mxu0 0.0
    %1289 = vmatpush2.msra.mxu0 0.0
    %1290 = vmatprep.subr.mxu0 0.0
    %1291 = vmatpush2.msra.mxu0 0.0
    %1292 = vmatprep.subr.mxu0 0.0
    %1293 = vmatpush2.msra.mxu0 0.0
    %1294 = vmatprep.subr.mxu0 0.0
    %1295 = vmatpush2.msra.mxu0 0.0
    %1296 = vmatprep.subr.mxu0 0.0
    %1297 = vmatpush2.msra.mxu0 0.0
    %1298 = vmatprep.subr.mxu0 0.0
    %1299 = vmatpush2.msra.mxu0 0.0
    %1300 = vmatprep.subr.mxu0 0.0
    %1301 = vmatpush2.msra.mxu0 0.0
    %1302 = vmatprep.subr.mxu0 0.0
    %1303 = vmatpush2.msra.mxu0 0.0
    %1304 = vmatprep.subr.mxu0 0.0
    %1305 = vmatpush2.msra.mxu0 0.0
    %1306 = vmatprep.subr.mxu0 0.0
    %1307 = vmatpush2.msra.mxu0 0.0
    %1308 = vmatprep.subr.mxu0 0.0
    %1309 = vmatpush2.msra.mxu0 0.0
    %1310 = vmatprep.subr.mxu0 0.0
    %1311 = vmatpush2.msra.mxu0 0.0
    %1312 = vmatprep.subr.mxu0 0.0
    %1313 = vmatpush2.msra.mxu0 0.0
    %1314 = vmatprep.mubr.f32.mxu0 0.0
    %1315 = vmatmul.mubr.f32.gmra.mxu0 %v1177
    %v1316 = vpop.f32.mrf.mxu0
    %v1317 = vadd.f32 0.0, %v1316
    %v1318 = vpop.f32.mrf.mxu0
    %1319 = vdwg.mxu0
    %s1320 = scalar_lea.vmem [#allocation2], 8
    %v1321 = vld [vmem:[%s1320] sm:$0xff]
    %v1322 = vadd.f32 %v1321, %v860
    %v1323 = vadd.f32 %v1322, %v1246
    %v1324 = vxor.u32 %v1323, 2147483648
    %v1325 = vmul.f32 %v1324, 1.442695
    %v1326 = vpow.pop %v1325
    %v1327 = vadd.f32 %v1326, 1.0
    %v1328 = vrcp.pop %v1327
    %v1329 = vmul.f32 1.0, %v1328
    %v1330 = vadd.f32 %v860, %v679
    %1332 = vrot.lane.b32.xlu0 %v1330, 96
    %v1333 = vpop.permute.xlu0 %1332
    %v1335 = vmul.f32 %v1329, %v1333
    %1337 = vrot.lane.b32.xlu0 %v1335, 32
    %v1338 = vpop.permute.xlu0 %1337
    %v1340 = vadd.f32 %v1321, %v1338
    %v1341 = vadd.f32 %v1340, %v1246
    %v1342 = vtanh.pop %v1341
    %s1343 = scalar_lea.vmem %s2, 8
    %v1344 = vld [vmem:[%s1343] sm:$0xff]
    %v1345 = vsub.f32 1.0, %v1329
    %v1346 = vmul.f32 %v1345, %v716
    %1348 = vrot.lane.b32.xlu0 %v1342, 64
    %v1349 = vpop.permute.xlu0 %1348
    %v1351 = vmul.f32 %v1329, %v1349
    %v1352 = vadd.f32 %v1346, %v1351
    %1354 = vset.pattern.permute.xlu0 0
    %1355 = vperm.xlu0 %1354, %v1344
    %v1356 = vpop.permute.xlu0 %1355
    %v1358 = vmul.f32 %v1356, %v1352
    %v1359 = vsub.f32 1.0, %v1344
    %1361 = vset.pattern.permute.xlu0 0
    %1362 = vperm.xlu0 %1361, %v1359
    %v1363 = vpop.permute.xlu0 %1362
    %v1365 = vmul.f32 %v1363, %v716
    %v1366 = vadd.f32 %v1358, %v1365
    %v1367 = vld [vmem:[%s7] sm:$0xff]
    %v1368 = vld [vmem:[%s7 + $0x8] sm:$0xff]
    %v1369 = vld [vmem:[%s7 + $0x10] sm:$0xff]
    %v1370 = vld [vmem:[%s7 + $0x18] sm:$0xff]
    %v1371 = vld [vmem:[%s7 + $0x20] sm:$0xff]
    %v1372 = vld [vmem:[%s7 + $0x28] sm:$0xff]
    %v1373 = vld [vmem:[%s7 + $0x30] sm:$0xff]
    %v1374 = vld [vmem:[%s7 + $0x38] sm:$0xff]
    %v1375 = vld [vmem:[%s7 + $0x40] sm:$0xff]
    %v1376 = vld [vmem:[%s7 + $0x48] sm:$0xff]
    %v1377 = vld [vmem:[%s7 + $0x50] sm:$0xff]
    %v1378 = vld [vmem:[%s7 + $0x58] sm:$0xff]
    %v1379 = vld [vmem:[%s7 + $0x60] sm:$0xff]
    %v1380 = vld [vmem:[%s7 + $0x68] sm:$0xff]
    %v1381 = vld [vmem:[%s7 + $0x70] sm:$0xff]
    %v1382 = vld [vmem:[%s7 + $0x78] sm:$0xff]
    %v1384 = vsel %vm144, %v1366, 0
    %1386 = vmatprep.subr.mxu0 0.0
    %1387 = vmatpush1.msra.mxu0 0.0
    %1388 = vmatprep.subr.mxu0 0.0
    %1389 = vmatpush1.msra.mxu0 0.0
    %1390 = vmatprep.subr.mxu0 0.0
    %1391 = vmatpush1.msra.mxu0 0.0
    %1392 = vmatprep.subr.mxu0 0.0
    %1393 = vmatpush1.msra.mxu0 0.0
    %1394 = vmatprep.subr.mxu0 0.0
    %1395 = vmatpush1.msra.mxu0 0.0
    %1396 = vmatprep.subr.mxu0 0.0
    %1397 = vmatpush1.msra.mxu0 0.0
    %1398 = vmatprep.subr.mxu0 0.0
    %1399 = vmatpush1.msra.mxu0 0.0
    %1400 = vmatprep.subr.mxu0 0.0
    %1401 = vmatpush1.msra.mxu0 0.0
    %1402 = vmatprep.subr.mxu0 0.0
    %1403 = vmatpush1.msra.mxu0 0.0
    %1404 = vmatprep.subr.mxu0 0.0
    %1405 = vmatpush1.msra.mxu0 0.0
    %1406 = vmatprep.subr.mxu0 0.0
    %1407 = vmatpush1.msra.mxu0 0.0
    %1408 = vmatprep.subr.mxu0 0.0
    %1409 = vmatpush1.msra.mxu0 0.0
    %1410 = vmatprep.subr.mxu0 %v1380
    %1411 = vmatpush1.msra.mxu0 %v1379
    %1412 = vmatprep.subr.mxu0 %v1376
    %1413 = vmatpush1.msra.mxu0 %v1375
    %1414 = vmatprep.subr.mxu0 %v1372
    %1415 = vmatpush1.msra.mxu0 %v1371
    %1416 = vmatprep.subr.mxu0 %v1368
    %1417 = vmatpush1.msra.mxu0 %v1367
    %1418 = vmatprep.subr.mxu0 0.0
    %1419 = vmatpush2.msra.mxu0 0.0
    %1420 = vmatprep.subr.mxu0 0.0
    %1421 = vmatpush2.msra.mxu0 0.0
    %1422 = vmatprep.subr.mxu0 0.0
    %1423 = vmatpush2.msra.mxu0 0.0
    %1424 = vmatprep.subr.mxu0 0.0
    %1425 = vmatpush2.msra.mxu0 0.0
    %1426 = vmatprep.subr.mxu0 0.0
    %1427 = vmatpush2.msra.mxu0 0.0
    %1428 = vmatprep.subr.mxu0 0.0
    %1429 = vmatpush2.msra.mxu0 0.0
    %1430 = vmatprep.subr.mxu0 0.0
    %1431 = vmatpush2.msra.mxu0 0.0
    %1432 = vmatprep.subr.mxu0 0.0
    %1433 = vmatpush2.msra.mxu0 0.0
    %1434 = vmatprep.subr.mxu0 0.0
    %1435 = vmatpush2.msra.mxu0 0.0
    %1436 = vmatprep.subr.mxu0 0.0
    %1437 = vmatpush2.msra.mxu0 0.0
    %1438 = vmatprep.subr.mxu0 0.0
    %1439 = vmatpush2.msra.mxu0 0.0
    %1440 = vmatprep.subr.mxu0 0.0
    %1441 = vmatpush2.msra.mxu0 0.0
    %1442 = vmatprep.subr.mxu0 0.0
    %1443 = vmatpush2.msra.mxu0 0.0
    %1444 = vmatprep.subr.mxu0 0.0
    %1445 = vmatpush2.msra.mxu0 0.0
    %1446 = vmatprep.subr.mxu0 0.0
    %1447 = vmatpush2.msra.mxu0 0.0
    %1448 = vmatprep.subr.mxu0 0.0
    %1449 = vmatpush2.msra.mxu0 0.0
    %1450 = vmatprep.mubr.f32.mxu0 0.0
    %1451 = vmatmul.mubr.f32.gmra.mxu0 %v1384
    %v1452 = vpop.f32.mrf.mxu0
    %v1453 = vadd.f32 0.0, %v1452
    %v1454 = vpop.f32.mrf.mxu0
    %v1455 = vadd.f32 0.0, %v1454
    %1456 = vdwg.mxu0
    %1457 = vmatprep.subr.mxu0 0.0
    %1458 = vmatpush1.msra.mxu0 0.0
    %1459 = vmatprep.subr.mxu0 0.0
    %1460 = vmatpush1.msra.mxu0 0.0
    %1461 = vmatprep.subr.mxu0 0.0
    %1462 = vmatpush1.msra.mxu0 0.0
    %1463 = vmatprep.subr.mxu0 0.0
    %1464 = vmatpush1.msra.mxu0 0.0
    %1465 = vmatprep.subr.mxu0 0.0
    %1466 = vmatpush1.msra.mxu0 0.0
    %1467 = vmatprep.subr.mxu0 0.0
    %1468 = vmatpush1.msra.mxu0 0.0
    %1469 = vmatprep.subr.mxu0 0.0
    %1470 = vmatpush1.msra.mxu0 0.0
    %1471 = vmatprep.subr.mxu0 0.0
    %1472 = vmatpush1.msra.mxu0 0.0
    %1473 = vmatprep.subr.mxu0 0.0
    %1474 = vmatpush1.msra.mxu0 0.0
    %1475 = vmatprep.subr.mxu0 0.0
    %1476 = vmatpush1.msra.mxu0 0.0
    %1477 = vmatprep.subr.mxu0 0.0
    %1478 = vmatpush1.msra.mxu0 0.0
    %1479 = vmatprep.subr.mxu0 0.0
    %1480 = vmatpush1.msra.mxu0 0.0
    %1481 = vmatprep.subr.mxu0 %v1382
    %1482 = vmatpush1.msra.mxu0 %v1381
    %1483 = vmatprep.subr.mxu0 %v1378
    %1484 = vmatpush1.msra.mxu0 %v1377
    %1485 = vmatprep.subr.mxu0 %v1374
    %1486 = vmatpush1.msra.mxu0 %v1373
    %1487 = vmatprep.subr.mxu0 %v1370
    %1488 = vmatpush1.msra.mxu0 %v1369
    %1489 = vmatprep.subr.mxu0 0.0
    %1490 = vmatpush2.msra.mxu0 0.0
    %1491 = vmatprep.subr.mxu0 0.0
    %1492 = vmatpush2.msra.mxu0 0.0
    %1493 = vmatprep.subr.mxu0 0.0
    %1494 = vmatpush2.msra.mxu0 0.0
    %1495 = vmatprep.subr.mxu0 0.0
    %1496 = vmatpush2.msra.mxu0 0.0
    %1497 = vmatprep.subr.mxu0 0.0
    %1498 = vmatpush2.msra.mxu0 0.0
    %1499 = vmatprep.subr.mxu0 0.0
    %1500 = vmatpush2.msra.mxu0 0.0
    %1501 = vmatprep.subr.mxu0 0.0
    %1502 = vmatpush2.msra.mxu0 0.0
    %1503 = vmatprep.subr.mxu0 0.0
    %1504 = vmatpush2.msra.mxu0 0.0
    %1505 = vmatprep.subr.mxu0 0.0
    %1506 = vmatpush2.msra.mxu0 0.0
    %1507 = vmatprep.subr.mxu0 0.0
    %1508 = vmatpush2.msra.mxu0 0.0
    %1509 = vmatprep.subr.mxu0 0.0
    %1510 = vmatpush2.msra.mxu0 0.0
    %1511 = vmatprep.subr.mxu0 0.0
    %1512 = vmatpush2.msra.mxu0 0.0
    %1513 = vmatprep.subr.mxu0 0.0
    %1514 = vmatpush2.msra.mxu0 0.0
    %1515 = vmatprep.subr.mxu0 0.0
    %1516 = vmatpush2.msra.mxu0 0.0
    %1517 = vmatprep.subr.mxu0 0.0
    %1518 = vmatpush2.msra.mxu0 0.0
    %1519 = vmatprep.subr.mxu0 0.0
    %1520 = vmatpush2.msra.mxu0 0.0
    %1521 = vmatprep.mubr.f32.mxu0 0.0
    %1522 = vmatmul.mubr.f32.gmra.mxu0 %v1384
    %v1523 = vpop.f32.mrf.mxu0
    %v1524 = vadd.f32 0.0, %v1523
    %v1525 = vpop.f32.mrf.mxu0
    %v1526 = vadd.f32 0.0, %v1525
    %1527 = vdwg.mxu0
    %v1528 = vadd.f32 %v1453, %v1248
    %v1529 = vadd.f32 %v1455, %v1317
    %s1530 = scalar_lea.vmem [#allocation5], 16
    %v1531 = vld [vmem:[%s1530] sm:$0xff]
    %v1532 = vld [vmem:[%s1530 + $0x8] sm:$0xff]
    %v1533 = vadd.f32 %v1528, %v1531
    %v1534 = vadd.f32 %v1529, %v1532
    %v1535 = vmax.f32 %v1533, %v1534
    %v1536 = vmul.f32 %v1535, %v1356
    %s1537 = scalar_lea.vmem [#allocation13], 8
    %1538 = vst [vmem:[%s1537] sm:$0xff] %v1536
    %v1539 = vld [vmem:[#allocation8] sm:$0xff]
    %v1540 = vld [vmem:[#allocation8 + $0x8] sm:$0xff]
    %v1541 = vld [vmem:[#allocation8 + $0x10] sm:$0xff]
    %v1542 = vld [vmem:[#allocation8 + $0x18] sm:$0xff]
    %v1543 = vld [vmem:[#allocation8 + $0x20] sm:$0xff]
    %v1544 = vld [vmem:[#allocation8 + $0x28] sm:$0xff]
    %v1545 = vld [vmem:[#allocation8 + $0x30] sm:$0xff]
    %v1546 = vld [vmem:[#allocation8 + $0x38] sm:$0xff]
    %v1547 = vadd.f32 %v1524, %v1539
    %v1548 = vadd.f32 %v1524, %v1540
    %v1549 = vadd.f32 %v1524, %v1541
    %v1550 = vadd.f32 %v1524, %v1542
    %v1551 = vadd.f32 %v1524, %v1543
    %v1552 = vadd.f32 %v1524, %v1544
    %v1553 = vadd.f32 %v1524, %v1545
    %v1554 = vadd.f32 %v1524, %v1546
    %v1555 = vtanh.pop %v1547
    %v1556 = vtanh.pop %v1548
    %v1557 = vtanh.pop %v1549
    %v1558 = vtanh.pop %v1550
    %v1559 = vtanh.pop %v1551
    %v1560 = vtanh.pop %v1552
    %v1561 = vtanh.pop %v1553
    %v1562 = vtanh.pop %v1554
    %v1563 = vld [vmem:[#allocation11] sm:$0xff]
    %v1564 = vld [vmem:[#allocation11 + $0x8] sm:$0xff]
    %v1565 = vld [vmem:[#allocation11 + $0x10] sm:$0xff]
    %v1566 = vld [vmem:[#allocation11 + $0x18] sm:$0xff]
    %v1567 = vld [vmem:[#allocation11 + $0x20] sm:$0xff]
    %v1568 = vld [vmem:[#allocation11 + $0x28] sm:$0xff]
    %v1569 = vld [vmem:[#allocation11 + $0x30] sm:$0xff]
    %v1570 = vld [vmem:[#allocation11 + $0x38] sm:$0xff]
    %v1571 = vld [vmem:[#allocation11 + $0x40] sm:$0xff]
    %v1572 = vld [vmem:[#allocation11 + $0x48] sm:$0xff]
    %v1573 = vld [vmem:[#allocation11 + $0x50] sm:$0xff]
    %v1574 = vld [vmem:[#allocation11 + $0x58] sm:$0xff]
    %v1575 = vld [vmem:[#allocation11 + $0x60] sm:$0xff]
    %v1576 = vld [vmem:[#allocation11 + $0x68] sm:$0xff]
    %v1577 = vld [vmem:[#allocation11 + $0x70] sm:$0xff]
    %v1578 = vld [vmem:[#allocation11 + $0x78] sm:$0xff]
    %1579 = vmatprep.subr.mxu0 0.0
    %1580 = vmatpush1.msra.mxu0 %v1578
    %1581 = vmatprep.subr.mxu0 0.0
    %1582 = vmatpush1.msra.mxu0 %v1577
    %1583 = vmatprep.subr.mxu0 0.0
    %1584 = vmatpush1.msra.mxu0 %v1576
    %1585 = vmatprep.subr.mxu0 0.0
    %1586 = vmatpush1.msra.mxu0 %v1575
    %1587 = vmatprep.subr.mxu0 0.0
    %1588 = vmatpush1.msra.mxu0 %v1574
    %1589 = vmatprep.subr.mxu0 0.0
    %1590 = vmatpush1.msra.mxu0 %v1573
    %1591 = vmatprep.subr.mxu0 0.0
    %1592 = vmatpush1.msra.mxu0 %v1572
    %1593 = vmatprep.subr.mxu0 0.0
    %1594 = vmatpush1.msra.mxu0 %v1571
    %1595 = vmatprep.subr.mxu0 0.0
    %1596 = vmatpush1.msra.mxu0 %v1570
    %1597 = vmatprep.subr.mxu0 0.0
    %1598 = vmatpush1.msra.mxu0 %v1569
    %1599 = vmatprep.subr.mxu0 0.0
    %1600 = vmatpush1.msra.mxu0 %v1568
    %1601 = vmatprep.subr.mxu0 0.0
    %1602 = vmatpush1.msra.mxu0 %v1567
    %1603 = vmatprep.subr.mxu0 0.0
    %1604 = vmatpush1.msra.mxu0 %v1566
    %1605 = vmatprep.subr.mxu0 0.0
    %1606 = vmatpush1.msra.mxu0 %v1565
    %1607 = vmatprep.subr.mxu0 0.0
    %1608 = vmatpush1.msra.mxu0 %v1564
    %1609 = vmatprep.subr.mxu0 0.0
    %1610 = vmatpush1.msra.mxu0 %v1563
    %1611 = vmatprep.subr.mxu0 0.0
    %1612 = vmatpush2.msra.mxu0 0.0
    %1613 = vmatprep.subr.mxu0 0.0
    %1614 = vmatpush2.msra.mxu0 0.0
    %1615 = vmatprep.subr.mxu0 0.0
    %1616 = vmatpush2.msra.mxu0 0.0
    %1617 = vmatprep.subr.mxu0 0.0
    %1618 = vmatpush2.msra.mxu0 0.0
    %1619 = vmatprep.subr.mxu0 0.0
    %1620 = vmatpush2.msra.mxu0 0.0
    %1621 = vmatprep.subr.mxu0 0.0
    %1622 = vmatpush2.msra.mxu0 0.0
    %1623 = vmatprep.subr.mxu0 0.0
    %1624 = vmatpush2.msra.mxu0 0.0
    %1625 = vmatprep.subr.mxu0 0.0
    %1626 = vmatpush2.msra.mxu0 0.0
    %1627 = vmatprep.subr.mxu0 0.0
    %1628 = vmatpush2.msra.mxu0 0.0
    %1629 = vmatprep.subr.mxu0 0.0
    %1630 = vmatpush2.msra.mxu0 0.0
    %1631 = vmatprep.subr.mxu0 0.0
    %1632 = vmatpush2.msra.mxu0 0.0
    %1633 = vmatprep.subr.mxu0 0.0
    %1634 = vmatpush2.msra.mxu0 0.0
    %1635 = vmatprep.subr.mxu0 0.0
    %1636 = vmatpush2.msra.mxu0 0.0
    %1637 = vmatprep.subr.mxu0 0.0
    %1638 = vmatpush2.msra.mxu0 0.0
    %1639 = vmatprep.subr.mxu0 0.0
    %1640 = vmatpush2.msra.mxu0 0.0
    %1641 = vmatprep.subr.mxu0 0.0
    %1642 = vmatpush2.msra.mxu0 0.0
    %1643 = vmatprep.mubr.f32.mxu0 0.0
    %1644 = vmatmul.mubr.f32.gmra.mxu0 %v1555
    %v1645 = vpop.f32.mrf.mxu0
    %v1646 = vadd.f32 0.0, %v1645
    %v1647 = vpop.f32.mrf.mxu0
    %1648 = vmatprep.mubr.f32.mxu0 0.0
    %1649 = vmatmul.mubr.f32.gmra.mxu0 %v1556
    %v1650 = vpop.f32.mrf.mxu0
    %v1651 = vadd.f32 0.0, %v1650
    %v1652 = vpop.f32.mrf.mxu0
    %1653 = vmatprep.mubr.f32.mxu0 0.0
    %1654 = vmatmul.mubr.f32.gmra.mxu0 %v1557
    %v1655 = vpop.f32.mrf.mxu0
    %v1656 = vadd.f32 0.0, %v1655
    %v1657 = vpop.f32.mrf.mxu0
    %1658 = vmatprep.mubr.f32.mxu0 0.0
    %1659 = vmatmul.mubr.f32.gmra.mxu0 %v1558
    %v1660 = vpop.f32.mrf.mxu0
    %v1661 = vadd.f32 0.0, %v1660
    %v1662 = vpop.f32.mrf.mxu0
    %1663 = vmatprep.mubr.f32.mxu0 0.0
    %1664 = vmatmul.mubr.f32.gmra.mxu0 %v1559
    %v1665 = vpop.f32.mrf.mxu0
    %v1666 = vadd.f32 0.0, %v1665
    %v1667 = vpop.f32.mrf.mxu0
    %1668 = vmatprep.mubr.f32.mxu0 0.0
    %1669 = vmatmul.mubr.f32.gmra.mxu0 %v1560
    %v1670 = vpop.f32.mrf.mxu0
    %v1671 = vadd.f32 0.0, %v1670
    %v1672 = vpop.f32.mrf.mxu0
    %1673 = vmatprep.mubr.f32.mxu0 0.0
    %1674 = vmatmul.mubr.f32.gmra.mxu0 %v1561
    %v1675 = vpop.f32.mrf.mxu0
    %v1676 = vadd.f32 0.0, %v1675
    %v1677 = vpop.f32.mrf.mxu0
    %1678 = vmatprep.mubr.f32.mxu0 0.0
    %1679 = vmatmul.mubr.f32.gmra.mxu0 %v1562
    %v1680 = vpop.f32.mrf.mxu0
    %v1681 = vadd.f32 0.0, %v1680
    %v1682 = vpop.f32.mrf.mxu0
    %1683 = vdwg.mxu0
    %v1684 = vsel %vm364, %v1646, -inf
    %v1685 = vsel %vm364, %v1651, -inf
    %v1686 = vsel %vm364, %v1656, -inf
    %v1687 = vsel %vm364, %v1661, -inf
    %v1688 = vsel %vm364, %v1666, -inf
    %v1689 = vmax.f32 %v1684, %v1688
    %v1690 = vsel %vm364, %v1671, -inf
    %v1691 = vmax.f32 %v1685, %v1690
    %v1692 = vsel %vm364, %v1676, -inf
    %v1693 = vmax.f32 %v1686, %v1692
    %v1694 = vsel %vm364, %v1681, -inf
    %v1695 = vmax.f32 %v1687, %v1694
    %v1696 = vmax.f32 %v1689, %v1691
    %v1697 = vmax.f32 %v1693, %v1695
    %v1698 = vmax.f32 %v1696, %v1697
    %v1699 = vsub.f32 %v1646, %v1698
    %v1700 = vsub.f32 %v1651, %v1698
    %v1701 = vsub.f32 %v1656, %v1698
    %v1702 = vsub.f32 %v1661, %v1698
    %v1703 = vsub.f32 %v1666, %v1698
    %v1704 = vsub.f32 %v1671, %v1698
    %v1705 = vsub.f32 %v1676, %v1698
    %v1706 = vsub.f32 %v1681, %v1698
    %v1707 = vmul.f32 %v1699, 1.442695
    %v1708 = vpow.pop %v1707
    %v1709 = vmul.f32 %v1700, 1.442695
    %v1710 = vpow.pop %v1709
    %v1711 = vmul.f32 %v1701, 1.442695
    %v1712 = vpow.pop %v1711
    %v1713 = vmul.f32 %v1702, 1.442695
    %v1714 = vpow.pop %v1713
    %v1715 = vmul.f32 %v1703, 1.442695
    %v1716 = vpow.pop %v1715
    %v1717 = vmul.f32 %v1704, 1.442695
    %v1718 = vpow.pop %v1717
    %v1719 = vmul.f32 %v1705, 1.442695
    %v1720 = vpow.pop %v1719
    %v1721 = vmul.f32 %v1706, 1.442695
    %v1722 = vpow.pop %v1721
    %v1723 = vld [vmem:[%s6] sm:$0xff]
    %v1724 = vld [vmem:[%s6 + $0x8] sm:$0xff]
    %v1725 = vld [vmem:[%s6 + $0x10] sm:$0xff]
    %v1726 = vld [vmem:[%s6 + $0x18] sm:$0xff]
    %v1727 = vld [vmem:[%s6 + $0x20] sm:$0xff]
    %v1728 = vld [vmem:[%s6 + $0x28] sm:$0xff]
    %v1729 = vld [vmem:[%s6 + $0x30] sm:$0xff]
    %v1730 = vld [vmem:[%s6 + $0x38] sm:$0xff]
    %v1731 = vmul.f32 %v1708, %v1723
    %v1732 = vmul.f32 %v1710, %v1724
    %v1733 = vmul.f32 %v1712, %v1725
    %v1734 = vmul.f32 %v1714, %v1726
    %v1735 = vmul.f32 %v1716, %v1727
    %v1736 = vmul.f32 %v1718, %v1728
    %v1737 = vmul.f32 %v1720, %v1729
    %v1738 = vmul.f32 %v1722, %v1730
    %v1739 = vsel %vm364, %v1731, 0.0
    %v1740 = vsel %vm364, %v1732, 0.0
    %v1741 = vadd.f32 %v1739, %v1740
    %v1742 = vsel %vm364, %v1733, 0.0
    %v1743 = vadd.f32 %v1741, %v1742
    %v1744 = vsel %vm364, %v1734, 0.0
    %v1745 = vadd.f32 %v1743, %v1744
    %v1746 = vsel %vm364, %v1735, 0.0
    %v1747 = vadd.f32 %v1745, %v1746
    %v1748 = vsel %vm364, %v1736, 0.0
    %v1749 = vadd.f32 %v1747, %v1748
    %v1750 = vsel %vm364, %v1737, 0.0
    %v1751 = vadd.f32 %v1749, %v1750
    %v1752 = vsel %vm364, %v1738, 0.0
    %v1753 = vadd.f32 %v1751, %v1752
    %v1754 = vld [vmem:[#allocation7] sm:$0xff]
    %v1755 = vld [vmem:[#allocation7 + $0x8] sm:$0xff]
    %v1756 = vld [vmem:[#allocation7 + $0x10] sm:$0xff]
    %v1757 = vld [vmem:[#allocation7 + $0x18] sm:$0xff]
    %v1758 = vld [vmem:[#allocation7 + $0x20] sm:$0xff]
    %v1759 = vld [vmem:[#allocation7 + $0x28] sm:$0xff]
    %v1760 = vld [vmem:[#allocation7 + $0x30] sm:$0xff]
    %v1761 = vld [vmem:[#allocation7 + $0x38] sm:$0xff]
    %1763 = vset.pattern.permute.xlu0 0
    %1764 = vperm.xlu0 %1763, %v1731
    %v1765 = vpop.permute.xlu0 %1764
    %1768 = vset.pattern.permute.xlu0 0
    %1769 = vperm.xlu0 %1768, %v1732
    %v1770 = vpop.permute.xlu0 %1769
    %1773 = vset.pattern.permute.xlu0 0
    %1774 = vperm.xlu0 %1773, %v1733
    %v1775 = vpop.permute.xlu0 %1774
    %1778 = vset.pattern.permute.xlu0 0
    %1779 = vperm.xlu0 %1778, %v1734
    %v1780 = vpop.permute.xlu0 %1779
    %1783 = vset.pattern.permute.xlu0 0
    %1784 = vperm.xlu0 %1783, %v1735
    %v1785 = vpop.permute.xlu0 %1784
    %1788 = vset.pattern.permute.xlu0 0
    %1789 = vperm.xlu0 %1788, %v1736
    %v1790 = vpop.permute.xlu0 %1789
    %1793 = vset.pattern.permute.xlu0 0
    %1794 = vperm.xlu0 %1793, %v1737
    %v1795 = vpop.permute.xlu0 %1794
    %1798 = vset.pattern.permute.xlu0 0
    %1799 = vperm.xlu0 %1798, %v1738
    %v1800 = vpop.permute.xlu0 %1799
    %v1802 = vmul.f32 %v1765, %v1754
    %v1803 = vmul.f32 %v1770, %v1755
    %v1804 = vmul.f32 %v1775, %v1756
    %v1805 = vmul.f32 %v1780, %v1757
    %v1806 = vmul.f32 %v1785, %v1758
    %v1807 = vmul.f32 %v1790, %v1759
    %v1808 = vmul.f32 %v1795, %v1760
    %v1809 = vmul.f32 %v1800, %v1761
    %v1810 = vsel %vm144, %v1802, 0.0
    %v1811 = vsel %vm144, %v1803, 0.0
    %v1812 = vadd.f32 %v1810, %v1811
    %v1813 = vsel %vm144, %v1804, 0.0
    %v1814 = vadd.f32 %v1812, %v1813
    %v1815 = vsel %vm144, %v1805, 0.0
    %v1816 = vadd.f32 %v1814, %v1815
    %v1817 = vsel %vm144, %v1806, 0.0
    %v1818 = vadd.f32 %v1816, %v1817
    %v1819 = vsel %vm144, %v1807, 0.0
    %v1820 = vadd.f32 %v1818, %v1819
    %v1821 = vsel %vm144, %v1808, 0.0
    %v1822 = vadd.f32 %v1820, %v1821
    %v1823 = vsel %vm144, %v1809, 0.0
    %v1824 = vadd.f32 %v1822, %v1823
    %v1825 = vrcp.pop %v1753
    %1827 = vset.pattern.permute.xlu0 0
    %1828 = vperm.xlu0 %1827, %v1825
    %v1829 = vpop.permute.xlu0 %1828
    %v1831 = vmul.f32 %v1824, %v1829
    %v1832 = vld [vmem:[#allocation10] sm:$0xff]
    %v1833 = vld [vmem:[#allocation10 + $0x8] sm:$0xff]
    %v1834 = vld [vmem:[#allocation10 + $0x10] sm:$0xff]
    %v1835 = vld [vmem:[#allocation10 + $0x18] sm:$0xff]
    %v1836 = vld [vmem:[#allocation10 + $0x20] sm:$0xff]
    %v1837 = vld [vmem:[#allocation10 + $0x28] sm:$0xff]
    %v1838 = vld [vmem:[#allocation10 + $0x30] sm:$0xff]
    %v1839 = vld [vmem:[#allocation10 + $0x38] sm:$0xff]
    %v1840 = vld [vmem:[#allocation10 + $0x40] sm:$0xff]
    %v1841 = vld [vmem:[#allocation10 + $0x48] sm:$0xff]
    %v1842 = vld [vmem:[#allocation10 + $0x50] sm:$0xff]
    %v1843 = vld [vmem:[#allocation10 + $0x58] sm:$0xff]
    %v1845 = vsel %vm144, %v1831, 0
    %1847 = vmatprep.subr.mxu0 0.0
    %1848 = vmatpush1.msra.mxu0 0.0
    %1849 = vmatprep.subr.mxu0 0.0
    %1850 = vmatpush1.msra.mxu0 0.0
    %1851 = vmatprep.subr.mxu0 0.0
    %1852 = vmatpush1.msra.mxu0 0.0
    %1853 = vmatprep.subr.mxu0 0.0
    %1854 = vmatpush1.msra.mxu0 0.0
    %1855 = vmatprep.subr.mxu0 0.0
    %1856 = vmatpush1.msra.mxu0 0.0
    %1857 = vmatprep.subr.mxu0 0.0
    %1858 = vmatpush1.msra.mxu0 0.0
    %1859 = vmatprep.subr.mxu0 0.0
    %1860 = vmatpush1.msra.mxu0 0.0
    %1861 = vmatprep.subr.mxu0 0.0
    %1862 = vmatpush1.msra.mxu0 0.0
    %1863 = vmatprep.subr.mxu0 0.0
    %1864 = vmatpush1.msra.mxu0 0.0
    %1865 = vmatprep.subr.mxu0 0.0
    %1866 = vmatpush1.msra.mxu0 0.0
    %1867 = vmatprep.subr.mxu0 0.0
    %1868 = vmatpush1.msra.mxu0 0.0
    %1869 = vmatprep.subr.mxu0 0.0
    %1870 = vmatpush1.msra.mxu0 0.0
    %1871 = vmatprep.subr.mxu0 %v1842
    %1872 = vmatpush1.msra.mxu0 %v1841
    %1873 = vmatprep.subr.mxu0 %v1839
    %1874 = vmatpush1.msra.mxu0 %v1838
    %1875 = vmatprep.subr.mxu0 %v1836
    %1876 = vmatpush1.msra.mxu0 %v1835
    %1877 = vmatprep.subr.mxu0 %v1833
    %1878 = vmatpush1.msra.mxu0 %v1832
    %1879 = vmatprep.subr.mxu0 0.0
    %1880 = vmatpush2.msra.mxu0 0.0
    %1881 = vmatprep.subr.mxu0 0.0
    %1882 = vmatpush2.msra.mxu0 0.0
    %1883 = vmatprep.subr.mxu0 0.0
    %1884 = vmatpush2.msra.mxu0 0.0
    %1885 = vmatprep.subr.mxu0 0.0
    %1886 = vmatpush2.msra.mxu0 0.0
    %1887 = vmatprep.subr.mxu0 0.0
    %1888 = vmatpush2.msra.mxu0 0.0
    %1889 = vmatprep.subr.mxu0 0.0
    %1890 = vmatpush2.msra.mxu0 0.0
    %1891 = vmatprep.subr.mxu0 0.0
    %1892 = vmatpush2.msra.mxu0 0.0
    %1893 = vmatprep.subr.mxu0 0.0
    %1894 = vmatpush2.msra.mxu0 0.0
    %1895 = vmatprep.subr.mxu0 0.0
    %1896 = vmatpush2.msra.mxu0 0.0
    %1897 = vmatprep.subr.mxu0 0.0
    %1898 = vmatpush2.msra.mxu0 0.0
    %1899 = vmatprep.subr.mxu0 0.0
    %1900 = vmatpush2.msra.mxu0 0.0
    %1901 = vmatprep.subr.mxu0 0.0
    %1902 = vmatpush2.msra.mxu0 0.0
    %1903 = vmatprep.subr.mxu0 0.0
    %1904 = vmatpush2.msra.mxu0 0.0
    %1905 = vmatprep.subr.mxu0 0.0
    %1906 = vmatpush2.msra.mxu0 0.0
    %1907 = vmatprep.subr.mxu0 0.0
    %1908 = vmatpush2.msra.mxu0 0.0
    %1909 = vmatprep.subr.mxu0 0.0
    %1910 = vmatpush2.msra.mxu0 0.0
    %1911 = vmatprep.mubr.f32.mxu0 0.0
    %1912 = vmatmul.mubr.f32.gmra.mxu0 %v1845
    %v1913 = vpop.f32.mrf.mxu0
    %v1914 = vadd.f32 0.0, %v1913
    %v1915 = vpop.f32.mrf.mxu0
    %v1916 = vadd.f32 0.0, %v1915
    %1917 = vdwg.mxu0
    %1918 = vmatprep.subr.mxu0 0.0
    %1919 = vmatpush1.msra.mxu0 0.0
    %1920 = vmatprep.subr.mxu0 0.0
    %1921 = vmatpush1.msra.mxu0 0.0
    %1922 = vmatprep.subr.mxu0 0.0
    %1923 = vmatpush1.msra.mxu0 0.0
    %1924 = vmatprep.subr.mxu0 0.0
    %1925 = vmatpush1.msra.mxu0 0.0
    %1926 = vmatprep.subr.mxu0 0.0
    %1927 = vmatpush1.msra.mxu0 0.0
    %1928 = vmatprep.subr.mxu0 0.0
    %1929 = vmatpush1.msra.mxu0 0.0
    %1930 = vmatprep.subr.mxu0 0.0
    %1931 = vmatpush1.msra.mxu0 0.0
    %1932 = vmatprep.subr.mxu0 0.0
    %1933 = vmatpush1.msra.mxu0 0.0
    %1934 = vmatprep.subr.mxu0 0.0
    %1935 = vmatpush1.msra.mxu0 0.0
    %1936 = vmatprep.subr.mxu0 0.0
    %1937 = vmatpush1.msra.mxu0 0.0
    %1938 = vmatprep.subr.mxu0 0.0
    %1939 = vmatpush1.msra.mxu0 0.0
    %1940 = vmatprep.subr.mxu0 0.0
    %1941 = vmatpush1.msra.mxu0 0.0
    %1942 = vmatprep.subr.mxu0 0.0
    %1943 = vmatpush1.msra.mxu0 %v1843
    %1944 = vmatprep.subr.mxu0 0.0
    %1945 = vmatpush1.msra.mxu0 %v1840
    %1946 = vmatprep.subr.mxu0 0.0
    %1947 = vmatpush1.msra.mxu0 %v1837
    %1948 = vmatprep.subr.mxu0 0.0
    %1949 = vmatpush1.msra.mxu0 %v1834
    %1950 = vmatprep.subr.mxu0 0.0
    %1951 = vmatpush2.msra.mxu0 0.0
    %1952 = vmatprep.subr.mxu0 0.0
    %1953 = vmatpush2.msra.mxu0 0.0
    %1954 = vmatprep.subr.mxu0 0.0
    %1955 = vmatpush2.msra.mxu0 0.0
    %1956 = vmatprep.subr.mxu0 0.0
    %1957 = vmatpush2.msra.mxu0 0.0
    %1958 = vmatprep.subr.mxu0 0.0
    %1959 = vmatpush2.msra.mxu0 0.0
    %1960 = vmatprep.subr.mxu0 0.0
    %1961 = vmatpush2.msra.mxu0 0.0
    %1962 = vmatprep.subr.mxu0 0.0
    %1963 = vmatpush2.msra.mxu0 0.0
    %1964 = vmatprep.subr.mxu0 0.0
    %1965 = vmatpush2.msra.mxu0 0.0
    %1966 = vmatprep.subr.mxu0 0.0
    %1967 = vmatpush2.msra.mxu0 0.0
    %1968 = vmatprep.subr.mxu0 0.0
    %1969 = vmatpush2.msra.mxu0 0.0
    %1970 = vmatprep.subr.mxu0 0.0
    %1971 = vmatpush2.msra.mxu0 0.0
    %1972 = vmatprep.subr.mxu0 0.0
    %1973 = vmatpush2.msra.mxu0 0.0
    %1974 = vmatprep.subr.mxu0 0.0
    %1975 = vmatpush2.msra.mxu0 0.0
    %1976 = vmatprep.subr.mxu0 0.0
    %1977 = vmatpush2.msra.mxu0 0.0
    %1978 = vmatprep.subr.mxu0 0.0
    %1979 = vmatpush2.msra.mxu0 0.0
    %1980 = vmatprep.subr.mxu0 0.0
    %1981 = vmatpush2.msra.mxu0 0.0
    %1982 = vmatprep.mubr.f32.mxu0 0.0
    %1983 = vmatmul.mubr.f32.gmra.mxu0 %v1845
    %v1984 = vpop.f32.mrf.mxu0
    %v1985 = vadd.f32 0.0, %v1984
    %v1986 = vpop.f32.mrf.mxu0
    %1987 = vdwg.mxu0
    %s1988 = scalar_lea.vmem [#allocation2], 16
    %v1989 = vld [vmem:[%s1988] sm:$0xff]
    %v1990 = vadd.f32 %v1989, %v1526
    %v1991 = vadd.f32 %v1990, %v1914
    %v1992 = vxor.u32 %v1991, 2147483648
    %v1993 = vmul.f32 %v1992, 1.442695
    %v1994 = vpow.pop %v1993
    %v1995 = vadd.f32 %v1994, 1.0
    %v1996 = vrcp.pop %v1995
    %v1997 = vmul.f32 1.0, %v1996
    %v1998 = vadd.f32 %v1526, %v679
    %2000 = vrot.lane.b32.xlu0 %v1998, 96
    %v2001 = vpop.permute.xlu0 %2000
    %v2003 = vmul.f32 %v1997, %v2001
    %2005 = vrot.lane.b32.xlu0 %v2003, 32
    %v2006 = vpop.permute.xlu0 %2005
    %v2008 = vadd.f32 %v1989, %v2006
    %v2009 = vadd.f32 %v2008, %v1914
    %v2010 = vtanh.pop %v2009
    %s2011 = scalar_lea.vmem %s2, 16
    %v2012 = vld [vmem:[%s2011] sm:$0xff]
    %v2013 = vsub.f32 1.0, %v1997
    %v2014 = vmul.f32 %v2013, %v1366
    %2016 = vrot.lane.b32.xlu0 %v2010, 64
    %v2017 = vpop.permute.xlu0 %2016
    %v2019 = vmul.f32 %v1997, %v2017
    %v2020 = vadd.f32 %v2014, %v2019
    %2022 = vset.pattern.permute.xlu0 0
    %2023 = vperm.xlu0 %2022, %v2012
    %v2024 = vpop.permute.xlu0 %2023
    %v2026 = vmul.f32 %v2024, %v2020
    %v2027 = vsub.f32 1.0, %v2012
    %2029 = vset.pattern.permute.xlu0 0
    %2030 = vperm.xlu0 %2029, %v2027
    %v2031 = vpop.permute.xlu0 %2030
    %v2033 = vmul.f32 %v2031, %v1366
    %v2034 = vadd.f32 %v2026, %v2033
    %v2035 = vld [vmem:[%s7] sm:$0xff]
    %v2036 = vld [vmem:[%s7 + $0x8] sm:$0xff]
    %v2037 = vld [vmem:[%s7 + $0x10] sm:$0xff]
    %v2038 = vld [vmem:[%s7 + $0x18] sm:$0xff]
    %v2039 = vld [vmem:[%s7 + $0x20] sm:$0xff]
    %v2040 = vld [vmem:[%s7 + $0x28] sm:$0xff]
    %v2041 = vld [vmem:[%s7 + $0x30] sm:$0xff]
    %v2042 = vld [vmem:[%s7 + $0x38] sm:$0xff]
    %v2043 = vld [vmem:[%s7 + $0x40] sm:$0xff]
    %v2044 = vld [vmem:[%s7 + $0x48] sm:$0xff]
    %v2045 = vld [vmem:[%s7 + $0x50] sm:$0xff]
    %v2046 = vld [vmem:[%s7 + $0x58] sm:$0xff]
    %v2047 = vld [vmem:[%s7 + $0x60] sm:$0xff]
    %v2048 = vld [vmem:[%s7 + $0x68] sm:$0xff]
    %v2049 = vld [vmem:[%s7 + $0x70] sm:$0xff]
    %v2050 = vld [vmem:[%s7 + $0x78] sm:$0xff]
    %v2052 = vsel %vm144, %v2034, 0
    %2054 = vmatprep.subr.mxu0 0.0
    %2055 = vmatpush1.msra.mxu0 0.0
    %2056 = vmatprep.subr.mxu0 0.0
    %2057 = vmatpush1.msra.mxu0 0.0
    %2058 = vmatprep.subr.mxu0 0.0
    %2059 = vmatpush1.msra.mxu0 0.0
    %2060 = vmatprep.subr.mxu0 0.0
    %2061 = vmatpush1.msra.mxu0 0.0
    %2062 = vmatprep.subr.mxu0 0.0
    %2063 = vmatpush1.msra.mxu0 0.0
    %2064 = vmatprep.subr.mxu0 0.0
    %2065 = vmatpush1.msra.mxu0 0.0
    %2066 = vmatprep.subr.mxu0 0.0
    %2067 = vmatpush1.msra.mxu0 0.0
    %2068 = vmatprep.subr.mxu0 0.0
    %2069 = vmatpush1.msra.mxu0 0.0
    %2070 = vmatprep.subr.mxu0 0.0
    %2071 = vmatpush1.msra.mxu0 0.0
    %2072 = vmatprep.subr.mxu0 0.0
    %2073 = vmatpush1.msra.mxu0 0.0
    %2074 = vmatprep.subr.mxu0 0.0
    %2075 = vmatpush1.msra.mxu0 0.0
    %2076 = vmatprep.subr.mxu0 0.0
    %2077 = vmatpush1.msra.mxu0 0.0
    %2078 = vmatprep.subr.mxu0 %v2048
    %2079 = vmatpush1.msra.mxu0 %v2047
    %2080 = vmatprep.subr.mxu0 %v2044
    %2081 = vmatpush1.msra.mxu0 %v2043
    %2082 = vmatprep.subr.mxu0 %v2040
    %2083 = vmatpush1.msra.mxu0 %v2039
    %2084 = vmatprep.subr.mxu0 %v2036
    %2085 = vmatpush1.msra.mxu0 %v2035
    %2086 = vmatprep.subr.mxu0 0.0
    %2087 = vmatpush2.msra.mxu0 0.0
    %2088 = vmatprep.subr.mxu0 0.0
    %2089 = vmatpush2.msra.mxu0 0.0
    %2090 = vmatprep.subr.mxu0 0.0
    %2091 = vmatpush2.msra.mxu0 0.0
    %2092 = vmatprep.subr.mxu0 0.0
    %2093 = vmatpush2.msra.mxu0 0.0
    %2094 = vmatprep.subr.mxu0 0.0
    %2095 = vmatpush2.msra.mxu0 0.0
    %2096 = vmatprep.subr.mxu0 0.0
    %2097 = vmatpush2.msra.mxu0 0.0
    %2098 = vmatprep.subr.mxu0 0.0
    %2099 = vmatpush2.msra.mxu0 0.0
    %2100 = vmatprep.subr.mxu0 0.0
    %2101 = vmatpush2.msra.mxu0 0.0
    %2102 = vmatprep.subr.mxu0 0.0
    %2103 = vmatpush2.msra.mxu0 0.0
    %2104 = vmatprep.subr.mxu0 0.0
    %2105 = vmatpush2.msra.mxu0 0.0
    %2106 = vmatprep.subr.mxu0 0.0
    %2107 = vmatpush2.msra.mxu0 0.0
    %2108 = vmatprep.subr.mxu0 0.0
    %2109 = vmatpush2.msra.mxu0 0.0
    %2110 = vmatprep.subr.mxu0 0.0
    %2111 = vmatpush2.msra.mxu0 0.0
    %2112 = vmatprep.subr.mxu0 0.0
    %2113 = vmatpush2.msra.mxu0 0.0
    %2114 = vmatprep.subr.mxu0 0.0
    %2115 = vmatpush2.msra.mxu0 0.0
    %2116 = vmatprep.subr.mxu0 0.0
    %2117 = vmatpush2.msra.mxu0 0.0
    %2118 = vmatprep.mubr.f32.mxu0 0.0
    %2119 = vmatmul.mubr.f32.gmra.mxu0 %v2052
    %v2120 = vpop.f32.mrf.mxu0
    %v2121 = vadd.f32 0.0, %v2120
    %v2122 = vpop.f32.mrf.mxu0
    %v2123 = vadd.f32 0.0, %v2122
    %2124 = vdwg.mxu0
    %2125 = vmatprep.subr.mxu0 0.0
    %2126 = vmatpush1.msra.mxu0 0.0
    %2127 = vmatprep.subr.mxu0 0.0
    %2128 = vmatpush1.msra.mxu0 0.0
    %2129 = vmatprep.subr.mxu0 0.0
    %2130 = vmatpush1.msra.mxu0 0.0
    %2131 = vmatprep.subr.mxu0 0.0
    %2132 = vmatpush1.msra.mxu0 0.0
    %2133 = vmatprep.subr.mxu0 0.0
    %2134 = vmatpush1.msra.mxu0 0.0
    %2135 = vmatprep.subr.mxu0 0.0
    %2136 = vmatpush1.msra.mxu0 0.0
    %2137 = vmatprep.subr.mxu0 0.0
    %2138 = vmatpush1.msra.mxu0 0.0
    %2139 = vmatprep.subr.mxu0 0.0
    %2140 = vmatpush1.msra.mxu0 0.0
    %2141 = vmatprep.subr.mxu0 0.0
    %2142 = vmatpush1.msra.mxu0 0.0
    %2143 = vmatprep.subr.mxu0 0.0
    %2144 = vmatpush1.msra.mxu0 0.0
    %2145 = vmatprep.subr.mxu0 0.0
    %2146 = vmatpush1.msra.mxu0 0.0
    %2147 = vmatprep.subr.mxu0 0.0
    %2148 = vmatpush1.msra.mxu0 0.0
    %2149 = vmatprep.subr.mxu0 %v2050
    %2150 = vmatpush1.msra.mxu0 %v2049
    %2151 = vmatprep.subr.mxu0 %v2046
    %2152 = vmatpush1.msra.mxu0 %v2045
    %2153 = vmatprep.subr.mxu0 %v2042
    %2154 = vmatpush1.msra.mxu0 %v2041
    %2155 = vmatprep.subr.mxu0 %v2038
    %2156 = vmatpush1.msra.mxu0 %v2037
    %2157 = vmatprep.subr.mxu0 0.0
    %2158 = vmatpush2.msra.mxu0 0.0
    %2159 = vmatprep.subr.mxu0 0.0
    %2160 = vmatpush2.msra.mxu0 0.0
    %2161 = vmatprep.subr.mxu0 0.0
    %2162 = vmatpush2.msra.mxu0 0.0
    %2163 = vmatprep.subr.mxu0 0.0
    %2164 = vmatpush2.msra.mxu0 0.0
    %2165 = vmatprep.subr.mxu0 0.0
    %2166 = vmatpush2.msra.mxu0 0.0
    %2167 = vmatprep.subr.mxu0 0.0
    %2168 = vmatpush2.msra.mxu0 0.0
    %2169 = vmatprep.subr.mxu0 0.0
    %2170 = vmatpush2.msra.mxu0 0.0
    %2171 = vmatprep.subr.mxu0 0.0
    %2172 = vmatpush2.msra.mxu0 0.0
    %2173 = vmatprep.subr.mxu0 0.0
    %2174 = vmatpush2.msra.mxu0 0.0
    %2175 = vmatprep.subr.mxu0 0.0
    %2176 = vmatpush2.msra.mxu0 0.0
    %2177 = vmatprep.subr.mxu0 0.0
    %2178 = vmatpush2.msra.mxu0 0.0
    %2179 = vmatprep.subr.mxu0 0.0
    %2180 = vmatpush2.msra.mxu0 0.0
    %2181 = vmatprep.subr.mxu0 0.0
    %2182 = vmatpush2.msra.mxu0 0.0
    %2183 = vmatprep.subr.mxu0 0.0
    %2184 = vmatpush2.msra.mxu0 0.0
    %2185 = vmatprep.subr.mxu0 0.0
    %2186 = vmatpush2.msra.mxu0 0.0
    %2187 = vmatprep.subr.mxu0 0.0
    %2188 = vmatpush2.msra.mxu0 0.0
    %2189 = vmatprep.mubr.f32.mxu0 0.0
    %2190 = vmatmul.mubr.f32.gmra.mxu0 %v2052
    %v2191 = vpop.f32.mrf.mxu0
    %v2192 = vadd.f32 0.0, %v2191
    %v2193 = vpop.f32.mrf.mxu0
    %v2194 = vadd.f32 0.0, %v2193
    %2195 = vdwg.mxu0
    %v2196 = vadd.f32 %v2121, %v1916
    %v2197 = vadd.f32 %v2123, %v1985
    %s2198 = scalar_lea.vmem [#allocation5], 32
    %v2199 = vld [vmem:[%s2198] sm:$0xff]
    %v2200 = vld [vmem:[%s2198 + $0x8] sm:$0xff]
    %v2201 = vadd.f32 %v2196, %v2199
    %v2202 = vadd.f32 %v2197, %v2200
    %v2203 = vmax.f32 %v2201, %v2202
    %v2204 = vmul.f32 %v2203, %v2024
    %s2205 = scalar_lea.vmem [#allocation13], 16
    %2206 = vst [vmem:[%s2205] sm:$0xff] %v2204
    %v2207 = vld [vmem:[#allocation8] sm:$0xff]
    %v2208 = vld [vmem:[#allocation8 + $0x8] sm:$0xff]
    %v2209 = vld [vmem:[#allocation8 + $0x10] sm:$0xff]
    %v2210 = vld [vmem:[#allocation8 + $0x18] sm:$0xff]
    %v2211 = vld [vmem:[#allocation8 + $0x20] sm:$0xff]
    %v2212 = vld [vmem:[#allocation8 + $0x28] sm:$0xff]
    %v2213 = vld [vmem:[#allocation8 + $0x30] sm:$0xff]
    %v2214 = vld [vmem:[#allocation8 + $0x38] sm:$0xff]
    %v2215 = vadd.f32 %v2192, %v2207
    %v2216 = vadd.f32 %v2192, %v2208
    %v2217 = vadd.f32 %v2192, %v2209
    %v2218 = vadd.f32 %v2192, %v2210
    %v2219 = vadd.f32 %v2192, %v2211
    %v2220 = vadd.f32 %v2192, %v2212
    %v2221 = vadd.f32 %v2192, %v2213
    %v2222 = vadd.f32 %v2192, %v2214
    %v2223 = vtanh.pop %v2215
    %v2224 = vtanh.pop %v2216
    %v2225 = vtanh.pop %v2217
    %v2226 = vtanh.pop %v2218
    %v2227 = vtanh.pop %v2219
    %v2228 = vtanh.pop %v2220
    %v2229 = vtanh.pop %v2221
    %v2230 = vtanh.pop %v2222
    %v2231 = vld [vmem:[#allocation11] sm:$0xff]
    %v2232 = vld [vmem:[#allocation11 + $0x8] sm:$0xff]
    %v2233 = vld [vmem:[#allocation11 + $0x10] sm:$0xff]
    %v2234 = vld [vmem:[#allocation11 + $0x18] sm:$0xff]
    %v2235 = vld [vmem:[#allocation11 + $0x20] sm:$0xff]
    %v2236 = vld [vmem:[#allocation11 + $0x28] sm:$0xff]
    %v2237 = vld [vmem:[#allocation11 + $0x30] sm:$0xff]
    %v2238 = vld [vmem:[#allocation11 + $0x38] sm:$0xff]
    %v2239 = vld [vmem:[#allocation11 + $0x40] sm:$0xff]
    %v2240 = vld [vmem:[#allocation11 + $0x48] sm:$0xff]
    %v2241 = vld [vmem:[#allocation11 + $0x50] sm:$0xff]
    %v2242 = vld [vmem:[#allocation11 + $0x58] sm:$0xff]
    %v2243 = vld [vmem:[#allocation11 + $0x60] sm:$0xff]
    %v2244 = vld [vmem:[#allocation11 + $0x68] sm:$0xff]
    %v2245 = vld [vmem:[#allocation11 + $0x70] sm:$0xff]
    %v2246 = vld [vmem:[#allocation11 + $0x78] sm:$0xff]
    %2247 = vmatprep.subr.mxu0 0.0
    %2248 = vmatpush1.msra.mxu0 %v2246
    %2249 = vmatprep.subr.mxu0 0.0
    %2250 = vmatpush1.msra.mxu0 %v2245
    %2251 = vmatprep.subr.mxu0 0.0
    %2252 = vmatpush1.msra.mxu0 %v2244
    %2253 = vmatprep.subr.mxu0 0.0
    %2254 = vmatpush1.msra.mxu0 %v2243
    %2255 = vmatprep.subr.mxu0 0.0
    %2256 = vmatpush1.msra.mxu0 %v2242
    %2257 = vmatprep.subr.mxu0 0.0
    %2258 = vmatpush1.msra.mxu0 %v2241
    %2259 = vmatprep.subr.mxu0 0.0
    %2260 = vmatpush1.msra.mxu0 %v2240
    %2261 = vmatprep.subr.mxu0 0.0
    %2262 = vmatpush1.msra.mxu0 %v2239
    %2263 = vmatprep.subr.mxu0 0.0
    %2264 = vmatpush1.msra.mxu0 %v2238
    %2265 = vmatprep.subr.mxu0 0.0
    %2266 = vmatpush1.msra.mxu0 %v2237
    %2267 = vmatprep.subr.mxu0 0.0
    %2268 = vmatpush1.msra.mxu0 %v2236
    %2269 = vmatprep.subr.mxu0 0.0
    %2270 = vmatpush1.msra.mxu0 %v2235
    %2271 = vmatprep.subr.mxu0 0.0
    %2272 = vmatpush1.msra.mxu0 %v2234
    %2273 = vmatprep.subr.mxu0 0.0
    %2274 = vmatpush1.msra.mxu0 %v2233
    %2275 = vmatprep.subr.mxu0 0.0
    %2276 = vmatpush1.msra.mxu0 %v2232
    %2277 = vmatprep.subr.mxu0 0.0
    %2278 = vmatpush1.msra.mxu0 %v2231
    %2279 = vmatprep.subr.mxu0 0.0
    %2280 = vmatpush2.msra.mxu0 0.0
    %2281 = vmatprep.subr.mxu0 0.0
    %2282 = vmatpush2.msra.mxu0 0.0
    %2283 = vmatprep.subr.mxu0 0.0
    %2284 = vmatpush2.msra.mxu0 0.0
    %2285 = vmatprep.subr.mxu0 0.0
    %2286 = vmatpush2.msra.mxu0 0.0
    %2287 = vmatprep.subr.mxu0 0.0
    %2288 = vmatpush2.msra.mxu0 0.0
    %2289 = vmatprep.subr.mxu0 0.0
    %2290 = vmatpush2.msra.mxu0 0.0
    %2291 = vmatprep.subr.mxu0 0.0
    %2292 = vmatpush2.msra.mxu0 0.0
    %2293 = vmatprep.subr.mxu0 0.0
    %2294 = vmatpush2.msra.mxu0 0.0
    %2295 = vmatprep.subr.mxu0 0.0
    %2296 = vmatpush2.msra.mxu0 0.0
    %2297 = vmatprep.subr.mxu0 0.0
    %2298 = vmatpush2.msra.mxu0 0.0
    %2299 = vmatprep.subr.mxu0 0.0
    %2300 = vmatpush2.msra.mxu0 0.0
    %2301 = vmatprep.subr.mxu0 0.0
    %2302 = vmatpush2.msra.mxu0 0.0
    %2303 = vmatprep.subr.mxu0 0.0
    %2304 = vmatpush2.msra.mxu0 0.0
    %2305 = vmatprep.subr.mxu0 0.0
    %2306 = vmatpush2.msra.mxu0 0.0
    %2307 = vmatprep.subr.mxu0 0.0
    %2308 = vmatpush2.msra.mxu0 0.0
    %2309 = vmatprep.subr.mxu0 0.0
    %2310 = vmatpush2.msra.mxu0 0.0
    %2311 = vmatprep.mubr.f32.mxu0 0.0
    %2312 = vmatmul.mubr.f32.gmra.mxu0 %v2223
    %v2313 = vpop.f32.mrf.mxu0
    %v2314 = vadd.f32 0.0, %v2313
    %v2315 = vpop.f32.mrf.mxu0
    %2316 = vmatprep.mubr.f32.mxu0 0.0
    %2317 = vmatmul.mubr.f32.gmra.mxu0 %v2224
    %v2318 = vpop.f32.mrf.mxu0
    %v2319 = vadd.f32 0.0, %v2318
    %v2320 = vpop.f32.mrf.mxu0
    %2321 = vmatprep.mubr.f32.mxu0 0.0
    %2322 = vmatmul.mubr.f32.gmra.mxu0 %v2225
    %v2323 = vpop.f32.mrf.mxu0
    %v2324 = vadd.f32 0.0, %v2323
    %v2325 = vpop.f32.mrf.mxu0
    %2326 = vmatprep.mubr.f32.mxu0 0.0
    %2327 = vmatmul.mubr.f32.gmra.mxu0 %v2226
    %v2328 = vpop.f32.mrf.mxu0
    %v2329 = vadd.f32 0.0, %v2328
    %v2330 = vpop.f32.mrf.mxu0
    %2331 = vmatprep.mubr.f32.mxu0 0.0
    %2332 = vmatmul.mubr.f32.gmra.mxu0 %v2227
    %v2333 = vpop.f32.mrf.mxu0
    %v2334 = vadd.f32 0.0, %v2333
    %v2335 = vpop.f32.mrf.mxu0
    %2336 = vmatprep.mubr.f32.mxu0 0.0
    %2337 = vmatmul.mubr.f32.gmra.mxu0 %v2228
    %v2338 = vpop.f32.mrf.mxu0
    %v2339 = vadd.f32 0.0, %v2338
    %v2340 = vpop.f32.mrf.mxu0
    %2341 = vmatprep.mubr.f32.mxu0 0.0
    %2342 = vmatmul.mubr.f32.gmra.mxu0 %v2229
    %v2343 = vpop.f32.mrf.mxu0
    %v2344 = vadd.f32 0.0, %v2343
    %v2345 = vpop.f32.mrf.mxu0
    %2346 = vmatprep.mubr.f32.mxu0 0.0
    %2347 = vmatmul.mubr.f32.gmra.mxu0 %v2230
    %v2348 = vpop.f32.mrf.mxu0
    %v2349 = vadd.f32 0.0, %v2348
    %v2350 = vpop.f32.mrf.mxu0
    %2351 = vdwg.mxu0
    %v2352 = vsel %vm364, %v2314, -inf
    %v2353 = vsel %vm364, %v2319, -inf
    %v2354 = vsel %vm364, %v2324, -inf
    %v2355 = vsel %vm364, %v2329, -inf
    %v2356 = vsel %vm364, %v2334, -inf
    %v2357 = vmax.f32 %v2352, %v2356
    %v2358 = vsel %vm364, %v2339, -inf
    %v2359 = vmax.f32 %v2353, %v2358
    %v2360 = vsel %vm364, %v2344, -inf
    %v2361 = vmax.f32 %v2354, %v2360
    %v2362 = vsel %vm364, %v2349, -inf
    %v2363 = vmax.f32 %v2355, %v2362
    %v2364 = vmax.f32 %v2357, %v2359
    %v2365 = vmax.f32 %v2361, %v2363
    %v2366 = vmax.f32 %v2364, %v2365
    %v2367 = vsub.f32 %v2314, %v2366
    %v2368 = vsub.f32 %v2319, %v2366
    %v2369 = vsub.f32 %v2324, %v2366
    %v2370 = vsub.f32 %v2329, %v2366
    %v2371 = vsub.f32 %v2334, %v2366
    %v2372 = vsub.f32 %v2339, %v2366
    %v2373 = vsub.f32 %v2344, %v2366
    %v2374 = vsub.f32 %v2349, %v2366
    %v2375 = vmul.f32 %v2367, 1.442695
    %v2376 = vpow.pop %v2375
    %v2377 = vmul.f32 %v2368, 1.442695
    %v2378 = vpow.pop %v2377
    %v2379 = vmul.f32 %v2369, 1.442695
    %v2380 = vpow.pop %v2379
    %v2381 = vmul.f32 %v2370, 1.442695
    %v2382 = vpow.pop %v2381
    %v2383 = vmul.f32 %v2371, 1.442695
    %v2384 = vpow.pop %v2383
    %v2385 = vmul.f32 %v2372, 1.442695
    %v2386 = vpow.pop %v2385
    %v2387 = vmul.f32 %v2373, 1.442695
    %v2388 = vpow.pop %v2387
    %v2389 = vmul.f32 %v2374, 1.442695
    %v2390 = vpow.pop %v2389
    %v2391 = vld [vmem:[%s6] sm:$0xff]
    %v2392 = vld [vmem:[%s6 + $0x8] sm:$0xff]
    %v2393 = vld [vmem:[%s6 + $0x10] sm:$0xff]
    %v2394 = vld [vmem:[%s6 + $0x18] sm:$0xff]
    %v2395 = vld [vmem:[%s6 + $0x20] sm:$0xff]
    %v2396 = vld [vmem:[%s6 + $0x28] sm:$0xff]
    %v2397 = vld [vmem:[%s6 + $0x30] sm:$0xff]
    %v2398 = vld [vmem:[%s6 + $0x38] sm:$0xff]
    %v2399 = vmul.f32 %v2376, %v2391
    %v2400 = vmul.f32 %v2378, %v2392
    %v2401 = vmul.f32 %v2380, %v2393
    %v2402 = vmul.f32 %v2382, %v2394
    %v2403 = vmul.f32 %v2384, %v2395
    %v2404 = vmul.f32 %v2386, %v2396
    %v2405 = vmul.f32 %v2388, %v2397
    %v2406 = vmul.f32 %v2390, %v2398
    %v2407 = vsel %vm364, %v2399, 0.0
    %v2408 = vsel %vm364, %v2400, 0.0
    %v2409 = vadd.f32 %v2407, %v2408
    %v2410 = vsel %vm364, %v2401, 0.0
    %v2411 = vadd.f32 %v2409, %v2410
    %v2412 = vsel %vm364, %v2402, 0.0
    %v2413 = vadd.f32 %v2411, %v2412
    %v2414 = vsel %vm364, %v2403, 0.0
    %v2415 = vadd.f32 %v2413, %v2414
    %v2416 = vsel %vm364, %v2404, 0.0
    %v2417 = vadd.f32 %v2415, %v2416
    %v2418 = vsel %vm364, %v2405, 0.0
    %v2419 = vadd.f32 %v2417, %v2418
    %v2420 = vsel %vm364, %v2406, 0.0
    %v2421 = vadd.f32 %v2419, %v2420
    %v2422 = vld [vmem:[#allocation7] sm:$0xff]
    %v2423 = vld [vmem:[#allocation7 + $0x8] sm:$0xff]
    %v2424 = vld [vmem:[#allocation7 + $0x10] sm:$0xff]
    %v2425 = vld [vmem:[#allocation7 + $0x18] sm:$0xff]
    %v2426 = vld [vmem:[#allocation7 + $0x20] sm:$0xff]
    %v2427 = vld [vmem:[#allocation7 + $0x28] sm:$0xff]
    %v2428 = vld [vmem:[#allocation7 + $0x30] sm:$0xff]
    %v2429 = vld [vmem:[#allocation7 + $0x38] sm:$0xff]
    %2431 = vset.pattern.permute.xlu0 0
    %2432 = vperm.xlu0 %2431, %v2399
    %v2433 = vpop.permute.xlu0 %2432
    %2436 = vset.pattern.permute.xlu0 0
    %2437 = vperm.xlu0 %2436, %v2400
    %v2438 = vpop.permute.xlu0 %2437
    %2441 = vset.pattern.permute.xlu0 0
    %2442 = vperm.xlu0 %2441, %v2401
    %v2443 = vpop.permute.xlu0 %2442
    %2446 = vset.pattern.permute.xlu0 0
    %2447 = vperm.xlu0 %2446, %v2402
    %v2448 = vpop.permute.xlu0 %2447
    %2451 = vset.pattern.permute.xlu0 0
    %2452 = vperm.xlu0 %2451, %v2403
    %v2453 = vpop.permute.xlu0 %2452
    %2456 = vset.pattern.permute.xlu0 0
    %2457 = vperm.xlu0 %2456, %v2404
    %v2458 = vpop.permute.xlu0 %2457
    %2461 = vset.pattern.permute.xlu0 0
    %2462 = vperm.xlu0 %2461, %v2405
    %v2463 = vpop.permute.xlu0 %2462
    %2466 = vset.pattern.permute.xlu0 0
    %2467 = vperm.xlu0 %2466, %v2406
    %v2468 = vpop.permute.xlu0 %2467
    %v2470 = vmul.f32 %v2433, %v2422
    %v2471 = vmul.f32 %v2438, %v2423
    %v2472 = vmul.f32 %v2443, %v2424
    %v2473 = vmul.f32 %v2448, %v2425
    %v2474 = vmul.f32 %v2453, %v2426
    %v2475 = vmul.f32 %v2458, %v2427
    %v2476 = vmul.f32 %v2463, %v2428
    %v2477 = vmul.f32 %v2468, %v2429
    %v2478 = vsel %vm144, %v2470, 0.0
    %v2479 = vsel %vm144, %v2471, 0.0
    %v2480 = vadd.f32 %v2478, %v2479
    %v2481 = vsel %vm144, %v2472, 0.0
    %v2482 = vadd.f32 %v2480, %v2481
    %v2483 = vsel %vm144, %v2473, 0.0
    %v2484 = vadd.f32 %v2482, %v2483
    %v2485 = vsel %vm144, %v2474, 0.0
    %v2486 = vadd.f32 %v2484, %v2485
    %v2487 = vsel %vm144, %v2475, 0.0
    %v2488 = vadd.f32 %v2486, %v2487
    %v2489 = vsel %vm144, %v2476, 0.0
    %v2490 = vadd.f32 %v2488, %v2489
    %v2491 = vsel %vm144, %v2477, 0.0
    %v2492 = vadd.f32 %v2490, %v2491
    %v2493 = vrcp.pop %v2421
    %2495 = vset.pattern.permute.xlu0 0
    %2496 = vperm.xlu0 %2495, %v2493
    %v2497 = vpop.permute.xlu0 %2496
    %v2499 = vmul.f32 %v2492, %v2497
    %v2500 = vld [vmem:[#allocation10] sm:$0xff]
    %v2501 = vld [vmem:[#allocation10 + $0x8] sm:$0xff]
    %v2502 = vld [vmem:[#allocation10 + $0x10] sm:$0xff]
    %v2503 = vld [vmem:[#allocation10 + $0x18] sm:$0xff]
    %v2504 = vld [vmem:[#allocation10 + $0x20] sm:$0xff]
    %v2505 = vld [vmem:[#allocation10 + $0x28] sm:$0xff]
    %v2506 = vld [vmem:[#allocation10 + $0x30] sm:$0xff]
    %v2507 = vld [vmem:[#allocation10 + $0x38] sm:$0xff]
    %v2508 = vld [vmem:[#allocation10 + $0x40] sm:$0xff]
    %v2509 = vld [vmem:[#allocation10 + $0x48] sm:$0xff]
    %v2510 = vld [vmem:[#allocation10 + $0x50] sm:$0xff]
    %v2511 = vld [vmem:[#allocation10 + $0x58] sm:$0xff]
    %v2513 = vsel %vm144, %v2499, 0
    %2515 = vmatprep.subr.mxu0 0.0
    %2516 = vmatpush1.msra.mxu0 0.0
    %2517 = vmatprep.subr.mxu0 0.0
    %2518 = vmatpush1.msra.mxu0 0.0
    %2519 = vmatprep.subr.mxu0 0.0
    %2520 = vmatpush1.msra.mxu0 0.0
    %2521 = vmatprep.subr.mxu0 0.0
    %2522 = vmatpush1.msra.mxu0 0.0
    %2523 = vmatprep.subr.mxu0 0.0
    %2524 = vmatpush1.msra.mxu0 0.0
    %2525 = vmatprep.subr.mxu0 0.0
    %2526 = vmatpush1.msra.mxu0 0.0
    %2527 = vmatprep.subr.mxu0 0.0
    %2528 = vmatpush1.msra.mxu0 0.0
    %2529 = vmatprep.subr.mxu0 0.0
    %2530 = vmatpush1.msra.mxu0 0.0
    %2531 = vmatprep.subr.mxu0 0.0
    %2532 = vmatpush1.msra.mxu0 0.0
    %2533 = vmatprep.subr.mxu0 0.0
    %2534 = vmatpush1.msra.mxu0 0.0
    %2535 = vmatprep.subr.mxu0 0.0
    %2536 = vmatpush1.msra.mxu0 0.0
    %2537 = vmatprep.subr.mxu0 0.0
    %2538 = vmatpush1.msra.mxu0 0.0
    %2539 = vmatprep.subr.mxu0 %v2510
    %2540 = vmatpush1.msra.mxu0 %v2509
    %2541 = vmatprep.subr.mxu0 %v2507
    %2542 = vmatpush1.msra.mxu0 %v2506
    %2543 = vmatprep.subr.mxu0 %v2504
    %2544 = vmatpush1.msra.mxu0 %v2503
    %2545 = vmatprep.subr.mxu0 %v2501
    %2546 = vmatpush1.msra.mxu0 %v2500
    %2547 = vmatprep.subr.mxu0 0.0
    %2548 = vmatpush2.msra.mxu0 0.0
    %2549 = vmatprep.subr.mxu0 0.0
    %2550 = vmatpush2.msra.mxu0 0.0
    %2551 = vmatprep.subr.mxu0 0.0
    %2552 = vmatpush2.msra.mxu0 0.0
    %2553 = vmatprep.subr.mxu0 0.0
    %2554 = vmatpush2.msra.mxu0 0.0
    %2555 = vmatprep.subr.mxu0 0.0
    %2556 = vmatpush2.msra.mxu0 0.0
    %2557 = vmatprep.subr.mxu0 0.0
    %2558 = vmatpush2.msra.mxu0 0.0
    %2559 = vmatprep.subr.mxu0 0.0
    %2560 = vmatpush2.msra.mxu0 0.0
    %2561 = vmatprep.subr.mxu0 0.0
    %2562 = vmatpush2.msra.mxu0 0.0
    %2563 = vmatprep.subr.mxu0 0.0
    %2564 = vmatpush2.msra.mxu0 0.0
    %2565 = vmatprep.subr.mxu0 0.0
    %2566 = vmatpush2.msra.mxu0 0.0
    %2567 = vmatprep.subr.mxu0 0.0
    %2568 = vmatpush2.msra.mxu0 0.0
    %2569 = vmatprep.subr.mxu0 0.0
    %2570 = vmatpush2.msra.mxu0 0.0
    %2571 = vmatprep.subr.mxu0 0.0
    %2572 = vmatpush2.msra.mxu0 0.0
    %2573 = vmatprep.subr.mxu0 0.0
    %2574 = vmatpush2.msra.mxu0 0.0
    %2575 = vmatprep.subr.mxu0 0.0
    %2576 = vmatpush2.msra.mxu0 0.0
    %2577 = vmatprep.subr.mxu0 0.0
    %2578 = vmatpush2.msra.mxu0 0.0
    %2579 = vmatprep.mubr.f32.mxu0 0.0
    %2580 = vmatmul.mubr.f32.gmra.mxu0 %v2513
    %v2581 = vpop.f32.mrf.mxu0
    %v2582 = vadd.f32 0.0, %v2581
    %v2583 = vpop.f32.mrf.mxu0
    %v2584 = vadd.f32 0.0, %v2583
    %2585 = vdwg.mxu0
    %2586 = vmatprep.subr.mxu0 0.0
    %2587 = vmatpush1.msra.mxu0 0.0
    %2588 = vmatprep.subr.mxu0 0.0
    %2589 = vmatpush1.msra.mxu0 0.0
    %2590 = vmatprep.subr.mxu0 0.0
    %2591 = vmatpush1.msra.mxu0 0.0
    %2592 = vmatprep.subr.mxu0 0.0
    %2593 = vmatpush1.msra.mxu0 0.0
    %2594 = vmatprep.subr.mxu0 0.0
    %2595 = vmatpush1.msra.mxu0 0.0
    %2596 = vmatprep.subr.mxu0 0.0
    %2597 = vmatpush1.msra.mxu0 0.0
    %2598 = vmatprep.subr.mxu0 0.0
    %2599 = vmatpush1.msra.mxu0 0.0
    %2600 = vmatprep.subr.mxu0 0.0
    %2601 = vmatpush1.msra.mxu0 0.0
    %2602 = vmatprep.subr.mxu0 0.0
    %2603 = vmatpush1.msra.mxu0 0.0
    %2604 = vmatprep.subr.mxu0 0.0
    %2605 = vmatpush1.msra.mxu0 0.0
    %2606 = vmatprep.subr.mxu0 0.0
    %2607 = vmatpush1.msra.mxu0 0.0
    %2608 = vmatprep.subr.mxu0 0.0
    %2609 = vmatpush1.msra.mxu0 0.0
    %2610 = vmatprep.subr.mxu0 0.0
    %2611 = vmatpush1.msra.mxu0 %v2511
    %2612 = vmatprep.subr.mxu0 0.0
    %2613 = vmatpush1.msra.mxu0 %v2508
    %2614 = vmatprep.subr.mxu0 0.0
    %2615 = vmatpush1.msra.mxu0 %v2505
    %2616 = vmatprep.subr.mxu0 0.0
    %2617 = vmatpush1.msra.mxu0 %v2502
    %2618 = vmatprep.subr.mxu0 0.0
    %2619 = vmatpush2.msra.mxu0 0.0
    %2620 = vmatprep.subr.mxu0 0.0
    %2621 = vmatpush2.msra.mxu0 0.0
    %2622 = vmatprep.subr.mxu0 0.0
    %2623 = vmatpush2.msra.mxu0 0.0
    %2624 = vmatprep.subr.mxu0 0.0
    %2625 = vmatpush2.msra.mxu0 0.0
    %2626 = vmatprep.subr.mxu0 0.0
    %2627 = vmatpush2.msra.mxu0 0.0
    %2628 = vmatprep.subr.mxu0 0.0
    %2629 = vmatpush2.msra.mxu0 0.0
    %2630 = vmatprep.subr.mxu0 0.0
    %2631 = vmatpush2.msra.mxu0 0.0
    %2632 = vmatprep.subr.mxu0 0.0
    %2633 = vmatpush2.msra.mxu0 0.0
    %2634 = vmatprep.subr.mxu0 0.0
    %2635 = vmatpush2.msra.mxu0 0.0
    %2636 = vmatprep.subr.mxu0 0.0
    %2637 = vmatpush2.msra.mxu0 0.0
    %2638 = vmatprep.subr.mxu0 0.0
    %2639 = vmatpush2.msra.mxu0 0.0
    %2640 = vmatprep.subr.mxu0 0.0
    %2641 = vmatpush2.msra.mxu0 0.0
    %2642 = vmatprep.subr.mxu0 0.0
    %2643 = vmatpush2.msra.mxu0 0.0
    %2644 = vmatprep.subr.mxu0 0.0
    %2645 = vmatpush2.msra.mxu0 0.0
    %2646 = vmatprep.subr.mxu0 0.0
    %2647 = vmatpush2.msra.mxu0 0.0
    %2648 = vmatprep.subr.mxu0 0.0
    %2649 = vmatpush2.msra.mxu0 0.0
    %2650 = vmatprep.mubr.f32.mxu0 0.0
    %2651 = vmatmul.mubr.f32.gmra.mxu0 %v2513
    %v2652 = vpop.f32.mrf.mxu0
    %v2653 = vadd.f32 0.0, %v2652
    %v2654 = vpop.f32.mrf.mxu0
    %2655 = vdwg.mxu0
    %s2656 = scalar_lea.vmem [#allocation2], 24
    %v2657 = vld [vmem:[%s2656] sm:$0xff]
    %v2658 = vadd.f32 %v2657, %v2194
    %v2659 = vadd.f32 %v2658, %v2582
    %v2660 = vxor.u32 %v2659, 2147483648
    %v2661 = vmul.f32 %v2660, 1.442695
    %v2662 = vpow.pop %v2661
    %v2663 = vadd.f32 %v2662, 1.0
    %v2664 = vrcp.pop %v2663
    %v2665 = vmul.f32 1.0, %v2664
    %v2666 = vadd.f32 %v2194, %v679
    %2668 = vrot.lane.b32.xlu0 %v2666, 96
    %v2669 = vpop.permute.xlu0 %2668
    %v2671 = vmul.f32 %v2665, %v2669
    %2673 = vrot.lane.b32.xlu0 %v2671, 32
    %v2674 = vpop.permute.xlu0 %2673
    %v2676 = vadd.f32 %v2657, %v2674
    %v2677 = vadd.f32 %v2676, %v2582
    %v2678 = vtanh.pop %v2677
    %s2679 = scalar_lea.vmem %s2, 24
    %v2680 = vld [vmem:[%s2679] sm:$0xff]
    %v2681 = vsub.f32 1.0, %v2665
    %v2682 = vmul.f32 %v2681, %v2034
    %2684 = vrot.lane.b32.xlu0 %v2678, 64
    %v2685 = vpop.permute.xlu0 %2684
    %v2687 = vmul.f32 %v2665, %v2685
    %v2688 = vadd.f32 %v2682, %v2687
    %2690 = vset.pattern.permute.xlu0 0
    %2691 = vperm.xlu0 %2690, %v2680
    %v2692 = vpop.permute.xlu0 %2691
    %v2694 = vmul.f32 %v2692, %v2688
    %v2695 = vsub.f32 1.0, %v2680
    %2697 = vset.pattern.permute.xlu0 0
    %2698 = vperm.xlu0 %2697, %v2695
    %v2699 = vpop.permute.xlu0 %2698
    %v2701 = vmul.f32 %v2699, %v2034
    %v2702 = vadd.f32 %v2694, %v2701
    %v2703 = vld [vmem:[%s7] sm:$0xff]
    %v2704 = vld [vmem:[%s7 + $0x8] sm:$0xff]
    %v2705 = vld [vmem:[%s7 + $0x10] sm:$0xff]
    %v2706 = vld [vmem:[%s7 + $0x18] sm:$0xff]
    %v2707 = vld [vmem:[%s7 + $0x20] sm:$0xff]
    %v2708 = vld [vmem:[%s7 + $0x28] sm:$0xff]
    %v2709 = vld [vmem:[%s7 + $0x30] sm:$0xff]
    %v2710 = vld [vmem:[%s7 + $0x38] sm:$0xff]
    %v2711 = vld [vmem:[%s7 + $0x40] sm:$0xff]
    %v2712 = vld [vmem:[%s7 + $0x48] sm:$0xff]
    %v2713 = vld [vmem:[%s7 + $0x50] sm:$0xff]
    %v2714 = vld [vmem:[%s7 + $0x58] sm:$0xff]
    %v2715 = vld [vmem:[%s7 + $0x60] sm:$0xff]
    %v2716 = vld [vmem:[%s7 + $0x68] sm:$0xff]
    %v2717 = vld [vmem:[%s7 + $0x70] sm:$0xff]
    %v2718 = vld [vmem:[%s7 + $0x78] sm:$0xff]
    %v2720 = vsel %vm144, %v2702, 0
    %2722 = vmatprep.subr.mxu0 0.0
    %2723 = vmatpush1.msra.mxu0 0.0
    %2724 = vmatprep.subr.mxu0 0.0
    %2725 = vmatpush1.msra.mxu0 0.0
    %2726 = vmatprep.subr.mxu0 0.0
    %2727 = vmatpush1.msra.mxu0 0.0
    %2728 = vmatprep.subr.mxu0 0.0
    %2729 = vmatpush1.msra.mxu0 0.0
    %2730 = vmatprep.subr.mxu0 0.0
    %2731 = vmatpush1.msra.mxu0 0.0
    %2732 = vmatprep.subr.mxu0 0.0
    %2733 = vmatpush1.msra.mxu0 0.0
    %2734 = vmatprep.subr.mxu0 0.0
    %2735 = vmatpush1.msra.mxu0 0.0
    %2736 = vmatprep.subr.mxu0 0.0
    %2737 = vmatpush1.msra.mxu0 0.0
    %2738 = vmatprep.subr.mxu0 0.0
    %2739 = vmatpush1.msra.mxu0 0.0
    %2740 = vmatprep.subr.mxu0 0.0
    %2741 = vmatpush1.msra.mxu0 0.0
    %2742 = vmatprep.subr.mxu0 0.0
    %2743 = vmatpush1.msra.mxu0 0.0
    %2744 = vmatprep.subr.mxu0 0.0
    %2745 = vmatpush1.msra.mxu0 0.0
    %2746 = vmatprep.subr.mxu0 %v2716
    %2747 = vmatpush1.msra.mxu0 %v2715
    %2748 = vmatprep.subr.mxu0 %v2712
    %2749 = vmatpush1.msra.mxu0 %v2711
    %2750 = vmatprep.subr.mxu0 %v2708
    %2751 = vmatpush1.msra.mxu0 %v2707
    %2752 = vmatprep.subr.mxu0 %v2704
    %2753 = vmatpush1.msra.mxu0 %v2703
    %2754 = vmatprep.subr.mxu0 0.0
    %2755 = vmatpush2.msra.mxu0 0.0
    %2756 = vmatprep.subr.mxu0 0.0
    %2757 = vmatpush2.msra.mxu0 0.0
    %2758 = vmatprep.subr.mxu0 0.0
    %2759 = vmatpush2.msra.mxu0 0.0
    %2760 = vmatprep.subr.mxu0 0.0
    %2761 = vmatpush2.msra.mxu0 0.0
    %2762 = vmatprep.subr.mxu0 0.0
    %2763 = vmatpush2.msra.mxu0 0.0
    %2764 = vmatprep.subr.mxu0 0.0
    %2765 = vmatpush2.msra.mxu0 0.0
    %2766 = vmatprep.subr.mxu0 0.0
    %2767 = vmatpush2.msra.mxu0 0.0
    %2768 = vmatprep.subr.mxu0 0.0
    %2769 = vmatpush2.msra.mxu0 0.0
    %2770 = vmatprep.subr.mxu0 0.0
    %2771 = vmatpush2.msra.mxu0 0.0
    %2772 = vmatprep.subr.mxu0 0.0
    %2773 = vmatpush2.msra.mxu0 0.0
    %2774 = vmatprep.subr.mxu0 0.0
    %2775 = vmatpush2.msra.mxu0 0.0
    %2776 = vmatprep.subr.mxu0 0.0
    %2777 = vmatpush2.msra.mxu0 0.0
    %2778 = vmatprep.subr.mxu0 0.0
    %2779 = vmatpush2.msra.mxu0 0.0
    %2780 = vmatprep.subr.mxu0 0.0
    %2781 = vmatpush2.msra.mxu0 0.0
    %2782 = vmatprep.subr.mxu0 0.0
    %2783 = vmatpush2.msra.mxu0 0.0
    %2784 = vmatprep.subr.mxu0 0.0
    %2785 = vmatpush2.msra.mxu0 0.0
    %2786 = vmatprep.mubr.f32.mxu0 0.0
    %2787 = vmatmul.mubr.f32.gmra.mxu0 %v2720
    %v2788 = vpop.f32.mrf.mxu0
    %v2789 = vadd.f32 0.0, %v2788
    %v2790 = vpop.f32.mrf.mxu0
    %v2791 = vadd.f32 0.0, %v2790
    %2792 = vdwg.mxu0
    %2793 = vmatprep.subr.mxu0 0.0
    %2794 = vmatpush1.msra.mxu0 0.0
    %2795 = vmatprep.subr.mxu0 0.0
    %2796 = vmatpush1.msra.mxu0 0.0
    %2797 = vmatprep.subr.mxu0 0.0
    %2798 = vmatpush1.msra.mxu0 0.0
    %2799 = vmatprep.subr.mxu0 0.0
    %2800 = vmatpush1.msra.mxu0 0.0
    %2801 = vmatprep.subr.mxu0 0.0
    %2802 = vmatpush1.msra.mxu0 0.0
    %2803 = vmatprep.subr.mxu0 0.0
    %2804 = vmatpush1.msra.mxu0 0.0
    %2805 = vmatprep.subr.mxu0 0.0
    %2806 = vmatpush1.msra.mxu0 0.0
    %2807 = vmatprep.subr.mxu0 0.0
    %2808 = vmatpush1.msra.mxu0 0.0
    %2809 = vmatprep.subr.mxu0 0.0
    %2810 = vmatpush1.msra.mxu0 0.0
    %2811 = vmatprep.subr.mxu0 0.0
    %2812 = vmatpush1.msra.mxu0 0.0
    %2813 = vmatprep.subr.mxu0 0.0
    %2814 = vmatpush1.msra.mxu0 0.0
    %2815 = vmatprep.subr.mxu0 0.0
    %2816 = vmatpush1.msra.mxu0 0.0
    %2817 = vmatprep.subr.mxu0 %v2718
    %2818 = vmatpush1.msra.mxu0 %v2717
    %2819 = vmatprep.subr.mxu0 %v2714
    %2820 = vmatpush1.msra.mxu0 %v2713
    %2821 = vmatprep.subr.mxu0 %v2710
    %2822 = vmatpush1.msra.mxu0 %v2709
    %2823 = vmatprep.subr.mxu0 %v2706
    %2824 = vmatpush1.msra.mxu0 %v2705
    %2825 = vmatprep.subr.mxu0 0.0
    %2826 = vmatpush2.msra.mxu0 0.0
    %2827 = vmatprep.subr.mxu0 0.0
    %2828 = vmatpush2.msra.mxu0 0.0
    %2829 = vmatprep.subr.mxu0 0.0
    %2830 = vmatpush2.msra.mxu0 0.0
    %2831 = vmatprep.subr.mxu0 0.0
    %2832 = vmatpush2.msra.mxu0 0.0
    %2833 = vmatprep.subr.mxu0 0.0
    %2834 = vmatpush2.msra.mxu0 0.0
    %2835 = vmatprep.subr.mxu0 0.0
    %2836 = vmatpush2.msra.mxu0 0.0
    %2837 = vmatprep.subr.mxu0 0.0
    %2838 = vmatpush2.msra.mxu0 0.0
    %2839 = vmatprep.subr.mxu0 0.0
    %2840 = vmatpush2.msra.mxu0 0.0
    %2841 = vmatprep.subr.mxu0 0.0
    %2842 = vmatpush2.msra.mxu0 0.0
    %2843 = vmatprep.subr.mxu0 0.0
    %2844 = vmatpush2.msra.mxu0 0.0
    %2845 = vmatprep.subr.mxu0 0.0
    %2846 = vmatpush2.msra.mxu0 0.0
    %2847 = vmatprep.subr.mxu0 0.0
    %2848 = vmatpush2.msra.mxu0 0.0
    %2849 = vmatprep.subr.mxu0 0.0
    %2850 = vmatpush2.msra.mxu0 0.0
    %2851 = vmatprep.subr.mxu0 0.0
    %2852 = vmatpush2.msra.mxu0 0.0
    %2853 = vmatprep.subr.mxu0 0.0
    %2854 = vmatpush2.msra.mxu0 0.0
    %2855 = vmatprep.subr.mxu0 0.0
    %2856 = vmatpush2.msra.mxu0 0.0
    %2857 = vmatprep.mubr.f32.mxu0 0.0
    %2858 = vmatmul.mubr.f32.gmra.mxu0 %v2720
    %v2859 = vpop.f32.mrf.mxu0
    %v2860 = vadd.f32 0.0, %v2859
    %v2861 = vpop.f32.mrf.mxu0
    %v2862 = vadd.f32 0.0, %v2861
    %2863 = vdwg.mxu0
    %v2864 = vadd.f32 %v2789, %v2584
    %v2865 = vadd.f32 %v2791, %v2653
    %s2866 = scalar_lea.vmem [#allocation5], 48
    %v2867 = vld [vmem:[%s2866] sm:$0xff]
    %v2868 = vld [vmem:[%s2866 + $0x8] sm:$0xff]
    %v2869 = vadd.f32 %v2864, %v2867
    %v2870 = vadd.f32 %v2865, %v2868
    %v2871 = vmax.f32 %v2869, %v2870
    %v2872 = vmul.f32 %v2871, %v2692
    %s2873 = scalar_lea.vmem [#allocation13], 24
    %2874 = vst [vmem:[%s2873] sm:$0xff] %v2872
    %v2875 = vld [vmem:[#allocation8] sm:$0xff]
    %v2876 = vld [vmem:[#allocation8 + $0x8] sm:$0xff]
    %v2877 = vld [vmem:[#allocation8 + $0x10] sm:$0xff]
    %v2878 = vld [vmem:[#allocation8 + $0x18] sm:$0xff]
    %v2879 = vld [vmem:[#allocation8 + $0x20] sm:$0xff]
    %v2880 = vld [vmem:[#allocation8 + $0x28] sm:$0xff]
    %v2881 = vld [vmem:[#allocation8 + $0x30] sm:$0xff]
    %v2882 = vld [vmem:[#allocation8 + $0x38] sm:$0xff]
    %v2883 = vadd.f32 %v2860, %v2875
    %v2884 = vadd.f32 %v2860, %v2876
    %v2885 = vadd.f32 %v2860, %v2877
    %v2886 = vadd.f32 %v2860, %v2878
    %v2887 = vadd.f32 %v2860, %v2879
    %v2888 = vadd.f32 %v2860, %v2880
    %v2889 = vadd.f32 %v2860, %v2881
    %v2890 = vadd.f32 %v2860, %v2882
    %v2891 = vtanh.pop %v2883
    %v2892 = vtanh.pop %v2884
    %v2893 = vtanh.pop %v2885
    %v2894 = vtanh.pop %v2886
    %v2895 = vtanh.pop %v2887
    %v2896 = vtanh.pop %v2888
    %v2897 = vtanh.pop %v2889
    %v2898 = vtanh.pop %v2890
    %v2899 = vld [vmem:[#allocation11] sm:$0xff]
    %v2900 = vld [vmem:[#allocation11 + $0x8] sm:$0xff]
    %v2901 = vld [vmem:[#allocation11 + $0x10] sm:$0xff]
    %v2902 = vld [vmem:[#allocation11 + $0x18] sm:$0xff]
    %v2903 = vld [vmem:[#allocation11 + $0x20] sm:$0xff]
    %v2904 = vld [vmem:[#allocation11 + $0x28] sm:$0xff]
    %v2905 = vld [vmem:[#allocation11 + $0x30] sm:$0xff]
    %v2906 = vld [vmem:[#allocation11 + $0x38] sm:$0xff]
    %v2907 = vld [vmem:[#allocation11 + $0x40] sm:$0xff]
    %v2908 = vld [vmem:[#allocation11 + $0x48] sm:$0xff]
    %v2909 = vld [vmem:[#allocation11 + $0x50] sm:$0xff]
    %v2910 = vld [vmem:[#allocation11 + $0x58] sm:$0xff]
    %v2911 = vld [vmem:[#allocation11 + $0x60] sm:$0xff]
    %v2912 = vld [vmem:[#allocation11 + $0x68] sm:$0xff]
    %v2913 = vld [vmem:[#allocation11 + $0x70] sm:$0xff]
    %v2914 = vld [vmem:[#allocation11 + $0x78] sm:$0xff]
    %2915 = vmatprep.subr.mxu0 0.0
    %2916 = vmatpush1.msra.mxu0 %v2914
    %2917 = vmatprep.subr.mxu0 0.0
    %2918 = vmatpush1.msra.mxu0 %v2913
    %2919 = vmatprep.subr.mxu0 0.0
    %2920 = vmatpush1.msra.mxu0 %v2912
    %2921 = vmatprep.subr.mxu0 0.0
    %2922 = vmatpush1.msra.mxu0 %v2911
    %2923 = vmatprep.subr.mxu0 0.0
    %2924 = vmatpush1.msra.mxu0 %v2910
    %2925 = vmatprep.subr.mxu0 0.0
    %2926 = vmatpush1.msra.mxu0 %v2909
    %2927 = vmatprep.subr.mxu0 0.0
    %2928 = vmatpush1.msra.mxu0 %v2908
    %2929 = vmatprep.subr.mxu0 0.0
    %2930 = vmatpush1.msra.mxu0 %v2907
    %2931 = vmatprep.subr.mxu0 0.0
    %2932 = vmatpush1.msra.mxu0 %v2906
    %2933 = vmatprep.subr.mxu0 0.0
    %2934 = vmatpush1.msra.mxu0 %v2905
    %2935 = vmatprep.subr.mxu0 0.0
    %2936 = vmatpush1.msra.mxu0 %v2904
    %2937 = vmatprep.subr.mxu0 0.0
    %2938 = vmatpush1.msra.mxu0 %v2903
    %2939 = vmatprep.subr.mxu0 0.0
    %2940 = vmatpush1.msra.mxu0 %v2902
    %2941 = vmatprep.subr.mxu0 0.0
    %2942 = vmatpush1.msra.mxu0 %v2901
    %2943 = vmatprep.subr.mxu0 0.0
    %2944 = vmatpush1.msra.mxu0 %v2900
    %2945 = vmatprep.subr.mxu0 0.0
    %2946 = vmatpush1.msra.mxu0 %v2899
    %2947 = vmatprep.subr.mxu0 0.0
    %2948 = vmatpush2.msra.mxu0 0.0
    %2949 = vmatprep.subr.mxu0 0.0
    %2950 = vmatpush2.msra.mxu0 0.0
    %2951 = vmatprep.subr.mxu0 0.0
    %2952 = vmatpush2.msra.mxu0 0.0
    %2953 = vmatprep.subr.mxu0 0.0
    %2954 = vmatpush2.msra.mxu0 0.0
    %2955 = vmatprep.subr.mxu0 0.0
    %2956 = vmatpush2.msra.mxu0 0.0
    %2957 = vmatprep.subr.mxu0 0.0
    %2958 = vmatpush2.msra.mxu0 0.0
    %2959 = vmatprep.subr.mxu0 0.0
    %2960 = vmatpush2.msra.mxu0 0.0
    %2961 = vmatprep.subr.mxu0 0.0
    %2962 = vmatpush2.msra.mxu0 0.0
    %2963 = vmatprep.subr.mxu0 0.0
    %2964 = vmatpush2.msra.mxu0 0.0
    %2965 = vmatprep.subr.mxu0 0.0
    %2966 = vmatpush2.msra.mxu0 0.0
    %2967 = vmatprep.subr.mxu0 0.0
    %2968 = vmatpush2.msra.mxu0 0.0
    %2969 = vmatprep.subr.mxu0 0.0
    %2970 = vmatpush2.msra.mxu0 0.0
    %2971 = vmatprep.subr.mxu0 0.0
    %2972 = vmatpush2.msra.mxu0 0.0
    %2973 = vmatprep.subr.mxu0 0.0
    %2974 = vmatpush2.msra.mxu0 0.0
    %2975 = vmatprep.subr.mxu0 0.0
    %2976 = vmatpush2.msra.mxu0 0.0
    %2977 = vmatprep.subr.mxu0 0.0
    %2978 = vmatpush2.msra.mxu0 0.0
    %2979 = vmatprep.mubr.f32.mxu0 0.0
    %2980 = vmatmul.mubr.f32.gmra.mxu0 %v2891
    %v2981 = vpop.f32.mrf.mxu0
    %v2982 = vadd.f32 0.0, %v2981
    %v2983 = vpop.f32.mrf.mxu0
    %2984 = vmatprep.mubr.f32.mxu0 0.0
    %2985 = vmatmul.mubr.f32.gmra.mxu0 %v2892
    %v2986 = vpop.f32.mrf.mxu0
    %v2987 = vadd.f32 0.0, %v2986
    %v2988 = vpop.f32.mrf.mxu0
    %2989 = vmatprep.mubr.f32.mxu0 0.0
    %2990 = vmatmul.mubr.f32.gmra.mxu0 %v2893
    %v2991 = vpop.f32.mrf.mxu0
    %v2992 = vadd.f32 0.0, %v2991
    %v2993 = vpop.f32.mrf.mxu0
    %2994 = vmatprep.mubr.f32.mxu0 0.0
    %2995 = vmatmul.mubr.f32.gmra.mxu0 %v2894
    %v2996 = vpop.f32.mrf.mxu0
    %v2997 = vadd.f32 0.0, %v2996
    %v2998 = vpop.f32.mrf.mxu0
    %2999 = vmatprep.mubr.f32.mxu0 0.0
    %3000 = vmatmul.mubr.f32.gmra.mxu0 %v2895
    %v3001 = vpop.f32.mrf.mxu0
    %v3002 = vadd.f32 0.0, %v3001
    %v3003 = vpop.f32.mrf.mxu0
    %3004 = vmatprep.mubr.f32.mxu0 0.0
    %3005 = vmatmul.mubr.f32.gmra.mxu0 %v2896
    %v3006 = vpop.f32.mrf.mxu0
    %v3007 = vadd.f32 0.0, %v3006
    %v3008 = vpop.f32.mrf.mxu0
    %3009 = vmatprep.mubr.f32.mxu0 0.0
    %3010 = vmatmul.mubr.f32.gmra.mxu0 %v2897
    %v3011 = vpop.f32.mrf.mxu0
    %v3012 = vadd.f32 0.0, %v3011
    %v3013 = vpop.f32.mrf.mxu0
    %3014 = vmatprep.mubr.f32.mxu0 0.0
    %3015 = vmatmul.mubr.f32.gmra.mxu0 %v2898
    %v3016 = vpop.f32.mrf.mxu0
    %v3017 = vadd.f32 0.0, %v3016
    %v3018 = vpop.f32.mrf.mxu0
    %3019 = vdwg.mxu0
    %v3020 = vsel %vm364, %v2982, -inf
    %v3021 = vsel %vm364, %v2987, -inf
    %v3022 = vsel %vm364, %v2992, -inf
    %v3023 = vsel %vm364, %v2997, -inf
    %v3024 = vsel %vm364, %v3002, -inf
    %v3025 = vmax.f32 %v3020, %v3024
    %v3026 = vsel %vm364, %v3007, -inf
    %v3027 = vmax.f32 %v3021, %v3026
    %v3028 = vsel %vm364, %v3012, -inf
    %v3029 = vmax.f32 %v3022, %v3028
    %v3030 = vsel %vm364, %v3017, -inf
    %v3031 = vmax.f32 %v3023, %v3030
    %v3032 = vmax.f32 %v3025, %v3027
    %v3033 = vmax.f32 %v3029, %v3031
    %v3034 = vmax.f32 %v3032, %v3033
    %v3035 = vsub.f32 %v2982, %v3034
    %v3036 = vsub.f32 %v2987, %v3034
    %v3037 = vsub.f32 %v2992, %v3034
    %v3038 = vsub.f32 %v2997, %v3034
    %v3039 = vsub.f32 %v3002, %v3034
    %v3040 = vsub.f32 %v3007, %v3034
    %v3041 = vsub.f32 %v3012, %v3034
    %v3042 = vsub.f32 %v3017, %v3034
    %v3043 = vmul.f32 %v3035, 1.442695
    %v3044 = vpow.pop %v3043
    %v3045 = vmul.f32 %v3036, 1.442695
    %v3046 = vpow.pop %v3045
    %v3047 = vmul.f32 %v3037, 1.442695
    %v3048 = vpow.pop %v3047
    %v3049 = vmul.f32 %v3038, 1.442695
    %v3050 = vpow.pop %v3049
    %v3051 = vmul.f32 %v3039, 1.442695
    %v3052 = vpow.pop %v3051
    %v3053 = vmul.f32 %v3040, 1.442695
    %v3054 = vpow.pop %v3053
    %v3055 = vmul.f32 %v3041, 1.442695
    %v3056 = vpow.pop %v3055
    %v3057 = vmul.f32 %v3042, 1.442695
    %v3058 = vpow.pop %v3057
    %v3059 = vld [vmem:[%s6] sm:$0xff]
    %v3060 = vld [vmem:[%s6 + $0x8] sm:$0xff]
    %v3061 = vld [vmem:[%s6 + $0x10] sm:$0xff]
    %v3062 = vld [vmem:[%s6 + $0x18] sm:$0xff]
    %v3063 = vld [vmem:[%s6 + $0x20] sm:$0xff]
    %v3064 = vld [vmem:[%s6 + $0x28] sm:$0xff]
    %v3065 = vld [vmem:[%s6 + $0x30] sm:$0xff]
    %v3066 = vld [vmem:[%s6 + $0x38] sm:$0xff]
    %v3067 = vmul.f32 %v3044, %v3059
    %v3068 = vmul.f32 %v3046, %v3060
    %v3069 = vmul.f32 %v3048, %v3061
    %v3070 = vmul.f32 %v3050, %v3062
    %v3071 = vmul.f32 %v3052, %v3063
    %v3072 = vmul.f32 %v3054, %v3064
    %v3073 = vmul.f32 %v3056, %v3065
    %v3074 = vmul.f32 %v3058, %v3066
    %v3075 = vsel %vm364, %v3067, 0.0
    %v3076 = vsel %vm364, %v3068, 0.0
    %v3077 = vadd.f32 %v3075, %v3076
    %v3078 = vsel %vm364, %v3069, 0.0
    %v3079 = vadd.f32 %v3077, %v3078
    %v3080 = vsel %vm364, %v3070, 0.0
    %v3081 = vadd.f32 %v3079, %v3080
    %v3082 = vsel %vm364, %v3071, 0.0
    %v3083 = vadd.f32 %v3081, %v3082
    %v3084 = vsel %vm364, %v3072, 0.0
    %v3085 = vadd.f32 %v3083, %v3084
    %v3086 = vsel %vm364, %v3073, 0.0
    %v3087 = vadd.f32 %v3085, %v3086
    %v3088 = vsel %vm364, %v3074, 0.0
    %v3089 = vadd.f32 %v3087, %v3088
    %v3090 = vld [vmem:[#allocation7] sm:$0xff]
    %v3091 = vld [vmem:[#allocation7 + $0x8] sm:$0xff]
    %v3092 = vld [vmem:[#allocation7 + $0x10] sm:$0xff]
    %v3093 = vld [vmem:[#allocation7 + $0x18] sm:$0xff]
    %v3094 = vld [vmem:[#allocation7 + $0x20] sm:$0xff]
    %v3095 = vld [vmem:[#allocation7 + $0x28] sm:$0xff]
    %v3096 = vld [vmem:[#allocation7 + $0x30] sm:$0xff]
    %v3097 = vld [vmem:[#allocation7 + $0x38] sm:$0xff]
    %3099 = vset.pattern.permute.xlu0 0
    %3100 = vperm.xlu0 %3099, %v3067
    %v3101 = vpop.permute.xlu0 %3100
    %3104 = vset.pattern.permute.xlu0 0
    %3105 = vperm.xlu0 %3104, %v3068
    %v3106 = vpop.permute.xlu0 %3105
    %3109 = vset.pattern.permute.xlu0 0
    %3110 = vperm.xlu0 %3109, %v3069
    %v3111 = vpop.permute.xlu0 %3110
    %3114 = vset.pattern.permute.xlu0 0
    %3115 = vperm.xlu0 %3114, %v3070
    %v3116 = vpop.permute.xlu0 %3115
    %3119 = vset.pattern.permute.xlu0 0
    %3120 = vperm.xlu0 %3119, %v3071
    %v3121 = vpop.permute.xlu0 %3120
    %3124 = vset.pattern.permute.xlu0 0
    %3125 = vperm.xlu0 %3124, %v3072
    %v3126 = vpop.permute.xlu0 %3125
    %3129 = vset.pattern.permute.xlu0 0
    %3130 = vperm.xlu0 %3129, %v3073
    %v3131 = vpop.permute.xlu0 %3130
    %3134 = vset.pattern.permute.xlu0 0
    %3135 = vperm.xlu0 %3134, %v3074
    %v3136 = vpop.permute.xlu0 %3135
    %v3138 = vmul.f32 %v3101, %v3090
    %v3139 = vmul.f32 %v3106, %v3091
    %v3140 = vmul.f32 %v3111, %v3092
    %v3141 = vmul.f32 %v3116, %v3093
    %v3142 = vmul.f32 %v3121, %v3094
    %v3143 = vmul.f32 %v3126, %v3095
    %v3144 = vmul.f32 %v3131, %v3096
    %v3145 = vmul.f32 %v3136, %v3097
    %v3146 = vsel %vm144, %v3138, 0.0
    %v3147 = vsel %vm144, %v3139, 0.0
    %v3148 = vadd.f32 %v3146, %v3147
    %v3149 = vsel %vm144, %v3140, 0.0
    %v3150 = vadd.f32 %v3148, %v3149
    %v3151 = vsel %vm144, %v3141, 0.0
    %v3152 = vadd.f32 %v3150, %v3151
    %v3153 = vsel %vm144, %v3142, 0.0
    %v3154 = vadd.f32 %v3152, %v3153
    %v3155 = vsel %vm144, %v3143, 0.0
    %v3156 = vadd.f32 %v3154, %v3155
    %v3157 = vsel %vm144, %v3144, 0.0
    %v3158 = vadd.f32 %v3156, %v3157
    %v3159 = vsel %vm144, %v3145, 0.0
    %v3160 = vadd.f32 %v3158, %v3159
    %v3161 = vrcp.pop %v3089
    %3163 = vset.pattern.permute.xlu0 0
    %3164 = vperm.xlu0 %3163, %v3161
    %v3165 = vpop.permute.xlu0 %3164
    %v3167 = vmul.f32 %v3160, %v3165
    %v3168 = vld [vmem:[#allocation10] sm:$0xff]
    %v3169 = vld [vmem:[#allocation10 + $0x8] sm:$0xff]
    %v3170 = vld [vmem:[#allocation10 + $0x10] sm:$0xff]
    %v3171 = vld [vmem:[#allocation10 + $0x18] sm:$0xff]
    %v3172 = vld [vmem:[#allocation10 + $0x20] sm:$0xff]
    %v3173 = vld [vmem:[#allocation10 + $0x28] sm:$0xff]
    %v3174 = vld [vmem:[#allocation10 + $0x30] sm:$0xff]
    %v3175 = vld [vmem:[#allocation10 + $0x38] sm:$0xff]
    %v3176 = vld [vmem:[#allocation10 + $0x40] sm:$0xff]
    %v3177 = vld [vmem:[#allocation10 + $0x48] sm:$0xff]
    %v3178 = vld [vmem:[#allocation10 + $0x50] sm:$0xff]
    %v3179 = vld [vmem:[#allocation10 + $0x58] sm:$0xff]
    %v3181 = vsel %vm144, %v3167, 0
    %3183 = vmatprep.subr.mxu0 0.0
    %3184 = vmatpush1.msra.mxu0 0.0
    %3185 = vmatprep.subr.mxu0 0.0
    %3186 = vmatpush1.msra.mxu0 0.0
    %3187 = vmatprep.subr.mxu0 0.0
    %3188 = vmatpush1.msra.mxu0 0.0
    %3189 = vmatprep.subr.mxu0 0.0
    %3190 = vmatpush1.msra.mxu0 0.0
    %3191 = vmatprep.subr.mxu0 0.0
    %3192 = vmatpush1.msra.mxu0 0.0
    %3193 = vmatprep.subr.mxu0 0.0
    %3194 = vmatpush1.msra.mxu0 0.0
    %3195 = vmatprep.subr.mxu0 0.0
    %3196 = vmatpush1.msra.mxu0 0.0
    %3197 = vmatprep.subr.mxu0 0.0
    %3198 = vmatpush1.msra.mxu0 0.0
    %3199 = vmatprep.subr.mxu0 0.0
    %3200 = vmatpush1.msra.mxu0 0.0
    %3201 = vmatprep.subr.mxu0 0.0
    %3202 = vmatpush1.msra.mxu0 0.0
    %3203 = vmatprep.subr.mxu0 0.0
    %3204 = vmatpush1.msra.mxu0 0.0
    %3205 = vmatprep.subr.mxu0 0.0
    %3206 = vmatpush1.msra.mxu0 0.0
    %3207 = vmatprep.subr.mxu0 %v3178
    %3208 = vmatpush1.msra.mxu0 %v3177
    %3209 = vmatprep.subr.mxu0 %v3175
    %3210 = vmatpush1.msra.mxu0 %v3174
    %3211 = vmatprep.subr.mxu0 %v3172
    %3212 = vmatpush1.msra.mxu0 %v3171
    %3213 = vmatprep.subr.mxu0 %v3169
    %3214 = vmatpush1.msra.mxu0 %v3168
    %3215 = vmatprep.subr.mxu0 0.0
    %3216 = vmatpush2.msra.mxu0 0.0
    %3217 = vmatprep.subr.mxu0 0.0
    %3218 = vmatpush2.msra.mxu0 0.0
    %3219 = vmatprep.subr.mxu0 0.0
    %3220 = vmatpush2.msra.mxu0 0.0
    %3221 = vmatprep.subr.mxu0 0.0
    %3222 = vmatpush2.msra.mxu0 0.0
    %3223 = vmatprep.subr.mxu0 0.0
    %3224 = vmatpush2.msra.mxu0 0.0
    %3225 = vmatprep.subr.mxu0 0.0
    %3226 = vmatpush2.msra.mxu0 0.0
    %3227 = vmatprep.subr.mxu0 0.0
    %3228 = vmatpush2.msra.mxu0 0.0
    %3229 = vmatprep.subr.mxu0 0.0
    %3230 = vmatpush2.msra.mxu0 0.0
    %3231 = vmatprep.subr.mxu0 0.0
    %3232 = vmatpush2.msra.mxu0 0.0
    %3233 = vmatprep.subr.mxu0 0.0
    %3234 = vmatpush2.msra.mxu0 0.0
    %3235 = vmatprep.subr.mxu0 0.0
    %3236 = vmatpush2.msra.mxu0 0.0
    %3237 = vmatprep.subr.mxu0 0.0
    %3238 = vmatpush2.msra.mxu0 0.0
    %3239 = vmatprep.subr.mxu0 0.0
    %3240 = vmatpush2.msra.mxu0 0.0
    %3241 = vmatprep.subr.mxu0 0.0
    %3242 = vmatpush2.msra.mxu0 0.0
    %3243 = vmatprep.subr.mxu0 0.0
    %3244 = vmatpush2.msra.mxu0 0.0
    %3245 = vmatprep.subr.mxu0 0.0
    %3246 = vmatpush2.msra.mxu0 0.0
    %3247 = vmatprep.mubr.f32.mxu0 0.0
    %3248 = vmatmul.mubr.f32.gmra.mxu0 %v3181
    %v3249 = vpop.f32.mrf.mxu0
    %v3250 = vadd.f32 0.0, %v3249
    %v3251 = vpop.f32.mrf.mxu0
    %v3252 = vadd.f32 0.0, %v3251
    %3253 = vdwg.mxu0
    %3254 = vmatprep.subr.mxu0 0.0
    %3255 = vmatpush1.msra.mxu0 0.0
    %3256 = vmatprep.subr.mxu0 0.0
    %3257 = vmatpush1.msra.mxu0 0.0
    %3258 = vmatprep.subr.mxu0 0.0
    %3259 = vmatpush1.msra.mxu0 0.0
    %3260 = vmatprep.subr.mxu0 0.0
    %3261 = vmatpush1.msra.mxu0 0.0
    %3262 = vmatprep.subr.mxu0 0.0
    %3263 = vmatpush1.msra.mxu0 0.0
    %3264 = vmatprep.subr.mxu0 0.0
    %3265 = vmatpush1.msra.mxu0 0.0
    %3266 = vmatprep.subr.mxu0 0.0
    %3267 = vmatpush1.msra.mxu0 0.0
    %3268 = vmatprep.subr.mxu0 0.0
    %3269 = vmatpush1.msra.mxu0 0.0
    %3270 = vmatprep.subr.mxu0 0.0
    %3271 = vmatpush1.msra.mxu0 0.0
    %3272 = vmatprep.subr.mxu0 0.0
    %3273 = vmatpush1.msra.mxu0 0.0
    %3274 = vmatprep.subr.mxu0 0.0
    %3275 = vmatpush1.msra.mxu0 0.0
    %3276 = vmatprep.subr.mxu0 0.0
    %3277 = vmatpush1.msra.mxu0 0.0
    %3278 = vmatprep.subr.mxu0 0.0
    %3279 = vmatpush1.msra.mxu0 %v3179
    %3280 = vmatprep.subr.mxu0 0.0
    %3281 = vmatpush1.msra.mxu0 %v3176
    %3282 = vmatprep.subr.mxu0 0.0
    %3283 = vmatpush1.msra.mxu0 %v3173
    %3284 = vmatprep.subr.mxu0 0.0
    %3285 = vmatpush1.msra.mxu0 %v3170
    %3286 = vmatprep.subr.mxu0 0.0
    %3287 = vmatpush2.msra.mxu0 0.0
    %3288 = vmatprep.subr.mxu0 0.0
    %3289 = vmatpush2.msra.mxu0 0.0
    %3290 = vmatprep.subr.mxu0 0.0
    %3291 = vmatpush2.msra.mxu0 0.0
    %3292 = vmatprep.subr.mxu0 0.0
    %3293 = vmatpush2.msra.mxu0 0.0
    %3294 = vmatprep.subr.mxu0 0.0
    %3295 = vmatpush2.msra.mxu0 0.0
    %3296 = vmatprep.subr.mxu0 0.0
    %3297 = vmatpush2.msra.mxu0 0.0
    %3298 = vmatprep.subr.mxu0 0.0
    %3299 = vmatpush2.msra.mxu0 0.0
    %3300 = vmatprep.subr.mxu0 0.0
    %3301 = vmatpush2.msra.mxu0 0.0
    %3302 = vmatprep.subr.mxu0 0.0
    %3303 = vmatpush2.msra.mxu0 0.0
    %3304 = vmatprep.subr.mxu0 0.0
    %3305 = vmatpush2.msra.mxu0 0.0
    %3306 = vmatprep.subr.mxu0 0.0
    %3307 = vmatpush2.msra.mxu0 0.0
    %3308 = vmatprep.subr.mxu0 0.0
    %3309 = vmatpush2.msra.mxu0 0.0
    %3310 = vmatprep.subr.mxu0 0.0
    %3311 = vmatpush2.msra.mxu0 0.0
    %3312 = vmatprep.subr.mxu0 0.0
    %3313 = vmatpush2.msra.mxu0 0.0
    %3314 = vmatprep.subr.mxu0 0.0
    %3315 = vmatpush2.msra.mxu0 0.0
    %3316 = vmatprep.subr.mxu0 0.0
    %3317 = vmatpush2.msra.mxu0 0.0
    %3318 = vmatprep.mubr.f32.mxu0 0.0
    %3319 = vmatmul.mubr.f32.gmra.mxu0 %v3181
    %v3320 = vpop.f32.mrf.mxu0
    %v3321 = vadd.f32 0.0, %v3320
    %v3322 = vpop.f32.mrf.mxu0
    %3323 = vdwg.mxu0
    %s3324 = scalar_lea.vmem [#allocation2], 32
    %v3325 = vld [vmem:[%s3324] sm:$0xff]
    %v3326 = vadd.f32 %v3325, %v2862
    %v3327 = vadd.f32 %v3326, %v3250
    %v3328 = vxor.u32 %v3327, 2147483648
    %v3329 = vmul.f32 %v3328, 1.442695
    %v3330 = vpow.pop %v3329
    %v3331 = vadd.f32 %v3330, 1.0
    %v3332 = vrcp.pop %v3331
    %v3333 = vmul.f32 1.0, %v3332
    %v3334 = vadd.f32 %v2862, %v679
    %3336 = vrot.lane.b32.xlu0 %v3334, 96
    %v3337 = vpop.permute.xlu0 %3336
    %v3339 = vmul.f32 %v3333, %v3337
    %3341 = vrot.lane.b32.xlu0 %v3339, 32
    %v3342 = vpop.permute.xlu0 %3341
    %v3344 = vadd.f32 %v3325, %v3342
    %v3345 = vadd.f32 %v3344, %v3250
    %v3346 = vtanh.pop %v3345
    %s3347 = scalar_lea.vmem %s2, 32
    %v3348 = vld [vmem:[%s3347] sm:$0xff]
    %v3349 = vsub.f32 1.0, %v3333
    %v3350 = vmul.f32 %v3349, %v2702
    %3352 = vrot.lane.b32.xlu0 %v3346, 64
    %v3353 = vpop.permute.xlu0 %3352
    %v3355 = vmul.f32 %v3333, %v3353
    %v3356 = vadd.f32 %v3350, %v3355
    %3358 = vset.pattern.permute.xlu0 0
    %3359 = vperm.xlu0 %3358, %v3348
    %v3360 = vpop.permute.xlu0 %3359
    %v3362 = vmul.f32 %v3360, %v3356
    %v3363 = vsub.f32 1.0, %v3348
    %3365 = vset.pattern.permute.xlu0 0
    %3366 = vperm.xlu0 %3365, %v3363
    %v3367 = vpop.permute.xlu0 %3366
    %v3369 = vmul.f32 %v3367, %v2702
    %v3370 = vadd.f32 %v3362, %v3369
    %v3371 = vld [vmem:[%s7] sm:$0xff]
    %v3372 = vld [vmem:[%s7 + $0x8] sm:$0xff]
    %v3373 = vld [vmem:[%s7 + $0x10] sm:$0xff]
    %v3374 = vld [vmem:[%s7 + $0x18] sm:$0xff]
    %v3375 = vld [vmem:[%s7 + $0x20] sm:$0xff]
    %v3376 = vld [vmem:[%s7 + $0x28] sm:$0xff]
    %v3377 = vld [vmem:[%s7 + $0x30] sm:$0xff]
    %v3378 = vld [vmem:[%s7 + $0x38] sm:$0xff]
    %v3379 = vld [vmem:[%s7 + $0x40] sm:$0xff]
    %v3380 = vld [vmem:[%s7 + $0x48] sm:$0xff]
    %v3381 = vld [vmem:[%s7 + $0x50] sm:$0xff]
    %v3382 = vld [vmem:[%s7 + $0x58] sm:$0xff]
    %v3383 = vld [vmem:[%s7 + $0x60] sm:$0xff]
    %v3384 = vld [vmem:[%s7 + $0x68] sm:$0xff]
    %v3385 = vld [vmem:[%s7 + $0x70] sm:$0xff]
    %v3386 = vld [vmem:[%s7 + $0x78] sm:$0xff]
    %v3388 = vsel %vm144, %v3370, 0
    %3390 = vmatprep.subr.mxu0 0.0
    %3391 = vmatpush1.msra.mxu0 0.0
    %3392 = vmatprep.subr.mxu0 0.0
    %3393 = vmatpush1.msra.mxu0 0.0
    %3394 = vmatprep.subr.mxu0 0.0
    %3395 = vmatpush1.msra.mxu0 0.0
    %3396 = vmatprep.subr.mxu0 0.0
    %3397 = vmatpush1.msra.mxu0 0.0
    %3398 = vmatprep.subr.mxu0 0.0
    %3399 = vmatpush1.msra.mxu0 0.0
    %3400 = vmatprep.subr.mxu0 0.0
    %3401 = vmatpush1.msra.mxu0 0.0
    %3402 = vmatprep.subr.mxu0 0.0
    %3403 = vmatpush1.msra.mxu0 0.0
    %3404 = vmatprep.subr.mxu0 0.0
    %3405 = vmatpush1.msra.mxu0 0.0
    %3406 = vmatprep.subr.mxu0 0.0
    %3407 = vmatpush1.msra.mxu0 0.0
    %3408 = vmatprep.subr.mxu0 0.0
    %3409 = vmatpush1.msra.mxu0 0.0
    %3410 = vmatprep.subr.mxu0 0.0
    %3411 = vmatpush1.msra.mxu0 0.0
    %3412 = vmatprep.subr.mxu0 0.0
    %3413 = vmatpush1.msra.mxu0 0.0
    %3414 = vmatprep.subr.mxu0 %v3384
    %3415 = vmatpush1.msra.mxu0 %v3383
    %3416 = vmatprep.subr.mxu0 %v3380
    %3417 = vmatpush1.msra.mxu0 %v3379
    %3418 = vmatprep.subr.mxu0 %v3376
    %3419 = vmatpush1.msra.mxu0 %v3375
    %3420 = vmatprep.subr.mxu0 %v3372
    %3421 = vmatpush1.msra.mxu0 %v3371
    %3422 = vmatprep.subr.mxu0 0.0
    %3423 = vmatpush2.msra.mxu0 0.0
    %3424 = vmatprep.subr.mxu0 0.0
    %3425 = vmatpush2.msra.mxu0 0.0
    %3426 = vmatprep.subr.mxu0 0.0
    %3427 = vmatpush2.msra.mxu0 0.0
    %3428 = vmatprep.subr.mxu0 0.0
    %3429 = vmatpush2.msra.mxu0 0.0
    %3430 = vmatprep.subr.mxu0 0.0
    %3431 = vmatpush2.msra.mxu0 0.0
    %3432 = vmatprep.subr.mxu0 0.0
    %3433 = vmatpush2.msra.mxu0 0.0
    %3434 = vmatprep.subr.mxu0 0.0
    %3435 = vmatpush2.msra.mxu0 0.0
    %3436 = vmatprep.subr.mxu0 0.0
    %3437 = vmatpush2.msra.mxu0 0.0
    %3438 = vmatprep.subr.mxu0 0.0
    %3439 = vmatpush2.msra.mxu0 0.0
    %3440 = vmatprep.subr.mxu0 0.0
    %3441 = vmatpush2.msra.mxu0 0.0
    %3442 = vmatprep.subr.mxu0 0.0
    %3443 = vmatpush2.msra.mxu0 0.0
    %3444 = vmatprep.subr.mxu0 0.0
    %3445 = vmatpush2.msra.mxu0 0.0
    %3446 = vmatprep.subr.mxu0 0.0
    %3447 = vmatpush2.msra.mxu0 0.0
    %3448 = vmatprep.subr.mxu0 0.0
    %3449 = vmatpush2.msra.mxu0 0.0
    %3450 = vmatprep.subr.mxu0 0.0
    %3451 = vmatpush2.msra.mxu0 0.0
    %3452 = vmatprep.subr.mxu0 0.0
    %3453 = vmatpush2.msra.mxu0 0.0
    %3454 = vmatprep.mubr.f32.mxu0 0.0
    %3455 = vmatmul.mubr.f32.gmra.mxu0 %v3388
    %v3456 = vpop.f32.mrf.mxu0
    %v3457 = vadd.f32 0.0, %v3456
    %v3458 = vpop.f32.mrf.mxu0
    %v3459 = vadd.f32 0.0, %v3458
    %3460 = vdwg.mxu0
    %3461 = vmatprep.subr.mxu0 0.0
    %3462 = vmatpush1.msra.mxu0 0.0
    %3463 = vmatprep.subr.mxu0 0.0
    %3464 = vmatpush1.msra.mxu0 0.0
    %3465 = vmatprep.subr.mxu0 0.0
    %3466 = vmatpush1.msra.mxu0 0.0
    %3467 = vmatprep.subr.mxu0 0.0
    %3468 = vmatpush1.msra.mxu0 0.0
    %3469 = vmatprep.subr.mxu0 0.0
    %3470 = vmatpush1.msra.mxu0 0.0
    %3471 = vmatprep.subr.mxu0 0.0
    %3472 = vmatpush1.msra.mxu0 0.0
    %3473 = vmatprep.subr.mxu0 0.0
    %3474 = vmatpush1.msra.mxu0 0.0
    %3475 = vmatprep.subr.mxu0 0.0
    %3476 = vmatpush1.msra.mxu0 0.0
    %3477 = vmatprep.subr.mxu0 0.0
    %3478 = vmatpush1.msra.mxu0 0.0
    %3479 = vmatprep.subr.mxu0 0.0
    %3480 = vmatpush1.msra.mxu0 0.0
    %3481 = vmatprep.subr.mxu0 0.0
    %3482 = vmatpush1.msra.mxu0 0.0
    %3483 = vmatprep.subr.mxu0 0.0
    %3484 = vmatpush1.msra.mxu0 0.0
    %3485 = vmatprep.subr.mxu0 %v3386
    %3486 = vmatpush1.msra.mxu0 %v3385
    %3487 = vmatprep.subr.mxu0 %v3382
    %3488 = vmatpush1.msra.mxu0 %v3381
    %3489 = vmatprep.subr.mxu0 %v3378
    %3490 = vmatpush1.msra.mxu0 %v3377
    %3491 = vmatprep.subr.mxu0 %v3374
    %3492 = vmatpush1.msra.mxu0 %v3373
    %3493 = vmatprep.subr.mxu0 0.0
    %3494 = vmatpush2.msra.mxu0 0.0
    %3495 = vmatprep.subr.mxu0 0.0
    %3496 = vmatpush2.msra.mxu0 0.0
    %3497 = vmatprep.subr.mxu0 0.0
    %3498 = vmatpush2.msra.mxu0 0.0
    %3499 = vmatprep.subr.mxu0 0.0
    %3500 = vmatpush2.msra.mxu0 0.0
    %3501 = vmatprep.subr.mxu0 0.0
    %3502 = vmatpush2.msra.mxu0 0.0
    %3503 = vmatprep.subr.mxu0 0.0
    %3504 = vmatpush2.msra.mxu0 0.0
    %3505 = vmatprep.subr.mxu0 0.0
    %3506 = vmatpush2.msra.mxu0 0.0
    %3507 = vmatprep.subr.mxu0 0.0
    %3508 = vmatpush2.msra.mxu0 0.0
    %3509 = vmatprep.subr.mxu0 0.0
    %3510 = vmatpush2.msra.mxu0 0.0
    %3511 = vmatprep.subr.mxu0 0.0
    %3512 = vmatpush2.msra.mxu0 0.0
    %3513 = vmatprep.subr.mxu0 0.0
    %3514 = vmatpush2.msra.mxu0 0.0
    %3515 = vmatprep.subr.mxu0 0.0
    %3516 = vmatpush2.msra.mxu0 0.0
    %3517 = vmatprep.subr.mxu0 0.0
    %3518 = vmatpush2.msra.mxu0 0.0
    %3519 = vmatprep.subr.mxu0 0.0
    %3520 = vmatpush2.msra.mxu0 0.0
    %3521 = vmatprep.subr.mxu0 0.0
    %3522 = vmatpush2.msra.mxu0 0.0
    %3523 = vmatprep.subr.mxu0 0.0
    %3524 = vmatpush2.msra.mxu0 0.0
    %3525 = vmatprep.mubr.f32.mxu0 0.0
    %3526 = vmatmul.mubr.f32.gmra.mxu0 %v3388
    %v3527 = vpop.f32.mrf.mxu0
    %v3528 = vadd.f32 0.0, %v3527
    %v3529 = vpop.f32.mrf.mxu0
    %v3530 = vadd.f32 0.0, %v3529
    %3531 = vdwg.mxu0
    %v3532 = vadd.f32 %v3457, %v3252
    %v3533 = vadd.f32 %v3459, %v3321
    %s3534 = scalar_lea.vmem [#allocation5], 64
    %v3535 = vld [vmem:[%s3534] sm:$0xff]
    %v3536 = vld [vmem:[%s3534 + $0x8] sm:$0xff]
    %v3537 = vadd.f32 %v3532, %v3535
    %v3538 = vadd.f32 %v3533, %v3536
    %v3539 = vmax.f32 %v3537, %v3538
    %v3540 = vmul.f32 %v3539, %v3360
    %s3541 = scalar_lea.vmem [#allocation13], 32
    %3542 = vst [vmem:[%s3541] sm:$0xff] %v3540
    %v3543 = vld [vmem:[#allocation8] sm:$0xff]
    %v3544 = vld [vmem:[#allocation8 + $0x8] sm:$0xff]
    %v3545 = vld [vmem:[#allocation8 + $0x10] sm:$0xff]
    %v3546 = vld [vmem:[#allocation8 + $0x18] sm:$0xff]
    %v3547 = vld [vmem:[#allocation8 + $0x20] sm:$0xff]
    %v3548 = vld [vmem:[#allocation8 + $0x28] sm:$0xff]
    %v3549 = vld [vmem:[#allocation8 + $0x30] sm:$0xff]
    %v3550 = vld [vmem:[#allocation8 + $0x38] sm:$0xff]
    %v3551 = vadd.f32 %v3528, %v3543
    %v3552 = vadd.f32 %v3528, %v3544
    %v3553 = vadd.f32 %v3528, %v3545
    %v3554 = vadd.f32 %v3528, %v3546
    %v3555 = vadd.f32 %v3528, %v3547
    %v3556 = vadd.f32 %v3528, %v3548
    %v3557 = vadd.f32 %v3528, %v3549
    %v3558 = vadd.f32 %v3528, %v3550
    %v3559 = vtanh.pop %v3551
    %v3560 = vtanh.pop %v3552
    %v3561 = vtanh.pop %v3553
    %v3562 = vtanh.pop %v3554
    %v3563 = vtanh.pop %v3555
    %v3564 = vtanh.pop %v3556
    %v3565 = vtanh.pop %v3557
    %v3566 = vtanh.pop %v3558
    %v3567 = vld [vmem:[#allocation11] sm:$0xff]
    %v3568 = vld [vmem:[#allocation11 + $0x8] sm:$0xff]
    %v3569 = vld [vmem:[#allocation11 + $0x10] sm:$0xff]
    %v3570 = vld [vmem:[#allocation11 + $0x18] sm:$0xff]
    %v3571 = vld [vmem:[#allocation11 + $0x20] sm:$0xff]
    %v3572 = vld [vmem:[#allocation11 + $0x28] sm:$0xff]
    %v3573 = vld [vmem:[#allocation11 + $0x30] sm:$0xff]
    %v3574 = vld [vmem:[#allocation11 + $0x38] sm:$0xff]
    %v3575 = vld [vmem:[#allocation11 + $0x40] sm:$0xff]
    %v3576 = vld [vmem:[#allocation11 + $0x48] sm:$0xff]
    %v3577 = vld [vmem:[#allocation11 + $0x50] sm:$0xff]
    %v3578 = vld [vmem:[#allocation11 + $0x58] sm:$0xff]
    %v3579 = vld [vmem:[#allocation11 + $0x60] sm:$0xff]
    %v3580 = vld [vmem:[#allocation11 + $0x68] sm:$0xff]
    %v3581 = vld [vmem:[#allocation11 + $0x70] sm:$0xff]
    %v3582 = vld [vmem:[#allocation11 + $0x78] sm:$0xff]
    %3583 = vmatprep.subr.mxu0 0.0
    %3584 = vmatpush1.msra.mxu0 %v3582
    %3585 = vmatprep.subr.mxu0 0.0
    %3586 = vmatpush1.msra.mxu0 %v3581
    %3587 = vmatprep.subr.mxu0 0.0
    %3588 = vmatpush1.msra.mxu0 %v3580
    %3589 = vmatprep.subr.mxu0 0.0
    %3590 = vmatpush1.msra.mxu0 %v3579
    %3591 = vmatprep.subr.mxu0 0.0
    %3592 = vmatpush1.msra.mxu0 %v3578
    %3593 = vmatprep.subr.mxu0 0.0
    %3594 = vmatpush1.msra.mxu0 %v3577
    %3595 = vmatprep.subr.mxu0 0.0
    %3596 = vmatpush1.msra.mxu0 %v3576
    %3597 = vmatprep.subr.mxu0 0.0
    %3598 = vmatpush1.msra.mxu0 %v3575
    %3599 = vmatprep.subr.mxu0 0.0
    %3600 = vmatpush1.msra.mxu0 %v3574
    %3601 = vmatprep.subr.mxu0 0.0
    %3602 = vmatpush1.msra.mxu0 %v3573
    %3603 = vmatprep.subr.mxu0 0.0
    %3604 = vmatpush1.msra.mxu0 %v3572
    %3605 = vmatprep.subr.mxu0 0.0
    %3606 = vmatpush1.msra.mxu0 %v3571
    %3607 = vmatprep.subr.mxu0 0.0
    %3608 = vmatpush1.msra.mxu0 %v3570
    %3609 = vmatprep.subr.mxu0 0.0
    %3610 = vmatpush1.msra.mxu0 %v3569
    %3611 = vmatprep.subr.mxu0 0.0
    %3612 = vmatpush1.msra.mxu0 %v3568
    %3613 = vmatprep.subr.mxu0 0.0
    %3614 = vmatpush1.msra.mxu0 %v3567
    %3615 = vmatprep.subr.mxu0 0.0
    %3616 = vmatpush2.msra.mxu0 0.0
    %3617 = vmatprep.subr.mxu0 0.0
    %3618 = vmatpush2.msra.mxu0 0.0
    %3619 = vmatprep.subr.mxu0 0.0
    %3620 = vmatpush2.msra.mxu0 0.0
    %3621 = vmatprep.subr.mxu0 0.0
    %3622 = vmatpush2.msra.mxu0 0.0
    %3623 = vmatprep.subr.mxu0 0.0
    %3624 = vmatpush2.msra.mxu0 0.0
    %3625 = vmatprep.subr.mxu0 0.0
    %3626 = vmatpush2.msra.mxu0 0.0
    %3627 = vmatprep.subr.mxu0 0.0
    %3628 = vmatpush2.msra.mxu0 0.0
    %3629 = vmatprep.subr.mxu0 0.0
    %3630 = vmatpush2.msra.mxu0 0.0
    %3631 = vmatprep.subr.mxu0 0.0
    %3632 = vmatpush2.msra.mxu0 0.0
    %3633 = vmatprep.subr.mxu0 0.0
    %3634 = vmatpush2.msra.mxu0 0.0
    %3635 = vmatprep.subr.mxu0 0.0
    %3636 = vmatpush2.msra.mxu0 0.0
    %3637 = vmatprep.subr.mxu0 0.0
    %3638 = vmatpush2.msra.mxu0 0.0
    %3639 = vmatprep.subr.mxu0 0.0
    %3640 = vmatpush2.msra.mxu0 0.0
    %3641 = vmatprep.subr.mxu0 0.0
    %3642 = vmatpush2.msra.mxu0 0.0
    %3643 = vmatprep.subr.mxu0 0.0
    %3644 = vmatpush2.msra.mxu0 0.0
    %3645 = vmatprep.subr.mxu0 0.0
    %3646 = vmatpush2.msra.mxu0 0.0
    %3647 = vmatprep.mubr.f32.mxu0 0.0
    %3648 = vmatmul.mubr.f32.gmra.mxu0 %v3559
    %v3649 = vpop.f32.mrf.mxu0
    %v3650 = vadd.f32 0.0, %v3649
    %v3651 = vpop.f32.mrf.mxu0
    %3652 = vmatprep.mubr.f32.mxu0 0.0
    %3653 = vmatmul.mubr.f32.gmra.mxu0 %v3560
    %v3654 = vpop.f32.mrf.mxu0
    %v3655 = vadd.f32 0.0, %v3654
    %v3656 = vpop.f32.mrf.mxu0
    %3657 = vmatprep.mubr.f32.mxu0 0.0
    %3658 = vmatmul.mubr.f32.gmra.mxu0 %v3561
    %v3659 = vpop.f32.mrf.mxu0
    %v3660 = vadd.f32 0.0, %v3659
    %v3661 = vpop.f32.mrf.mxu0
    %3662 = vmatprep.mubr.f32.mxu0 0.0
    %3663 = vmatmul.mubr.f32.gmra.mxu0 %v3562
    %v3664 = vpop.f32.mrf.mxu0
    %v3665 = vadd.f32 0.0, %v3664
    %v3666 = vpop.f32.mrf.mxu0
    %3667 = vmatprep.mubr.f32.mxu0 0.0
    %3668 = vmatmul.mubr.f32.gmra.mxu0 %v3563
    %v3669 = vpop.f32.mrf.mxu0
    %v3670 = vadd.f32 0.0, %v3669
    %v3671 = vpop.f32.mrf.mxu0
    %3672 = vmatprep.mubr.f32.mxu0 0.0
    %3673 = vmatmul.mubr.f32.gmra.mxu0 %v3564
    %v3674 = vpop.f32.mrf.mxu0
    %v3675 = vadd.f32 0.0, %v3674
    %v3676 = vpop.f32.mrf.mxu0
    %3677 = vmatprep.mubr.f32.mxu0 0.0
    %3678 = vmatmul.mubr.f32.gmra.mxu0 %v3565
    %v3679 = vpop.f32.mrf.mxu0
    %v3680 = vadd.f32 0.0, %v3679
    %v3681 = vpop.f32.mrf.mxu0
    %3682 = vmatprep.mubr.f32.mxu0 0.0
    %3683 = vmatmul.mubr.f32.gmra.mxu0 %v3566
    %v3684 = vpop.f32.mrf.mxu0
    %v3685 = vadd.f32 0.0, %v3684
    %v3686 = vpop.f32.mrf.mxu0
    %3687 = vdwg.mxu0
    %v3688 = vsel %vm364, %v3650, -inf
    %v3689 = vsel %vm364, %v3655, -inf
    %v3690 = vsel %vm364, %v3660, -inf
    %v3691 = vsel %vm364, %v3665, -inf
    %v3692 = vsel %vm364, %v3670, -inf
    %v3693 = vmax.f32 %v3688, %v3692
    %v3694 = vsel %vm364, %v3675, -inf
    %v3695 = vmax.f32 %v3689, %v3694
    %v3696 = vsel %vm364, %v3680, -inf
    %v3697 = vmax.f32 %v3690, %v3696
    %v3698 = vsel %vm364, %v3685, -inf
    %v3699 = vmax.f32 %v3691, %v3698
    %v3700 = vmax.f32 %v3693, %v3695
    %v3701 = vmax.f32 %v3697, %v3699
    %v3702 = vmax.f32 %v3700, %v3701
    %v3703 = vsub.f32 %v3650, %v3702
    %v3704 = vsub.f32 %v3655, %v3702
    %v3705 = vsub.f32 %v3660, %v3702
    %v3706 = vsub.f32 %v3665, %v3702
    %v3707 = vsub.f32 %v3670, %v3702
    %v3708 = vsub.f32 %v3675, %v3702
    %v3709 = vsub.f32 %v3680, %v3702
    %v3710 = vsub.f32 %v3685, %v3702
    %v3711 = vmul.f32 %v3703, 1.442695
    %v3712 = vpow.pop %v3711
    %v3713 = vmul.f32 %v3704, 1.442695
    %v3714 = vpow.pop %v3713
    %v3715 = vmul.f32 %v3705, 1.442695
    %v3716 = vpow.pop %v3715
    %v3717 = vmul.f32 %v3706, 1.442695
    %v3718 = vpow.pop %v3717
    %v3719 = vmul.f32 %v3707, 1.442695
    %v3720 = vpow.pop %v3719
    %v3721 = vmul.f32 %v3708, 1.442695
    %v3722 = vpow.pop %v3721
    %v3723 = vmul.f32 %v3709, 1.442695
    %v3724 = vpow.pop %v3723
    %v3725 = vmul.f32 %v3710, 1.442695
    %v3726 = vpow.pop %v3725
    %v3727 = vld [vmem:[%s6] sm:$0xff]
    %v3728 = vld [vmem:[%s6 + $0x8] sm:$0xff]
    %v3729 = vld [vmem:[%s6 + $0x10] sm:$0xff]
    %v3730 = vld [vmem:[%s6 + $0x18] sm:$0xff]
    %v3731 = vld [vmem:[%s6 + $0x20] sm:$0xff]
    %v3732 = vld [vmem:[%s6 + $0x28] sm:$0xff]
    %v3733 = vld [vmem:[%s6 + $0x30] sm:$0xff]
    %v3734 = vld [vmem:[%s6 + $0x38] sm:$0xff]
    %v3735 = vmul.f32 %v3712, %v3727
    %v3736 = vmul.f32 %v3714, %v3728
    %v3737 = vmul.f32 %v3716, %v3729
    %v3738 = vmul.f32 %v3718, %v3730
    %v3739 = vmul.f32 %v3720, %v3731
    %v3740 = vmul.f32 %v3722, %v3732
    %v3741 = vmul.f32 %v3724, %v3733
    %v3742 = vmul.f32 %v3726, %v3734
    %v3743 = vsel %vm364, %v3735, 0.0
    %v3744 = vsel %vm364, %v3736, 0.0
    %v3745 = vadd.f32 %v3743, %v3744
    %v3746 = vsel %vm364, %v3737, 0.0
    %v3747 = vadd.f32 %v3745, %v3746
    %v3748 = vsel %vm364, %v3738, 0.0
    %v3749 = vadd.f32 %v3747, %v3748
    %v3750 = vsel %vm364, %v3739, 0.0
    %v3751 = vadd.f32 %v3749, %v3750
    %v3752 = vsel %vm364, %v3740, 0.0
    %v3753 = vadd.f32 %v3751, %v3752
    %v3754 = vsel %vm364, %v3741, 0.0
    %v3755 = vadd.f32 %v3753, %v3754
    %v3756 = vsel %vm364, %v3742, 0.0
    %v3757 = vadd.f32 %v3755, %v3756
    %v3758 = vld [vmem:[#allocation7] sm:$0xff]
    %v3759 = vld [vmem:[#allocation7 + $0x8] sm:$0xff]
    %v3760 = vld [vmem:[#allocation7 + $0x10] sm:$0xff]
    %v3761 = vld [vmem:[#allocation7 + $0x18] sm:$0xff]
    %v3762 = vld [vmem:[#allocation7 + $0x20] sm:$0xff]
    %v3763 = vld [vmem:[#allocation7 + $0x28] sm:$0xff]
    %v3764 = vld [vmem:[#allocation7 + $0x30] sm:$0xff]
    %v3765 = vld [vmem:[#allocation7 + $0x38] sm:$0xff]
    %3767 = vset.pattern.permute.xlu0 0
    %3768 = vperm.xlu0 %3767, %v3735
    %v3769 = vpop.permute.xlu0 %3768
    %3772 = vset.pattern.permute.xlu0 0
    %3773 = vperm.xlu0 %3772, %v3736
    %v3774 = vpop.permute.xlu0 %3773
    %3777 = vset.pattern.permute.xlu0 0
    %3778 = vperm.xlu0 %3777, %v3737
    %v3779 = vpop.permute.xlu0 %3778
    %3782 = vset.pattern.permute.xlu0 0
    %3783 = vperm.xlu0 %3782, %v3738
    %v3784 = vpop.permute.xlu0 %3783
    %3787 = vset.pattern.permute.xlu0 0
    %3788 = vperm.xlu0 %3787, %v3739
    %v3789 = vpop.permute.xlu0 %3788
    %3792 = vset.pattern.permute.xlu0 0
    %3793 = vperm.xlu0 %3792, %v3740
    %v3794 = vpop.permute.xlu0 %3793
    %3797 = vset.pattern.permute.xlu0 0
    %3798 = vperm.xlu0 %3797, %v3741
    %v3799 = vpop.permute.xlu0 %3798
    %3802 = vset.pattern.permute.xlu0 0
    %3803 = vperm.xlu0 %3802, %v3742
    %v3804 = vpop.permute.xlu0 %3803
    %v3806 = vmul.f32 %v3769, %v3758
    %v3807 = vmul.f32 %v3774, %v3759
    %v3808 = vmul.f32 %v3779, %v3760
    %v3809 = vmul.f32 %v3784, %v3761
    %v3810 = vmul.f32 %v3789, %v3762
    %v3811 = vmul.f32 %v3794, %v3763
    %v3812 = vmul.f32 %v3799, %v3764
    %v3813 = vmul.f32 %v3804, %v3765
    %v3814 = vsel %vm144, %v3806, 0.0
    %v3815 = vsel %vm144, %v3807, 0.0
    %v3816 = vadd.f32 %v3814, %v3815
    %v3817 = vsel %vm144, %v3808, 0.0
    %v3818 = vadd.f32 %v3816, %v3817
    %v3819 = vsel %vm144, %v3809, 0.0
    %v3820 = vadd.f32 %v3818, %v3819
    %v3821 = vsel %vm144, %v3810, 0.0
    %v3822 = vadd.f32 %v3820, %v3821
    %v3823 = vsel %vm144, %v3811, 0.0
    %v3824 = vadd.f32 %v3822, %v3823
    %v3825 = vsel %vm144, %v3812, 0.0
    %v3826 = vadd.f32 %v3824, %v3825
    %v3827 = vsel %vm144, %v3813, 0.0
    %v3828 = vadd.f32 %v3826, %v3827
    %v3829 = vrcp.pop %v3757
    %3831 = vset.pattern.permute.xlu0 0
    %3832 = vperm.xlu0 %3831, %v3829
    %v3833 = vpop.permute.xlu0 %3832
    %v3835 = vmul.f32 %v3828, %v3833
    %v3836 = vld [vmem:[#allocation10] sm:$0xff]
    %v3837 = vld [vmem:[#allocation10 + $0x8] sm:$0xff]
    %v3838 = vld [vmem:[#allocation10 + $0x10] sm:$0xff]
    %v3839 = vld [vmem:[#allocation10 + $0x18] sm:$0xff]
    %v3840 = vld [vmem:[#allocation10 + $0x20] sm:$0xff]
    %v3841 = vld [vmem:[#allocation10 + $0x28] sm:$0xff]
    %v3842 = vld [vmem:[#allocation10 + $0x30] sm:$0xff]
    %v3843 = vld [vmem:[#allocation10 + $0x38] sm:$0xff]
    %v3844 = vld [vmem:[#allocation10 + $0x40] sm:$0xff]
    %v3845 = vld [vmem:[#allocation10 + $0x48] sm:$0xff]
    %v3846 = vld [vmem:[#allocation10 + $0x50] sm:$0xff]
    %v3847 = vld [vmem:[#allocation10 + $0x58] sm:$0xff]
    %v3849 = vsel %vm144, %v3835, 0
    %3851 = vmatprep.subr.mxu0 0.0
    %3852 = vmatpush1.msra.mxu0 0.0
    %3853 = vmatprep.subr.mxu0 0.0
    %3854 = vmatpush1.msra.mxu0 0.0
    %3855 = vmatprep.subr.mxu0 0.0
    %3856 = vmatpush1.msra.mxu0 0.0
    %3857 = vmatprep.subr.mxu0 0.0
    %3858 = vmatpush1.msra.mxu0 0.0
    %3859 = vmatprep.subr.mxu0 0.0
    %3860 = vmatpush1.msra.mxu0 0.0
    %3861 = vmatprep.subr.mxu0 0.0
    %3862 = vmatpush1.msra.mxu0 0.0
    %3863 = vmatprep.subr.mxu0 0.0
    %3864 = vmatpush1.msra.mxu0 0.0
    %3865 = vmatprep.subr.mxu0 0.0
    %3866 = vmatpush1.msra.mxu0 0.0
    %3867 = vmatprep.subr.mxu0 0.0
    %3868 = vmatpush1.msra.mxu0 0.0
    %3869 = vmatprep.subr.mxu0 0.0
    %3870 = vmatpush1.msra.mxu0 0.0
    %3871 = vmatprep.subr.mxu0 0.0
    %3872 = vmatpush1.msra.mxu0 0.0
    %3873 = vmatprep.subr.mxu0 0.0
    %3874 = vmatpush1.msra.mxu0 0.0
    %3875 = vmatprep.subr.mxu0 %v3846
    %3876 = vmatpush1.msra.mxu0 %v3845
    %3877 = vmatprep.subr.mxu0 %v3843
    %3878 = vmatpush1.msra.mxu0 %v3842
    %3879 = vmatprep.subr.mxu0 %v3840
    %3880 = vmatpush1.msra.mxu0 %v3839
    %3881 = vmatprep.subr.mxu0 %v3837
    %3882 = vmatpush1.msra.mxu0 %v3836
    %3883 = vmatprep.subr.mxu0 0.0
    %3884 = vmatpush2.msra.mxu0 0.0
    %3885 = vmatprep.subr.mxu0 0.0
    %3886 = vmatpush2.msra.mxu0 0.0
    %3887 = vmatprep.subr.mxu0 0.0
    %3888 = vmatpush2.msra.mxu0 0.0
    %3889 = vmatprep.subr.mxu0 0.0
    %3890 = vmatpush2.msra.mxu0 0.0
    %3891 = vmatprep.subr.mxu0 0.0
    %3892 = vmatpush2.msra.mxu0 0.0
    %3893 = vmatprep.subr.mxu0 0.0
    %3894 = vmatpush2.msra.mxu0 0.0
    %3895 = vmatprep.subr.mxu0 0.0
    %3896 = vmatpush2.msra.mxu0 0.0
    %3897 = vmatprep.subr.mxu0 0.0
    %3898 = vmatpush2.msra.mxu0 0.0
    %3899 = vmatprep.subr.mxu0 0.0
    %3900 = vmatpush2.msra.mxu0 0.0
    %3901 = vmatprep.subr.mxu0 0.0
    %3902 = vmatpush2.msra.mxu0 0.0
    %3903 = vmatprep.subr.mxu0 0.0
    %3904 = vmatpush2.msra.mxu0 0.0
    %3905 = vmatprep.subr.mxu0 0.0
    %3906 = vmatpush2.msra.mxu0 0.0
    %3907 = vmatprep.subr.mxu0 0.0
    %3908 = vmatpush2.msra.mxu0 0.0
    %3909 = vmatprep.subr.mxu0 0.0
    %3910 = vmatpush2.msra.mxu0 0.0
    %3911 = vmatprep.subr.mxu0 0.0
    %3912 = vmatpush2.msra.mxu0 0.0
    %3913 = vmatprep.subr.mxu0 0.0
    %3914 = vmatpush2.msra.mxu0 0.0
    %3915 = vmatprep.mubr.f32.mxu0 0.0
    %3916 = vmatmul.mubr.f32.gmra.mxu0 %v3849
    %v3917 = vpop.f32.mrf.mxu0
    %v3918 = vadd.f32 0.0, %v3917
    %v3919 = vpop.f32.mrf.mxu0
    %v3920 = vadd.f32 0.0, %v3919
    %3921 = vdwg.mxu0
    %3922 = vmatprep.subr.mxu0 0.0
    %3923 = vmatpush1.msra.mxu0 0.0
    %3924 = vmatprep.subr.mxu0 0.0
    %3925 = vmatpush1.msra.mxu0 0.0
    %3926 = vmatprep.subr.mxu0 0.0
    %3927 = vmatpush1.msra.mxu0 0.0
    %3928 = vmatprep.subr.mxu0 0.0
    %3929 = vmatpush1.msra.mxu0 0.0
    %3930 = vmatprep.subr.mxu0 0.0
    %3931 = vmatpush1.msra.mxu0 0.0
    %3932 = vmatprep.subr.mxu0 0.0
    %3933 = vmatpush1.msra.mxu0 0.0
    %3934 = vmatprep.subr.mxu0 0.0
    %3935 = vmatpush1.msra.mxu0 0.0
    %3936 = vmatprep.subr.mxu0 0.0
    %3937 = vmatpush1.msra.mxu0 0.0
    %3938 = vmatprep.subr.mxu0 0.0
    %3939 = vmatpush1.msra.mxu0 0.0
    %3940 = vmatprep.subr.mxu0 0.0
    %3941 = vmatpush1.msra.mxu0 0.0
    %3942 = vmatprep.subr.mxu0 0.0
    %3943 = vmatpush1.msra.mxu0 0.0
    %3944 = vmatprep.subr.mxu0 0.0
    %3945 = vmatpush1.msra.mxu0 0.0
    %3946 = vmatprep.subr.mxu0 0.0
    %3947 = vmatpush1.msra.mxu0 %v3847
    %3948 = vmatprep.subr.mxu0 0.0
    %3949 = vmatpush1.msra.mxu0 %v3844
    %3950 = vmatprep.subr.mxu0 0.0
    %3951 = vmatpush1.msra.mxu0 %v3841
    %3952 = vmatprep.subr.mxu0 0.0
    %3953 = vmatpush1.msra.mxu0 %v3838
    %3954 = vmatprep.subr.mxu0 0.0
    %3955 = vmatpush2.msra.mxu0 0.0
    %3956 = vmatprep.subr.mxu0 0.0
    %3957 = vmatpush2.msra.mxu0 0.0
    %3958 = vmatprep.subr.mxu0 0.0
    %3959 = vmatpush2.msra.mxu0 0.0
    %3960 = vmatprep.subr.mxu0 0.0
    %3961 = vmatpush2.msra.mxu0 0.0
    %3962 = vmatprep.subr.mxu0 0.0
    %3963 = vmatpush2.msra.mxu0 0.0
    %3964 = vmatprep.subr.mxu0 0.0
    %3965 = vmatpush2.msra.mxu0 0.0
    %3966 = vmatprep.subr.mxu0 0.0
    %3967 = vmatpush2.msra.mxu0 0.0
    %3968 = vmatprep.subr.mxu0 0.0
    %3969 = vmatpush2.msra.mxu0 0.0
    %3970 = vmatprep.subr.mxu0 0.0
    %3971 = vmatpush2.msra.mxu0 0.0
    %3972 = vmatprep.subr.mxu0 0.0
    %3973 = vmatpush2.msra.mxu0 0.0
    %3974 = vmatprep.subr.mxu0 0.0
    %3975 = vmatpush2.msra.mxu0 0.0
    %3976 = vmatprep.subr.mxu0 0.0
    %3977 = vmatpush2.msra.mxu0 0.0
    %3978 = vmatprep.subr.mxu0 0.0
    %3979 = vmatpush2.msra.mxu0 0.0
    %3980 = vmatprep.subr.mxu0 0.0
    %3981 = vmatpush2.msra.mxu0 0.0
    %3982 = vmatprep.subr.mxu0 0.0
    %3983 = vmatpush2.msra.mxu0 0.0
    %3984 = vmatprep.subr.mxu0 0.0
    %3985 = vmatpush2.msra.mxu0 0.0
    %3986 = vmatprep.mubr.f32.mxu0 0.0
    %3987 = vmatmul.mubr.f32.gmra.mxu0 %v3849
    %v3988 = vpop.f32.mrf.mxu0
    %v3989 = vadd.f32 0.0, %v3988
    %v3990 = vpop.f32.mrf.mxu0
    %3991 = vdwg.mxu0
    %s3992 = scalar_lea.vmem [#allocation2], 40
    %v3993 = vld [vmem:[%s3992] sm:$0xff]
    %v3994 = vadd.f32 %v3993, %v3530
    %v3995 = vadd.f32 %v3994, %v3918
    %v3996 = vxor.u32 %v3995, 2147483648
    %v3997 = vmul.f32 %v3996, 1.442695
    %v3998 = vpow.pop %v3997
    %v3999 = vadd.f32 %v3998, 1.0
    %v4000 = vrcp.pop %v3999
    %v4001 = vmul.f32 1.0, %v4000
    %v4002 = vadd.f32 %v3530, %v679
    %4004 = vrot.lane.b32.xlu0 %v4002, 96
    %v4005 = vpop.permute.xlu0 %4004
    %v4007 = vmul.f32 %v4001, %v4005
    %4009 = vrot.lane.b32.xlu0 %v4007, 32
    %v4010 = vpop.permute.xlu0 %4009
    %v4012 = vadd.f32 %v3993, %v4010
    %v4013 = vadd.f32 %v4012, %v3918
    %v4014 = vtanh.pop %v4013
    %s4015 = scalar_lea.vmem %s2, 40
    %v4016 = vld [vmem:[%s4015] sm:$0xff]
    %v4017 = vsub.f32 1.0, %v4001
    %v4018 = vmul.f32 %v4017, %v3370
    %4020 = vrot.lane.b32.xlu0 %v4014, 64
    %v4021 = vpop.permute.xlu0 %4020
    %v4023 = vmul.f32 %v4001, %v4021
    %v4024 = vadd.f32 %v4018, %v4023
    %4026 = vset.pattern.permute.xlu0 0
    %4027 = vperm.xlu0 %4026, %v4016
    %v4028 = vpop.permute.xlu0 %4027
    %v4030 = vmul.f32 %v4028, %v4024
    %v4031 = vsub.f32 1.0, %v4016
    %4033 = vset.pattern.permute.xlu0 0
    %4034 = vperm.xlu0 %4033, %v4031
    %v4035 = vpop.permute.xlu0 %4034
    %v4037 = vmul.f32 %v4035, %v3370
    %v4038 = vadd.f32 %v4030, %v4037
    %v4039 = vld [vmem:[%s7] sm:$0xff]
    %v4040 = vld [vmem:[%s7 + $0x8] sm:$0xff]
    %v4041 = vld [vmem:[%s7 + $0x20] sm:$0xff]
    %v4042 = vld [vmem:[%s7 + $0x28] sm:$0xff]
    %v4043 = vld [vmem:[%s7 + $0x40] sm:$0xff]
    %v4044 = vld [vmem:[%s7 + $0x48] sm:$0xff]
    %v4045 = vld [vmem:[%s7 + $0x60] sm:$0xff]
    %v4046 = vld [vmem:[%s7 + $0x68] sm:$0xff]
    %v4048 = vsel %vm144, %v4038, 0
    %4050 = vmatprep.subr.mxu0 0.0
    %4051 = vmatpush1.msra.mxu0 0.0
    %4052 = vmatprep.subr.mxu0 0.0
    %4053 = vmatpush1.msra.mxu0 0.0
    %4054 = vmatprep.subr.mxu0 0.0
    %4055 = vmatpush1.msra.mxu0 0.0
    %4056 = vmatprep.subr.mxu0 0.0
    %4057 = vmatpush1.msra.mxu0 0.0
    %4058 = vmatprep.subr.mxu0 0.0
    %4059 = vmatpush1.msra.mxu0 0.0
    %4060 = vmatprep.subr.mxu0 0.0
    %4061 = vmatpush1.msra.mxu0 0.0
    %4062 = vmatprep.subr.mxu0 0.0
    %4063 = vmatpush1.msra.mxu0 0.0
    %4064 = vmatprep.subr.mxu0 0.0
    %4065 = vmatpush1.msra.mxu0 0.0
    %4066 = vmatprep.subr.mxu0 0.0
    %4067 = vmatpush1.msra.mxu0 0.0
    %4068 = vmatprep.subr.mxu0 0.0
    %4069 = vmatpush1.msra.mxu0 0.0
    %4070 = vmatprep.subr.mxu0 0.0
    %4071 = vmatpush1.msra.mxu0 0.0
    %4072 = vmatprep.subr.mxu0 0.0
    %4073 = vmatpush1.msra.mxu0 0.0
    %4074 = vmatprep.subr.mxu0 %v4046
    %4075 = vmatpush1.msra.mxu0 %v4045
    %4076 = vmatprep.subr.mxu0 %v4044
    %4077 = vmatpush1.msra.mxu0 %v4043
    %4078 = vmatprep.subr.mxu0 %v4042
    %4079 = vmatpush1.msra.mxu0 %v4041
    %4080 = vmatprep.subr.mxu0 %v4040
    %4081 = vmatpush1.msra.mxu0 %v4039
    %4082 = vmatprep.subr.mxu0 0.0
    %4083 = vmatpush2.msra.mxu0 0.0
    %4084 = vmatprep.subr.mxu0 0.0
    %4085 = vmatpush2.msra.mxu0 0.0
    %4086 = vmatprep.subr.mxu0 0.0
    %4087 = vmatpush2.msra.mxu0 0.0
    %4088 = vmatprep.subr.mxu0 0.0
    %4089 = vmatpush2.msra.mxu0 0.0
    %4090 = vmatprep.subr.mxu0 0.0
    %4091 = vmatpush2.msra.mxu0 0.0
    %4092 = vmatprep.subr.mxu0 0.0
    %4093 = vmatpush2.msra.mxu0 0.0
    %4094 = vmatprep.subr.mxu0 0.0
    %4095 = vmatpush2.msra.mxu0 0.0
    %4096 = vmatprep.subr.mxu0 0.0
    %4097 = vmatpush2.msra.mxu0 0.0
    %4098 = vmatprep.subr.mxu0 0.0
    %4099 = vmatpush2.msra.mxu0 0.0
    %4100 = vmatprep.subr.mxu0 0.0
    %4101 = vmatpush2.msra.mxu0 0.0
    %4102 = vmatprep.subr.mxu0 0.0
    %4103 = vmatpush2.msra.mxu0 0.0
    %4104 = vmatprep.subr.mxu0 0.0
    %4105 = vmatpush2.msra.mxu0 0.0
    %4106 = vmatprep.subr.mxu0 0.0
    %4107 = vmatpush2.msra.mxu0 0.0
    %4108 = vmatprep.subr.mxu0 0.0
    %4109 = vmatpush2.msra.mxu0 0.0
    %4110 = vmatprep.subr.mxu0 0.0
    %4111 = vmatpush2.msra.mxu0 0.0
    %4112 = vmatprep.subr.mxu0 0.0
    %4113 = vmatpush2.msra.mxu0 0.0
    %4114 = vmatprep.mubr.f32.mxu0 0.0
    %4115 = vmatmul.mubr.f32.gmra.mxu0 %v4048
    %v4116 = vpop.f32.mrf.mxu0
    %v4117 = vadd.f32 0.0, %v4116
    %v4118 = vpop.f32.mrf.mxu0
    %v4119 = vadd.f32 0.0, %v4118
    %4120 = vdwg.mxu0
    %v4121 = vadd.f32 %v4117, %v3920
    %v4122 = vadd.f32 %v4119, %v3989
    %s4123 = scalar_lea.vmem [#allocation5], 80
    %v4124 = vld [vmem:[%s4123] sm:$0xff]
    %v4125 = vld [vmem:[%s4123 + $0x8] sm:$0xff]
    %v4126 = vadd.f32 %v4121, %v4124
    %v4127 = vadd.f32 %v4122, %v4125
    %v4128 = vmax.f32 %v4126, %v4127
    %v4129 = vmul.f32 %v4128, %v4028
    %s4130 = scalar_lea.vmem [#allocation13], 40
    %4131 = vst [vmem:[%s4130] sm:$0xff] %v4129
    // Predicated region
    $region70: #{tpu_custom_call.1} parent=1 // pred_check
      _
    $region71: #{tpu_custom_call.1} parent=1 // pred_check_branch
      %4133 = sbr.rel (0) target = $region73
    $region72: #{tpu_custom_call.1} parent=1 // pred_region
      %s4135 = ssub.s32 768, 768
      %4136 = vsyncadd [#allocation4], %s4135
      %s4137 = sshll.u32 [#allocation13], 4
      %s4138 = int_to_ptr.vmem [resolvable:$true] %s4137
      %4143 = dma.vmem_to_hbm [thread:$0]  %s4138, 768, %s11, [#allocation4], 128, 128, 8
    $region73: #{tpu_custom_call.1} parent=1 // pred_fallthru
      _
    // Predicated region
    $region74: #{tpu_custom_call.1} parent=1 // pred_check
      _
    $region75: #{tpu_custom_call.1} parent=1 // pred_check_branch
      %4145 = sbr.rel (0) target = $region77
    $region76: #{tpu_custom_call.1} parent=1 // pred_region
      %4146 = dma.done [#allocation4], 768
    $region77: #{tpu_custom_call.1} parent=1 // pred_fallthru
      _
    %4147 = vsyncpa [#allocation3], 1
    %4148 = vsyncpa [#allocation6], 1
    %4149 = vsyncpa [#allocation9], 1
    %4150 = vsyncpa [#allocation12], 1
    %4151 = vsyncpa [#allocation4], 1

</llo_original>
